<compile_context>
chip_gen: v7x
topology: tpu7x:2x2x1
jax: 0.10.0
libtpu: 0.0.40
codegen_flags: <defaults>
</compile_context>

<pallas_src>
import jax
import jax.numpy as jnp
from jax.experimental import pallas as pl
from jax.experimental.pallas import tpu as pltpu

# ---- small, self-consistent hyperparameters (stand-ins for 300/256/2048/512) ----
EMBED_SIZE     = 32
VOCAB_SIZE     = 128          # lane-dense preds writeback (multiple of 128)
ATTENTION_DIM  = 32
ENCODER_DIM    = 128
DECODER_DIM    = 64
PATCH          = 4            # stand-in encoder downsample (ResNet-50 uses /32)
IMG_C, IMG_H, IMG_W = 3, 16, 16
BATCH, SEQ     = 2, 8

VMEM_SPEC = pl.BlockSpec(memory_space=pltpu.MemorySpace.VMEM)
VMEM_LIMIT_BYTES = 48 * 1024 * 1024   # headroom under v7x's 64 MiB physical VMEM


# ----------------------- generic row-tiled matmul+bias ------------------------
def _matmul_bias_kernel(x_ref, w_ref, b_ref, o_ref):
    o_ref[...] = (jnp.dot(x_ref[...], w_ref[...], preferred_element_type=jnp.float32)
                  + b_ref[...]).astype(o_ref.dtype)


def matmul_bias(x, w, b, out_dtype=jnp.float32, tile_m=256):
    """(M, K) @ (K, N) + b, rows tiled over a 'parallel' grid (bf16 in, f32 acc)."""
    M, K = x.shape
    n_out = w.shape[1]
    tm = tile_m if M >= tile_m else max(8, ((M + 7) // 8) * 8)
    m_pad = pl.cdiv(M, tm) * tm
    if m_pad != M:
        x = jnp.pad(x, ((0, m_pad - M), (0, 0)))
    out = pl.pallas_call(
        _matmul_bias_kernel,
        out_shape=jax.ShapeDtypeStruct((m_pad, n_out), out_dtype),
        grid=(m_pad // tm,),
        in_specs=[
            pl.BlockSpec((tm, K), lambda i: (i, 0)),
            # TODO(synk): at real dims add pipeline_mode=pl.Buffered(1) to these
            # constant-index weight/bias blocks (avoid 2x VMEM on v7x).
            pl.BlockSpec((K, n_out), lambda i: (0, 0)),
            pl.BlockSpec((1, n_out), lambda i: (0, 0)),
        ],
        out_specs=pl.BlockSpec((tm, n_out), lambda i: (i, 0)),
        compiler_params=pltpu.CompilerParams(
            dimension_semantics=("parallel",),
            vmem_limit_bytes=VMEM_LIMIT_BYTES),
    )(x, w, b)
    return out if m_pad == M else out[:M]


# ----------------------------- Encoder ---------------------------------------
def encoder_forward(images, enc_w_pad, enc_b):
    # TODO(synk): the pretrained, frozen ResNet-50 backbone of EncoderCNN has no
    # clean in-script Pallas equivalent (no checkpoint load allowed); it is
    # replaced by a single strided patchify-conv (kernel = stride = PATCH)
    # implemented as a Pallas matmul.  EncoderCNN.forward's permute/flatten
    # semantics are reproduced exactly.
    B, C, H, W = images.shape
    hp, wp = H // PATCH, W // PATCH
    patches = images.reshape(B, C, hp, PATCH, wp, PATCH)
    patches = patches.transpose(0, 2, 4, 1, 3, 5).reshape(
        B * hp * wp, C * PATCH * PATCH)                      # glue reshape (plain JAX)

    k = C * PATCH * PATCH
    k_pad = enc_w_pad.shape[0]                               # contraction padded to 128
    patches = jnp.pad(patches, ((0, 0), (0, k_pad - k))).astype(jnp.bfloat16)

    feats = matmul_bias(patches, enc_w_pad, enc_b,
                        out_dtype=jnp.bfloat16, tile_m=256)  # bf16 features (half HBM)
    return feats.reshape(B, hp * wp, ENCODER_DIM)            # (B, N, encoder_dim)


# ----------------------------- Decoder kernel --------------------------------
def _decoder_kernel(feat_ref, emb_ref,
                    u_w, u_b, w_w, w_b, a_w, a_b,
                    ih_w, ih_b, ic_w, ic_b,
                    w_emb, w_ctx, w_h, b_gate,
                    h_all_ref, alphas_ref):
    feat = feat_ref[...]                                # (B, N, E) bf16, whole batch
    B, N, E = feat.shape
    Tm1 = emb_ref.shape[0]
    D = w_h.shape[0]

    feat_f32 = feat.astype(jnp.float32)
    feat2 = feat.reshape(B * N, E)                      # layout-free merge (N % 8 == 0)

    # ---- init_hidden_state: mean over spatial features, two linears (M = B) ----
    mean_feat = jnp.mean(feat_f32, axis=1)              # (B, E)
    mf_bf = mean_feat.astype(jnp.bfloat16)
    h0 = jnp.dot(mf_bf, ih_w[...], preferred_element_type=jnp.float32) + ih_b[...]
    c0 = jnp.dot(mf_bf, ic_w[...], preferred_element_type=jnp.float32) + ic_b[...]

    # ---- time-invariant attention projection hoisted out of the step loop ----
    u_hs = (jnp.dot(feat2, u_w[...], preferred_element_type=jnp.float32)
            + u_b[...]).reshape(B, N, -1)               # (B, N, A) f32

    # hoist loop-invariant weight/bias loads (no per-iteration re-broadcast)
    w_w_v, w_b_v = w_w[...], w_b[...]
    a_w_v = a_w[...][jnp.newaxis]                       # (1, 1, A)
    a_b_v = a_b[...]                                    # (1, 1)
    w_emb_v, w_ctx_v, w_h_v = w_emb[...], w_ctx[...], w_h[...]
    b_gate_v = b_gate[...]

    def step(s, carry):
        h, c = carry                                    # (B, D) f32, kept in vregs

        # ---------------- Attention (batched over B) ----------------
        w_ah = (jnp.dot(h.astype(jnp.bfloat16), w_w_v,
                        preferred_element_type=jnp.float32) + w_b_v)      # (B, A)
        combined = jnp.tanh(u_hs + w_ah[:, None, :])                      # (B, N, A)
        scores = jnp.sum(combined * a_w_v, axis=2) + a_b_v                # (B, N)
        m = jnp.max(scores, axis=1, keepdims=True)
        e = jnp.exp(scores - m)
        alpha = e / jnp.sum(e, axis=1, keepdims=True)   # exact divide (alphas returned)
        # context: batched (1, N) @ (N, E) on the MXU
        ctx = jnp.einsum('bqn,bne->bqe', alpha[:, None, :].astype(jnp.bfloat16),
                         feat, preferred_element_type=jnp.float32)[:, 0, :]  # (B, E)

        # ---- LSTMCell (gate order i, f, g, o); 3 accumulated dots, no concat ----
        e_s = emb_ref[s]                                                  # (B, embed) bf16
        gates = (jnp.dot(e_s, w_emb_v, preferred_element_type=jnp.float32)
                 + jnp.dot(ctx.astype(jnp.bfloat16), w_ctx_v,
                           preferred_element_type=jnp.float32)
                 + jnp.dot(h.astype(jnp.bfloat16), w_h_v,
                           preferred_element_type=jnp.float32)
                 + b_gate_v)                                              # (B, 4D)
        i_g = jax.nn.sigmoid(gates[:, 0 * D:1 * D])
        f_g = jax.nn.sigmoid(gates[:, 1 * D:2 * D])
        g_g = jnp.tanh(gates[:, 2 * D:3 * D])
        o_g = jax.nn.sigmoid(gates[:, 3 * D:4 * D])
        c_new = f_g * c + i_g * g_g
        h_new = o_g * jnp.tanh(c_new)

        # time-major writebacks (clean leading-axis stores); fcn head runs later
        h_all_ref[s] = h_new.astype(h_all_ref.dtype)
        alphas_ref[s] = alpha
        return (h_new, c_new)

    jax.lax.fori_loop(0, Tm1, step, (h0, c0), unroll=True)


def decoder_forward(features, captions, p):
    B, T = captions.shape
    Tm1 = T - 1
    N = features.shape[1]
    D = DECODER_DIM

    # embedding lookup (gather) + time-major transpose kept as glue in plain JAX
    embeds = jnp.take(p["emb"], captions[:, :Tm1], axis=0)          # (B, T-1, embed) bf16
    embeds_tm = jnp.transpose(embeds, (1, 0, 2))                    # (T-1, B, embed)

    args = (features, embeds_tm,
            p["U_w"], p["U_b"], p["W_w"], p["W_b"], p["A_w"], p["A_b"],
            p["init_h_w"], p["init_h_b"], p["init_c_w"], p["init_c_b"],
            p["w_emb"], p["w_ctx"], p["w_h"], p["b_gate"])

    h_all, alphas_tm = pl.pallas_call(
        _decoder_kernel,
        out_shape=(jax.ShapeDtypeStruct((Tm1, B, D), jnp.bfloat16),   # per-step h
                   jax.ShapeDtypeStruct((Tm1, B, N), jnp.float32)),   # per-step alpha
        in_specs=[VMEM_SPEC] * len(args),
        out_specs=(VMEM_SPEC, VMEM_SPEC),
        compiler_params=pltpu.CompilerParams(
            vmem_limit_bytes=VMEM_LIMIT_BYTES),
    )(*args)

    # fcn head (Dropout(0.3) = eval identity): one (B*(T-1), D) @ (D, V) matmul
    preds_flat = matmul_bias(h_all.reshape(Tm1 * B, D), p["fcn_w"], p["fcn_b"],
                             out_dtype=jnp.float32)
    preds = jnp.transpose(preds_flat.reshape(Tm1, B, VOCAB_SIZE), (1, 0, 2))
    alphas = jnp.transpose(alphas_tm, (1, 0, 2))
    return preds, alphas


def encoder_decoder_forward(images, captions, params):
    features = encoder_forward(images, params["enc_w"], params["enc_b"])
    return decoder_forward(features, captions, params)


# ----------------------------- parameter init --------------------------------
def init_params(key):
    ks = jax.random.split(key, 20)
    n = lambda k, shp, s=0.05: s * jax.random.normal(k, shp, dtype=jnp.float32)
    lstm_in = EMBED_SIZE + ENCODER_DIM
    return {
        "enc_w":    n(ks[0], (IMG_C * PATCH * PATCH, ENCODER_DIM)),
        "enc_b":    n(ks[1], (1, ENCODER_DIM)),
        "emb":      n(ks[2], (VOCAB_SIZE, EMBED_SIZE)),
        "U_w":      n(ks[3], (ENCODER_DIM, ATTENTION_DIM)),
        "U_b":      n(ks[4], (1, ATTENTION_DIM)),
        "W_w":      n(ks[5], (DECODER_DIM, ATTENTION_DIM)),
        "W_b":      n(ks[6], (1, ATTENTION_DIM)),
        "A_w":      n(ks[7], (1, ATTENTION_DIM)),   # row vector of Linear(att,1).weight
        "A_b":      n(ks[8], (1, 1)),
        "init_h_w": n(ks[9],  (ENCODER_DIM, DECODER_DIM)),
        "init_h_b": n(ks[10], (1, DECODER_DIM)),
        "init_c_w": n(ks[11], (ENCODER_DIM, DECODER_DIM)),
        "init_c_b": n(ks[12], (1, DECODER_DIM)),
        "W_ih":     n(ks[13], (lstm_in, 4 * DECODER_DIM)),   # gates ordered i,f,g,o
        "b_ih":     n(ks[14], (1, 4 * DECODER_DIM)),
        "W_hh":     n(ks[15], (DECODER_DIM, 4 * DECODER_DIM)),
        "b_hh":     n(ks[16], (1, 4 * DECODER_DIM)),
        "fcn_w":    n(ks[17], (DECODER_DIM, VOCAB_SIZE)),
        "fcn_b":    n(ks[18], (1, VOCAB_SIZE)),
    }


def prepare_params(p):
    """Pre-materialize bf16 casts / weight splits ONCE (not per forward call)."""
    bf = jnp.bfloat16
    k = IMG_C * PATCH * PATCH
    k_pad = pl.cdiv(k, 128) * 128                        # pad MXU contraction to 128
    return {
        "enc_w":    jnp.pad(p["enc_w"], ((0, k_pad - k), (0, 0))).astype(bf),
        "enc_b":    p["enc_b"],
        "emb":      p["emb"].astype(bf),
        "U_w":      p["U_w"].astype(bf),      "U_b":      p["U_b"],
        "W_w":      p["W_w"].astype(bf),      "W_b":      p["W_b"],
        "A_w":      p["A_w"],                 "A_b":      p["A_b"],
        "init_h_w": p["init_h_w"].astype(bf), "init_h_b": p["init_h_b"],
        "init_c_w": p["init_c_w"].astype(bf), "init_c_b": p["init_c_b"],
        "w_emb":    p["W_ih"][:EMBED_SIZE].astype(bf),    # embed half of input proj
        "w_ctx":    p["W_ih"][EMBED_SIZE:].astype(bf),    # context half (kept separate)
        "w_h":      p["W_hh"].astype(bf),
        "b_gate":   p["b_ih"] + p["b_hh"],
        "fcn_w":    p["fcn_w"].astype(bf),    "fcn_b":    p["fcn_b"],
    }


if __name__ == "__main__":
    key = jax.random.PRNGKey(0)
    k_par, k_img, k_cap = jax.random.split(key, 3)

    params   = prepare_params(init_params(k_par))
    images   = jax.random.normal(k_img, (BATCH, IMG_C, IMG_H, IMG_W), dtype=jnp.float32)
    captions = jax.random.randint(k_cap, (BATCH, SEQ), 0, VOCAB_SIZE, dtype=jnp.int32)

    fwd = jax.jit(encoder_decoder_forward)
    preds, alphas = fwd(images, captions, params)
    preds, alphas = jax.block_until_ready((preds, alphas))

    num_feats = (IMG_H // PATCH) * (IMG_W // PATCH)
    assert preds.shape  == (BATCH, SEQ - 1, VOCAB_SIZE), preds.shape
    assert alphas.shape == (BATCH, SEQ - 1, num_feats), alphas.shape
    assert bool(jnp.all(jnp.isfinite(preds))) and bool(jnp.all(jnp.isfinite(alphas)))
    # exact-divide softmax: alpha rows sum to 1 to f32 precision
    assert bool(jnp.allclose(jnp.sum(alphas, axis=-1), 1.0, atol=1e-3))
    print("KERNEL_OK")
</pallas_src>

<mosaic_0001>
module attributes {stable_mosaic.version = 11 : i64} {
  func.func @_matmul_bias_kernel(%arg0: i32, %arg1: memref<32x128xbf16, #tpu.memory_space<vmem>>, %arg2: memref<128x128xbf16, #tpu.memory_space<vmem>>, %arg3: memref<1x128xf32, #tpu.memory_space<vmem>>, %arg4: memref<32x128xbf16, #tpu.memory_space<vmem>>) attributes {dimension_semantics = [#tpu.dimension_semantics<parallel>], iteration_bounds = array<i64: 1>, scalar_prefetch = 0 : i64, scratch_operands = 0 : i64, tpu.core_type = #tpu.core_type<tc>, window_params = [{transform_indices = @transform_0, window_bounds = array<i64: 32, 128>}, {pipeline_mode = #tpu.pipeline_mode<synchronous>, transform_indices = @transform_1, window_bounds = array<i64: 128, 128>}, {pipeline_mode = #tpu.pipeline_mode<synchronous>, transform_indices = @transform_2, window_bounds = array<i64: 1, 128>}, {transform_indices = @transform_3, window_bounds = array<i64: 32, 128>}]} {
    %c0 = arith.constant 0 : index
    %c0_0 = arith.constant 0 : index
    %0 = vector.load %arg1[%c0, %c0_0] : memref<32x128xbf16, #tpu.memory_space<vmem>>, vector<32x128xbf16>
    %c0_1 = arith.constant 0 : index
    %c0_2 = arith.constant 0 : index
    %1 = vector.load %arg2[%c0_1, %c0_2] : memref<128x128xbf16, #tpu.memory_space<vmem>>, vector<128x128xbf16>
    %cst = arith.constant dense<0.000000e+00> : vector<32x128xf32>
    %2 = tpu.matmul %0, %1, %cst {dimension_numbers = #tpu.dot_dimension_numbers<[1], [0], [0], [1], [0, 0, 1, 1], [], []>} : vector<32x128xbf16>, vector<128x128xbf16>, vector<32x128xf32> -> vector<32x128xf32>
    %c0_3 = arith.constant 0 : index
    %c0_4 = arith.constant 0 : index
    %3 = vector.load %arg3[%c0_3, %c0_4] : memref<1x128xf32, #tpu.memory_space<vmem>>, vector<1x128xf32>
    %4 = vector.broadcast %3 : vector<1x128xf32> to vector<32x128xf32>
    %5 = arith.addf %2, %4 : vector<32x128xf32>
    %6 = arith.truncf %5 : vector<32x128xf32> to vector<32x128xbf16>
    %c0_5 = arith.constant 0 : index
    %c0_6 = arith.constant 0 : index
    %7 = vector.load %arg4[%c0_5, %c0_6] : memref<32x128xbf16, #tpu.memory_space<vmem>>, vector<32x128xbf16>
    tpu.vector_store %arg4[%c0_5, %c0_6], %6 {strides = array<i32>} : memref<32x128xbf16, #tpu.memory_space<vmem>>, vector<32x128xbf16>,
    return
  }
  func.func @transform_0(%arg0: i32) -> (i32, i32) {
    %c0_i32 = arith.constant 0 : i32
    %c0_i32_0 = arith.constant 0 : i32
    return %arg0, %c0_i32 : i32, i32
  }
  func.func @transform_1(%arg0: i32) -> (i32, i32) {
    %c0_i32 = arith.constant 0 : i32
    %c0_i32_0 = arith.constant 0 : i32
    %c0_i32_1 = arith.constant 0 : i32
    return %c0_i32, %c0_i32_0 : i32, i32
  }
  func.func @transform_2(%arg0: i32) -> (i32, i32) {
    %c0_i32 = arith.constant 0 : i32
    %c0_i32_0 = arith.constant 0 : i32
    %c0_i32_1 = arith.constant 0 : i32
    return %c0_i32, %c0_i32_0 : i32, i32
  }
  func.func @transform_3(%arg0: i32) -> (i32, i32) {
    %c0_i32 = arith.constant 0 : i32
    %c0_i32_0 = arith.constant 0 : i32
    return %arg0, %c0_i32 : i32, i32
  }
}

module attributes {stable_mosaic.version = 11 : i64} {
  func.func @_decoder_kernel(%arg0: memref<2x16x128xbf16, #tpu.memory_space<vmem>>, %arg1: memref<7x2x32xbf16, #tpu.memory_space<vmem>>, %arg2: memref<128x32xbf16, #tpu.memory_space<vmem>>, %arg3: memref<1x32xf32, #tpu.memory_space<vmem>>, %arg4: memref<64x32xbf16, #tpu.memory_space<vmem>>, %arg5: memref<1x32xf32, #tpu.memory_space<vmem>>, %arg6: memref<1x32xf32, #tpu.memory_space<vmem>>, %arg7: memref<1x1xf32, #tpu.memory_space<vmem>>, %arg8: memref<128x64xbf16, #tpu.memory_space<vmem>>, %arg9: memref<1x64xf32, #tpu.memory_space<vmem>>, %arg10: memref<128x64xbf16, #tpu.memory_space<vmem>>, %arg11: memref<1x64xf32, #tpu.memory_space<vmem>>, %arg12: memref<32x256xbf16, #tpu.memory_space<vmem>>, %arg13: memref<128x256xbf16, #tpu.memory_space<vmem>>, %arg14: memref<64x256xbf16, #tpu.memory_space<vmem>>, %arg15: memref<1x256xf32, #tpu.memory_space<vmem>>, %arg16: memref<7x2x64xbf16, #tpu.memory_space<vmem>>, %arg17: memref<7x2x16xf32, #tpu.memory_space<vmem>>) attributes {dimension_semantics = [], scalar_prefetch = 0 : i64, scratch_operands = 0 : i64, tpu.core_type = #tpu.core_type<tc>} {
    %c0 = arith.constant 0 : index
    %c0_0 = arith.constant 0 : index
    %c0_1 = arith.constant 0 : index
    %0 = vector.load %arg0[%c0, %c0_0, %c0_1] : memref<2x16x128xbf16, #tpu.memory_space<vmem>>, vector<2x16x128xbf16>
    %1 = arith.extf %0 : vector<2x16x128xbf16> to vector<2x16x128xf32>
    %2 = vector.shape_cast %0 : vector<2x16x128xbf16> to vector<32x128xbf16>
    %cst = arith.constant dense<0.000000e+00> : vector<2x128xf32>
    %3 = vector.multi_reduction <add>, %1, %cst [1] : vector<2x16x128xf32> to vector<2x128xf32>
    %cst_2 = arith.constant 1.600000e+01 : f32
    %4 = vector.broadcast %cst_2 : f32 to vector<2x128xf32>
    %5 = arith.divf %3, %4 : vector<2x128xf32>
    %6 = arith.truncf %5 : vector<2x128xf32> to vector<2x128xbf16>
    %c0_3 = arith.constant 0 : index
    %c0_4 = arith.constant 0 : index
    %7 = vector.load %arg8[%c0_3, %c0_4] : memref<128x64xbf16, #tpu.memory_space<vmem>>, vector<128x64xbf16>
    %cst_5 = arith.constant dense<0.000000e+00> : vector<2x64xf32>
    %8 = tpu.matmul %6, %7, %cst_5 {dimension_numbers = #tpu.dot_dimension_numbers<[1], [0], [0], [1], [0, 0, 1, 1], [], []>} : vector<2x128xbf16>, vector<128x64xbf16>, vector<2x64xf32> -> vector<2x64xf32>
    %c0_6 = arith.constant 0 : index
    %c0_7 = arith.constant 0 : index
    %9 = vector.load %arg9[%c0_6, %c0_7] : memref<1x64xf32, #tpu.memory_space<vmem>>, vector<1x64xf32>
    %10 = vector.broadcast %9 : vector<1x64xf32> to vector<2x64xf32>
    %11 = arith.addf %8, %10 : vector<2x64xf32>
    %c0_8 = arith.constant 0 : index
    %c0_9 = arith.constant 0 : index
    %12 = vector.load %arg10[%c0_8, %c0_9] : memref<128x64xbf16, #tpu.memory_space<vmem>>, vector<128x64xbf16>
    %cst_10 = arith.constant dense<0.000000e+00> : vector<2x64xf32>
    %13 = tpu.matmul %6, %12, %cst_10 {dimension_numbers = #tpu.dot_dimension_numbers<[1], [0], [0], [1], [0, 0, 1, 1], [], []>} : vector<2x128xbf16>, vector<128x64xbf16>, vector<2x64xf32> -> vector<2x64xf32>
    %c0_11 = arith.constant 0 : index
    %c0_12 = arith.constant 0 : index
    %14 = vector.load %arg11[%c0_11, %c0_12] : memref<1x64xf32, #tpu.memory_space<vmem>>, vector<1x64xf32>
    %15 = vector.broadcast %14 : vector<1x64xf32> to vector<2x64xf32>
    %16 = arith.addf %13, %15 : vector<2x64xf32>
    %c0_13 = arith.constant 0 : index
    %c0_14 = arith.constant 0 : index
    %17 = vector.load %arg2[%c0_13, %c0_14] : memref<128x32xbf16, #tpu.memory_space<vmem>>, vector<128x32xbf16>
    %cst_15 = arith.constant dense<0.000000e+00> : vector<32x32xf32>
    %18 = tpu.matmul %2, %17, %cst_15 {dimension_numbers = #tpu.dot_dimension_numbers<[1], [0], [0], [1], [0, 0, 1, 1], [], []>} : vector<32x128xbf16>, vector<128x32xbf16>, vector<32x32xf32> -> vector<32x32xf32>
    %c0_16 = arith.constant 0 : index
    %c0_17 = arith.constant 0 : index
    %19 = vector.load %arg3[%c0_16, %c0_17] : memref<1x32xf32, #tpu.memory_space<vmem>>, vector<1x32xf32>
    %20 = vector.broadcast %19 : vector<1x32xf32> to vector<32x32xf32>
    %21 = arith.addf %18, %20 : vector<32x32xf32>
    %22 = vector.shape_cast %21 : vector<32x32xf32> to vector<2x16x32xf32>
    %c0_18 = arith.constant 0 : index
    %c0_19 = arith.constant 0 : index
    %23 = vector.load %arg4[%c0_18, %c0_19] : memref<64x32xbf16, #tpu.memory_space<vmem>>, vector<64x32xbf16>
    %c0_20 = arith.constant 0 : index
    %c0_21 = arith.constant 0 : index
    %24 = vector.load %arg5[%c0_20, %c0_21] : memref<1x32xf32, #tpu.memory_space<vmem>>, vector<1x32xf32>
    %c0_22 = arith.constant 0 : index
    %c0_23 = arith.constant 0 : index
    %25 = vector.load %arg6[%c0_22, %c0_23] : memref<1x32xf32, #tpu.memory_space<vmem>>, vector<1x32xf32>
    %26 = vector.shape_cast %25 : vector<1x32xf32> to vector<1x1x32xf32>
    %c0_24 = arith.constant 0 : index
    %c0_25 = arith.constant 0 : index
    %27 = vector.load %arg7[%c0_24, %c0_25] : memref<1x1xf32, #tpu.memory_space<vmem>>, vector<1x1xf32>
    %c0_26 = arith.constant 0 : index
    %c0_27 = arith.constant 0 : index
    %28 = vector.load %arg12[%c0_26, %c0_27] : memref<32x256xbf16, #tpu.memory_space<vmem>>, vector<32x256xbf16>
    %c0_28 = arith.constant 0 : index
    %c0_29 = arith.constant 0 : index
    %29 = vector.load %arg13[%c0_28, %c0_29] : memref<128x256xbf16, #tpu.memory_space<vmem>>, vector<128x256xbf16>
    %c0_30 = arith.constant 0 : index
    %c0_31 = arith.constant 0 : index
    %30 = vector.load %arg14[%c0_30, %c0_31] : memref<64x256xbf16, #tpu.memory_space<vmem>>, vector<64x256xbf16>
    %c0_32 = arith.constant 0 : index
    %c0_33 = arith.constant 0 : index
    %31 = vector.load %arg15[%c0_32, %c0_33] : memref<1x256xf32, #tpu.memory_space<vmem>>, vector<1x256xf32>
    %c0_i32 = arith.constant 0 : i32
    %32 = arith.truncf %11 : vector<2x64xf32> to vector<2x64xbf16>
    %cst_34 = arith.constant dense<0.000000e+00> : vector<2x32xf32>
    %33 = tpu.matmul %32, %23, %cst_34 {dimension_numbers = #tpu.dot_dimension_numbers<[1], [0], [0], [1], [0, 0, 1, 1], [], []>} : vector<2x64xbf16>, vector<64x32xbf16>, vector<2x32xf32> -> vector<2x32xf32>
    %34 = vector.broadcast %24 : vector<1x32xf32> to vector<2x32xf32>
    %35 = arith.addf %33, %34 : vector<2x32xf32>
    %36 = vector.shape_cast %35 : vector<2x32xf32> to vector<2x1x32xf32>
    %37 = vector.broadcast %36 : vector<2x1x32xf32> to vector<2x16x32xf32>
    %38 = arith.addf %22, %37 : vector<2x16x32xf32>
    %39 = math.tanh %38 : vector<2x16x32xf32>
    %40 = vector.broadcast %26 : vector<1x1x32xf32> to vector<2x16x32xf32>
    %41 = arith.mulf %39, %40 : vector<2x16x32xf32>
    %cst_35 = arith.constant dense<0.000000e+00> : vector<2x16xf32>
    %42 = vector.multi_reduction <add>, %41, %cst_35 [2] : vector<2x16x32xf32> to vector<2x16xf32>
    %43 = vector.broadcast %27 : vector<1x1xf32> to vector<2x16xf32>
    %44 = arith.addf %42, %43 : vector<2x16xf32>
    %cst_36 = arith.constant dense<0xFF800000> : vector<2xf32>
    %45 = vector.multi_reduction <maximumf>, %44, %cst_36 [1] : vector<2x16xf32> to vector<2xf32>
    %46 = vector.shape_cast %45 : vector<2xf32> to vector<2x1xf32>
    %47 = vector.broadcast %46 : vector<2x1xf32> to vector<2x16xf32>
    %48 = arith.subf %44, %47 : vector<2x16xf32>
    %49 = math.exp %48 : vector<2x16xf32>
    %cst_37 = arith.constant dense<0.000000e+00> : vector<2xf32>
    %50 = vector.multi_reduction <add>, %49, %cst_37 [1] : vector<2x16xf32> to vector<2xf32>
    %51 = vector.shape_cast %50 : vector<2xf32> to vector<2x1xf32>
    %52 = vector.broadcast %51 : vector<2x1xf32> to vector<2x16xf32>
    %53 = arith.divf %49, %52 : vector<2x16xf32>
    %54 = vector.shape_cast %53 : vector<2x16xf32> to vector<2x1x16xf32>
    %55 = arith.truncf %54 : vector<2x1x16xf32> to vector<2x1x16xbf16>
    "tpu.trace_start"() <{level = 10 : i32, message = "bqn,bne->bqe"}> : () -> ()
    %cst_38 = arith.constant dense<0.000000e+00> : vector<2x1x128xf32>
    %56 = tpu.matmul %55, %0, %cst_38 {dimension_numbers = #tpu.dot_dimension_numbers<[2], [1], [1], [2], [0, 0, 0, 1, 1, 2], [0], [0]>} : vector<2x1x16xbf16>, vector<2x16x128xbf16>, vector<2x1x128xf32> -> vector<2x1x128xf32>
    "tpu.trace_stop"() : () -> ()
    %57 = vector.shape_cast %56 : vector<2x1x128xf32> to vector<2x128xf32>
    %58 = arith.index_cast %c0_i32 : i32 to index
    %c0_39 = arith.constant 0 : index
    %c0_40 = arith.constant 0 : index
    %59 = vector.load %arg1[%58, %c0_39, %c0_40] : memref<7x2x32xbf16, #tpu.memory_space<vmem>>, vector<1x2x32xbf16>
    %60 = vector.shape_cast %59 : vector<1x2x32xbf16> to vector<2x32xbf16>
    %cst_41 = arith.constant dense<0.000000e+00> : vector<2x256xf32>
    %61 = tpu.matmul %60, %28, %cst_41 {dimension_numbers = #tpu.dot_dimension_numbers<[1], [0], [0], [1], [0, 0, 1, 1], [], []>} : vector<2x32xbf16>, vector<32x256xbf16>, vector<2x256xf32> -> vector<2x256xf32>
    %62 = arith.truncf %57 : vector<2x128xf32> to vector<2x128xbf16>
    %cst_42 = arith.constant dense<0.000000e+00> : vector<2x256xf32>
    %63 = tpu.matmul %62, %29, %cst_42 {dimension_numbers = #tpu.dot_dimension_numbers<[1], [0], [0], [1], [0, 0, 1, 1], [], []>} : vector<2x128xbf16>, vector<128x256xbf16>, vector<2x256xf32> -> vector<2x256xf32>
    %64 = arith.addf %61, %63 : vector<2x256xf32>
    %65 = arith.truncf %11 : vector<2x64xf32> to vector<2x64xbf16>
    %cst_43 = arith.constant dense<0.000000e+00> : vector<2x256xf32>
    %66 = tpu.matmul %65, %30, %cst_43 {dimension_numbers = #tpu.dot_dimension_numbers<[1], [0], [0], [1], [0, 0, 1, 1], [], []>} : vector<2x64xbf16>, vector<64x256xbf16>, vector<2x256xf32> -> vector<2x256xf32>
    %67 = arith.addf %64, %66 : vector<2x256xf32>
    %68 = vector.broadcast %31 : vector<1x256xf32> to vector<2x256xf32>
    %69 = arith.addf %67, %68 : vector<2x256xf32>
    %70 = vector.extract_strided_slice %69 {offsets = [0, 0], sizes = [2, 64], strides = [1, 1]} : vector<2x256xf32> to vector<2x64xf32>
    %71 = arith.negf %70 : vector<2x64xf32>
    %72 = math.exp %71 : vector<2x64xf32>
    %cst_44 = arith.constant 1.000000e+00 : f32
    %73 = vector.broadcast %cst_44 : f32 to vector<2x64xf32>
    %74 = arith.addf %73, %72 : vector<2x64xf32>
    %75 = arith.divf %73, %74 : vector<2x64xf32>
    %76 = vector.extract_strided_slice %69 {offsets = [0, 64], sizes = [2, 64], strides = [1, 1]} : vector<2x256xf32> to vector<2x64xf32>
    %77 = arith.negf %76 : vector<2x64xf32>
    %78 = math.exp %77 : vector<2x64xf32>
    %cst_45 = arith.constant 1.000000e+00 : f32
    %79 = vector.broadcast %cst_45 : f32 to vector<2x64xf32>
    %80 = arith.addf %79, %78 : vector<2x64xf32>
    %81 = arith.divf %79, %80 : vector<2x64xf32>
    %82 = vector.extract_strided_slice %69 {offsets = [0, 128], sizes = [2, 64], strides = [1, 1]} : vector<2x256xf32> to vector<2x64xf32>
    %83 = math.tanh %82 : vector<2x64xf32>
    %84 = vector.extract_strided_slice %69 {offsets = [0, 192], sizes = [2, 64], strides = [1, 1]} : vector<2x256xf32> to vector<2x64xf32>
    %85 = arith.negf %84 : vector<2x64xf32>
    %86 = math.exp %85 : vector<2x64xf32>
    %cst_46 = arith.constant 1.000000e+00 : f32
    %87 = vector.broadcast %cst_46 : f32 to vector<2x64xf32>
    %88 = arith.addf %87, %86 : vector<2x64xf32>
    %89 = arith.divf %87, %88 : vector<2x64xf32>
    %90 = arith.mulf %81, %16 : vector<2x64xf32>
    %91 = arith.mulf %75, %83 : vector<2x64xf32>
    %92 = arith.addf %90, %91 : vector<2x64xf32>
    %93 = math.tanh %92 : vector<2x64xf32>
    %94 = arith.mulf %89, %93 : vector<2x64xf32>
    %95 = arith.truncf %94 : vector<2x64xf32> to vector<2x64xbf16>
    %96 = arith.index_cast %c0_i32 : i32 to index
    %c0_47 = arith.constant 0 : index
    %c0_48 = arith.constant 0 : index
    %97 = vector.load %arg16[%96, %c0_47, %c0_48] : memref<7x2x64xbf16, #tpu.memory_space<vmem>>, vector<1x2x64xbf16>
    %98 = vector.shape_cast %97 : vector<1x2x64xbf16> to vector<2x64xbf16>
    %99 = vector.shape_cast %95 : vector<2x64xbf16> to vector<1x2x64xbf16>
    tpu.vector_store %arg16[%96, %c0_47, %c0_48], %99 {strides = array<i32>} : memref<7x2x64xbf16, #tpu.memory_space<vmem>>, vector<1x2x64xbf16>,
    %100 = arith.index_cast %c0_i32 : i32 to index
    %c0_49 = arith.constant 0 : index
    %c0_50 = arith.constant 0 : index
    %101 = vector.load %arg17[%100, %c0_49, %c0_50] : memref<7x2x16xf32, #tpu.memory_space<vmem>>, vector<1x2x16xf32>
    %102 = vector.shape_cast %101 : vector<1x2x16xf32> to vector<2x16xf32>
    %103 = vector.shape_cast %53 : vector<2x16xf32> to vector<1x2x16xf32>
    tpu.vector_store %arg17[%100, %c0_49, %c0_50], %103 {strides = array<i32>} : memref<7x2x16xf32, #tpu.memory_space<vmem>>, vector<1x2x16xf32>,
    %c1_i32 = arith.constant 1 : i32
    %104 = arith.truncf %94 : vector<2x64xf32> to vector<2x64xbf16>
    %cst_51 = arith.constant dense<0.000000e+00> : vector<2x32xf32>
    %105 = tpu.matmul %104, %23, %cst_51 {dimension_numbers = #tpu.dot_dimension_numbers<[1], [0], [0], [1], [0, 0, 1, 1], [], []>} : vector<2x64xbf16>, vector<64x32xbf16>, vector<2x32xf32> -> vector<2x32xf32>
    %106 = vector.broadcast %24 : vector<1x32xf32> to vector<2x32xf32>
    %107 = arith.addf %105, %106 : vector<2x32xf32>
    %108 = vector.shape_cast %107 : vector<2x32xf32> to vector<2x1x32xf32>
    %109 = vector.broadcast %108 : vector<2x1x32xf32> to vector<2x16x32xf32>
    %110 = arith.addf %22, %109 : vector<2x16x32xf32>
    %111 = math.tanh %110 : vector<2x16x32xf32>
    %112 = vector.broadcast %26 : vector<1x1x32xf32> to vector<2x16x32xf32>
    %113 = arith.mulf %111, %112 : vector<2x16x32xf32>
    %cst_52 = arith.constant dense<0.000000e+00> : vector<2x16xf32>
    %114 = vector.multi_reduction <add>, %113, %cst_52 [2] : vector<2x16x32xf32> to vector<2x16xf32>
    %115 = vector.broadcast %27 : vector<1x1xf32> to vector<2x16xf32>
    %116 = arith.addf %114, %115 : vector<2x16xf32>
    %cst_53 = arith.constant dense<0xFF800000> : vector<2xf32>
    %117 = vector.multi_reduction <maximumf>, %116, %cst_53 [1] : vector<2x16xf32> to vector<2xf32>
    %118 = vector.shape_cast %117 : vector<2xf32> to vector<2x1xf32>
    %119 = vector.broadcast %118 : vector<2x1xf32> to vector<2x16xf32>
    %120 = arith.subf %116, %119 : vector<2x16xf32>
    %121 = math.exp %120 : vector<2x16xf32>
    %cst_54 = arith.constant dense<0.000000e+00> : vector<2xf32>
    %122 = vector.multi_reduction <add>, %121, %cst_54 [1] : vector<2x16xf32> to vector<2xf32>
    %123 = vector.shape_cast %122 : vector<2xf32> to vector<2x1xf32>
    %124 = vector.broadcast %123 : vector<2x1xf32> to vector<2x16xf32>
    %125 = arith.divf %121, %124 : vector<2x16xf32>
    %126 = vector.shape_cast %125 : vector<2x16xf32> to vector<2x1x16xf32>
    %127 = arith.truncf %126 : vector<2x1x16xf32> to vector<2x1x16xbf16>
    "tpu.trace_start"() <{level = 10 : i32, message = "bqn,bne->bqe"}> : () -> ()
    %cst_55 = arith.constant dense<0.000000e+00> : vector<2x1x128xf32>
    %128 = tpu.matmul %127, %0, %cst_55 {dimension_numbers = #tpu.dot_dimension_numbers<[2], [1], [1], [2], [0, 0, 0, 1, 1, 2], [0], [0]>} : vector<2x1x16xbf16>, vector<2x16x128xbf16>, vector<2x1x128xf32> -> vector<2x1x128xf32>
    "tpu.trace_stop"() : () -> ()
    %129 = vector.shape_cast %128 : vector<2x1x128xf32> to vector<2x128xf32>
    %130 = arith.index_cast %c1_i32 : i32 to index
    %c0_56 = arith.constant 0 : index
    %c0_57 = arith.constant 0 : index
    %131 = vector.load %arg1[%130, %c0_56, %c0_57] : memref<7x2x32xbf16, #tpu.memory_space<vmem>>, vector<1x2x32xbf16>
    %132 = vector.shape_cast %131 : vector<1x2x32xbf16> to vector<2x32xbf16>
    %cst_58 = arith.constant dense<0.000000e+00> : vector<2x256xf32>
    %133 = tpu.matmul %132, %28, %cst_58 {dimension_numbers = #tpu.dot_dimension_numbers<[1], [0], [0], [1], [0, 0, 1, 1], [], []>} : vector<2x32xbf16>, vector<32x256xbf16>, vector<2x256xf32> -> vector<2x256xf32>
    %134 = arith.truncf %129 : vector<2x128xf32> to vector<2x128xbf16>
    %cst_59 = arith.constant dense<0.000000e+00> : vector<2x256xf32>
    %135 = tpu.matmul %134, %29, %cst_59 {dimension_numbers = #tpu.dot_dimension_numbers<[1], [0], [0], [1], [0, 0, 1, 1], [], []>} : vector<2x128xbf16>, vector<128x256xbf16>, vector<2x256xf32> -> vector<2x256xf32>
    %136 = arith.addf %133, %135 : vector<2x256xf32>
    %137 = arith.truncf %94 : vector<2x64xf32> to vector<2x64xbf16>
    %cst_60 = arith.constant dense<0.000000e+00> : vector<2x256xf32>
    %138 = tpu.matmul %137, %30, %cst_60 {dimension_numbers = #tpu.dot_dimension_numbers<[1], [0], [0], [1], [0, 0, 1, 1], [], []>} : vector<2x64xbf16>, vector<64x256xbf16>, vector<2x256xf32> -> vector<2x256xf32>
    %139 = arith.addf %136, %138 : vector<2x256xf32>
    %140 = vector.broadcast %31 : vector<1x256xf32> to vector<2x256xf32>
    %141 = arith.addf %139, %140 : vector<2x256xf32>
    %142 = vector.extract_strided_slice %141 {offsets = [0, 0], sizes = [2, 64], strides = [1, 1]} : vector<2x256xf32> to vector<2x64xf32>
    %143 = arith.negf %142 : vector<2x64xf32>
    %144 = math.exp %143 : vector<2x64xf32>
    %cst_61 = arith.constant 1.000000e+00 : f32
    %145 = vector.broadcast %cst_61 : f32 to vector<2x64xf32>
    %146 = arith.addf %145, %144 : vector<2x64xf32>
    %147 = arith.divf %145, %146 : vector<2x64xf32>
    %148 = vector.extract_strided_slice %141 {offsets = [0, 64], sizes = [2, 64], strides = [1, 1]} : vector<2x256xf32> to vector<2x64xf32>
    %149 = arith.negf %148 : vector<2x64xf32>
    %150 = math.exp %149 : vector<2x64xf32>
    %cst_62 = arith.constant 1.000000e+00 : f32
    %151 = vector.broadcast %cst_62 : f32 to vector<2x64xf32>
    %152 = arith.addf %151, %150 : vector<2x64xf32>
    %153 = arith.divf %151, %152 : vector<2x64xf32>
    %154 = vector.extract_strided_slice %141 {offsets = [0, 128], sizes = [2, 64], strides = [1, 1]} : vector<2x256xf32> to vector<2x64xf32>
    %155 = math.tanh %154 : vector<2x64xf32>
    %156 = vector.extract_strided_slice %141 {offsets = [0, 192], sizes = [2, 64], strides = [1, 1]} : vector<2x256xf32> to vector<2x64xf32>
    %157 = arith.negf %156 : vector<2x64xf32>
    %158 = math.exp %157 : vector<2x64xf32>
    %cst_63 = arith.constant 1.000000e+00 : f32
    %159 = vector.broadcast %cst_63 : f32 to vector<2x64xf32>
    %160 = arith.addf %159, %158 : vector<2x64xf32>
    %161 = arith.divf %159, %160 : vector<2x64xf32>
    %162 = arith.mulf %153, %92 : vector<2x64xf32>
    %163 = arith.mulf %147, %155 : vector<2x64xf32>
    %164 = arith.addf %162, %163 : vector<2x64xf32>
    %165 = math.tanh %164 : vector<2x64xf32>
    %166 = arith.mulf %161, %165 : vector<2x64xf32>
    %167 = arith.truncf %166 : vector<2x64xf32> to vector<2x64xbf16>
    %168 = arith.index_cast %c1_i32 : i32 to index
    %c0_64 = arith.constant 0 : index
    %c0_65 = arith.constant 0 : index
    %169 = vector.load %arg16[%168, %c0_64, %c0_65] : memref<7x2x64xbf16, #tpu.memory_space<vmem>>, vector<1x2x64xbf16>
    %170 = vector.shape_cast %169 : vector<1x2x64xbf16> to vector<2x64xbf16>
    %171 = vector.shape_cast %167 : vector<2x64xbf16> to vector<1x2x64xbf16>
    tpu.vector_store %arg16[%168, %c0_64, %c0_65], %171 {strides = array<i32>} : memref<7x2x64xbf16, #tpu.memory_space<vmem>>, vector<1x2x64xbf16>,
    %172 = arith.index_cast %c1_i32 : i32 to index
    %c0_66 = arith.constant 0 : index
    %c0_67 = arith.constant 0 : index
    %173 = vector.load %arg17[%172, %c0_66, %c0_67] : memref<7x2x16xf32, #tpu.memory_space<vmem>>, vector<1x2x16xf32>
    %174 = vector.shape_cast %173 : vector<1x2x16xf32> to vector<2x16xf32>
    %175 = vector.shape_cast %125 : vector<2x16xf32> to vector<1x2x16xf32>
    tpu.vector_store %arg17[%172, %c0_66, %c0_67], %175 {strides = array<i32>} : memref<7x2x16xf32, #tpu.memory_space<vmem>>, vector<1x2x16xf32>,
    %c2_i32 = arith.constant 2 : i32
    %176 = arith.truncf %166 : vector<2x64xf32> to vector<2x64xbf16>
    %cst_68 = arith.constant dense<0.000000e+00> : vector<2x32xf32>
    %177 = tpu.matmul %176, %23, %cst_68 {dimension_numbers = #tpu.dot_dimension_numbers<[1], [0], [0], [1], [0, 0, 1, 1], [], []>} : vector<2x64xbf16>, vector<64x32xbf16>, vector<2x32xf32> -> vector<2x32xf32>
    %178 = vector.broadcast %24 : vector<1x32xf32> to vector<2x32xf32>
    %179 = arith.addf %177, %178 : vector<2x32xf32>
    %180 = vector.shape_cast %179 : vector<2x32xf32> to vector<2x1x32xf32>
    %181 = vector.broadcast %180 : vector<2x1x32xf32> to vector<2x16x32xf32>
    %182 = arith.addf %22, %181 : vector<2x16x32xf32>
    %183 = math.tanh %182 : vector<2x16x32xf32>
    %184 = vector.broadcast %26 : vector<1x1x32xf32> to vector<2x16x32xf32>
    %185 = arith.mulf %183, %184 : vector<2x16x32xf32>
    %cst_69 = arith.constant dense<0.000000e+00> : vector<2x16xf32>
    %186 = vector.multi_reduction <add>, %185, %cst_69 [2] : vector<2x16x32xf32> to vector<2x16xf32>
    %187 = vector.broadcast %27 : vector<1x1xf32> to vector<2x16xf32>
    %188 = arith.addf %186, %187 : vector<2x16xf32>
    %cst_70 = arith.constant dense<0xFF800000> : vector<2xf32>
    %189 = vector.multi_reduction <maximumf>, %188, %cst_70 [1] : vector<2x16xf32> to vector<2xf32>
    %190 = vector.shape_cast %189 : vector<2xf32> to vector<2x1xf32>
    %191 = vector.broadcast %190 : vector<2x1xf32> to vector<2x16xf32>
    %192 = arith.subf %188, %191 : vector<2x16xf32>
    %193 = math.exp %192 : vector<2x16xf32>
    %cst_71 = arith.constant dense<0.000000e+00> : vector<2xf32>
    %194 = vector.multi_reduction <add>, %193, %cst_71 [1] : vector<2x16xf32> to vector<2xf32>
    %195 = vector.shape_cast %194 : vector<2xf32> to vector<2x1xf32>
    %196 = vector.broadcast %195 : vector<2x1xf32> to vector<2x16xf32>
    %197 = arith.divf %193, %196 : vector<2x16xf32>
    %198 = vector.shape_cast %197 : vector<2x16xf32> to vector<2x1x16xf32>
    %199 = arith.truncf %198 : vector<2x1x16xf32> to vector<2x1x16xbf16>
    "tpu.trace_start"() <{level = 10 : i32, message = "bqn,bne->bqe"}> : () -> ()
    %cst_72 = arith.constant dense<0.000000e+00> : vector<2x1x128xf32>
    %200 = tpu.matmul %199, %0, %cst_72 {dimension_numbers = #tpu.dot_dimension_numbers<[2], [1], [1], [2], [0, 0, 0, 1, 1, 2], [0], [0]>} : vector<2x1x16xbf16>, vector<2x16x128xbf16>, vector<2x1x128xf32> -> vector<2x1x128xf32>
    "tpu.trace_stop"() : () -> ()
    %201 = vector.shape_cast %200 : vector<2x1x128xf32> to vector<2x128xf32>
    %202 = arith.index_cast %c2_i32 : i32 to index
    %c0_73 = arith.constant 0 : index
    %c0_74 = arith.constant 0 : index
    %203 = vector.load %arg1[%202, %c0_73, %c0_74] : memref<7x2x32xbf16, #tpu.memory_space<vmem>>, vector<1x2x32xbf16>
    %204 = vector.shape_cast %203 : vector<1x2x32xbf16> to vector<2x32xbf16>
    %cst_75 = arith.constant dense<0.000000e+00> : vector<2x256xf32>
    %205 = tpu.matmul %204, %28, %cst_75 {dimension_numbers = #tpu.dot_dimension_numbers<[1], [0], [0], [1], [0, 0, 1, 1], [], []>} : vector<2x32xbf16>, vector<32x256xbf16>, vector<2x256xf32> -> vector<2x256xf32>
    %206 = arith.truncf %201 : vector<2x128xf32> to vector<2x128xbf16>
    %cst_76 = arith.constant dense<0.000000e+00> : vector<2x256xf32>
    %207 = tpu.matmul %206, %29, %cst_76 {dimension_numbers = #tpu.dot_dimension_numbers<[1], [0], [0], [1], [0, 0, 1, 1], [], []>} : vector<2x128xbf16>, vector<128x256xbf16>, vector<2x256xf32> -> vector<2x256xf32>
    %208 = arith.addf %205, %207 : vector<2x256xf32>
    %209 = arith.truncf %166 : vector<2x64xf32> to vector<2x64xbf16>
    %cst_77 = arith.constant dense<0.000000e+00> : vector<2x256xf32>
    %210 = tpu.matmul %209, %30, %cst_77 {dimension_numbers = #tpu.dot_dimension_numbers<[1], [0], [0], [1], [0, 0, 1, 1], [], []>} : vector<2x64xbf16>, vector<64x256xbf16>, vector<2x256xf32> -> vector<2x256xf32>
    %211 = arith.addf %208, %210 : vector<2x256xf32>
    %212 = vector.broadcast %31 : vector<1x256xf32> to vector<2x256xf32>
    %213 = arith.addf %211, %212 : vector<2x256xf32>
    %214 = vector.extract_strided_slice %213 {offsets = [0, 0], sizes = [2, 64], strides = [1, 1]} : vector<2x256xf32> to vector<2x64xf32>
    %215 = arith.negf %214 : vector<2x64xf32>
    %216 = math.exp %215 : vector<2x64xf32>
    %cst_78 = arith.constant 1.000000e+00 : f32
    %217 = vector.broadcast %cst_78 : f32 to vector<2x64xf32>
    %218 = arith.addf %217, %216 : vector<2x64xf32>
    %219 = arith.divf %217, %218 : vector<2x64xf32>
    %220 = vector.extract_strided_slice %213 {offsets = [0, 64], sizes = [2, 64], strides = [1, 1]} : vector<2x256xf32> to vector<2x64xf32>
    %221 = arith.negf %220 : vector<2x64xf32>
    %222 = math.exp %221 : vector<2x64xf32>
    %cst_79 = arith.constant 1.000000e+00 : f32
    %223 = vector.broadcast %cst_79 : f32 to vector<2x64xf32>
    %224 = arith.addf %223, %222 : vector<2x64xf32>
    %225 = arith.divf %223, %224 : vector<2x64xf32>
    %226 = vector.extract_strided_slice %213 {offsets = [0, 128], sizes = [2, 64], strides = [1, 1]} : vector<2x256xf32> to vector<2x64xf32>
    %227 = math.tanh %226 : vector<2x64xf32>
    %228 = vector.extract_strided_slice %213 {offsets = [0, 192], sizes = [2, 64], strides = [1, 1]} : vector<2x256xf32> to vector<2x64xf32>
    %229 = arith.negf %228 : vector<2x64xf32>
    %230 = math.exp %229 : vector<2x64xf32>
    %cst_80 = arith.constant 1.000000e+00 : f32
    %231 = vector.broadcast %cst_80 : f32 to vector<2x64xf32>
    %232 = arith.addf %231, %230 : vector<2x64xf32>
    %233 = arith.divf %231, %232 : vector<2x64xf32>
    %234 = arith.mulf %225, %164 : vector<2x64xf32>
    %235 = arith.mulf %219, %227 : vector<2x64xf32>
    %236 = arith.addf %234, %235 : vector<2x64xf32>
    %237 = math.tanh %236 : vector<2x64xf32>
    %238 = arith.mulf %233, %237 : vector<2x64xf32>
    %239 = arith.truncf %238 : vector<2x64xf32> to vector<2x64xbf16>
    %240 = arith.index_cast %c2_i32 : i32 to index
    %c0_81 = arith.constant 0 : index
    %c0_82 = arith.constant 0 : index
    %241 = vector.load %arg16[%240, %c0_81, %c0_82] : memref<7x2x64xbf16, #tpu.memory_space<vmem>>, vector<1x2x64xbf16>
    %242 = vector.shape_cast %241 : vector<1x2x64xbf16> to vector<2x64xbf16>
    %243 = vector.shape_cast %239 : vector<2x64xbf16> to vector<1x2x64xbf16>
    tpu.vector_store %arg16[%240, %c0_81, %c0_82], %243 {strides = array<i32>} : memref<7x2x64xbf16, #tpu.memory_space<vmem>>, vector<1x2x64xbf16>,
    %244 = arith.index_cast %c2_i32 : i32 to index
    %c0_83 = arith.constant 0 : index
    %c0_84 = arith.constant 0 : index
    %245 = vector.load %arg17[%244, %c0_83, %c0_84] : memref<7x2x16xf32, #tpu.memory_space<vmem>>, vector<1x2x16xf32>
    %246 = vector.shape_cast %245 : vector<1x2x16xf32> to vector<2x16xf32>
    %247 = vector.shape_cast %197 : vector<2x16xf32> to vector<1x2x16xf32>
    tpu.vector_store %arg17[%244, %c0_83, %c0_84], %247 {strides = array<i32>} : memref<7x2x16xf32, #tpu.memory_space<vmem>>, vector<1x2x16xf32>,
    %c3_i32 = arith.constant 3 : i32
    %248 = arith.truncf %238 : vector<2x64xf32> to vector<2x64xbf16>
    %cst_85 = arith.constant dense<0.000000e+00> : vector<2x32xf32>
    %249 = tpu.matmul %248, %23, %cst_85 {dimension_numbers = #tpu.dot_dimension_numbers<[1], [0], [0], [1], [0, 0, 1, 1], [], []>} : vector<2x64xbf16>, vector<64x32xbf16>, vector<2x32xf32> -> vector<2x32xf32>
    %250 = vector.broadcast %24 : vector<1x32xf32> to vector<2x32xf32>
    %251 = arith.addf %249, %250 : vector<2x32xf32>
    %252 = vector.shape_cast %251 : vector<2x32xf32> to vector<2x1x32xf32>
    %253 = vector.broadcast %252 : vector<2x1x32xf32> to vector<2x16x32xf32>
    %254 = arith.addf %22, %253 : vector<2x16x32xf32>
    %255 = math.tanh %254 : vector<2x16x32xf32>
    %256 = vector.broadcast %26 : vector<1x1x32xf32> to vector<2x16x32xf32>
    %257 = arith.mulf %255, %256 : vector<2x16x32xf32>
    %cst_86 = arith.constant dense<0.000000e+00> : vector<2x16xf32>
    %258 = vector.multi_reduction <add>, %257, %cst_86 [2] : vector<2x16x32xf32> to vector<2x16xf32>
    %259 = vector.broadcast %27 : vector<1x1xf32> to vector<2x16xf32>
    %260 = arith.addf %258, %259 : vector<2x16xf32>
    %cst_87 = arith.constant dense<0xFF800000> : vector<2xf32>
    %261 = vector.multi_reduction <maximumf>, %260, %cst_87 [1] : vector<2x16xf32> to vector<2xf32>
    %262 = vector.shape_cast %261 : vector<2xf32> to vector<2x1xf32>
    %263 = vector.broadcast %262 : vector<2x1xf32> to vector<2x16xf32>
    %264 = arith.subf %260, %263 : vector<2x16xf32>
    %265 = math.exp %264 : vector<2x16xf32>
    %cst_88 = arith.constant dense<0.000000e+00> : vector<2xf32>
    %266 = vector.multi_reduction <add>, %265, %cst_88 [1] : vector<2x16xf32> to vector<2xf32>
    %267 = vector.shape_cast %266 : vector<2xf32> to vector<2x1xf32>
    %268 = vector.broadcast %267 : vector<2x1xf32> to vector<2x16xf32>
    %269 = arith.divf %265, %268 : vector<2x16xf32>
    %270 = vector.shape_cast %269 : vector<2x16xf32> to vector<2x1x16xf32>
    %271 = arith.truncf %270 : vector<2x1x16xf32> to vector<2x1x16xbf16>
    "tpu.trace_start"() <{level = 10 : i32, message = "bqn,bne->bqe"}> : () -> ()
    %cst_89 = arith.constant dense<0.000000e+00> : vector<2x1x128xf32>
    %272 = tpu.matmul %271, %0, %cst_89 {dimension_numbers = #tpu.dot_dimension_numbers<[2], [1], [1], [2], [0, 0, 0, 1, 1, 2], [0], [0]>} : vector<2x1x16xbf16>, vector<2x16x128xbf16>, vector<2x1x128xf32> -> vector<2x1x128xf32>
    "tpu.trace_stop"() : () -> ()
    %273 = vector.shape_cast %272 : vector<2x1x128xf32> to vector<2x128xf32>
    %274 = arith.index_cast %c3_i32 : i32 to index
    %c0_90 = arith.constant 0 : index
    %c0_91 = arith.constant 0 : index
    %275 = vector.load %arg1[%274, %c0_90, %c0_91] : memref<7x2x32xbf16, #tpu.memory_space<vmem>>, vector<1x2x32xbf16>
    %276 = vector.shape_cast %275 : vector<1x2x32xbf16> to vector<2x32xbf16>
    %cst_92 = arith.constant dense<0.000000e+00> : vector<2x256xf32>
    %277 = tpu.matmul %276, %28, %cst_92 {dimension_numbers = #tpu.dot_dimension_numbers<[1], [0], [0], [1], [0, 0, 1, 1], [], []>} : vector<2x32xbf16>, vector<32x256xbf16>, vector<2x256xf32> -> vector<2x256xf32>
    %278 = arith.truncf %273 : vector<2x128xf32> to vector<2x128xbf16>
    %cst_93 = arith.constant dense<0.000000e+00> : vector<2x256xf32>
    %279 = tpu.matmul %278, %29, %cst_93 {dimension_numbers = #tpu.dot_dimension_numbers<[1], [0], [0], [1], [0, 0, 1, 1], [], []>} : vector<2x128xbf16>, vector<128x256xbf16>, vector<2x256xf32> -> vector<2x256xf32>
    %280 = arith.addf %277, %279 : vector<2x256xf32>
    %281 = arith.truncf %238 : vector<2x64xf32> to vector<2x64xbf16>
    %cst_94 = arith.constant dense<0.000000e+00> : vector<2x256xf32>
    %282 = tpu.matmul %281, %30, %cst_94 {dimension_numbers = #tpu.dot_dimension_numbers<[1], [0], [0], [1], [0, 0, 1, 1], [], []>} : vector<2x64xbf16>, vector<64x256xbf16>, vector<2x256xf32> -> vector<2x256xf32>
    %283 = arith.addf %280, %282 : vector<2x256xf32>
    %284 = vector.broadcast %31 : vector<1x256xf32> to vector<2x256xf32>
    %285 = arith.addf %283, %284 : vector<2x256xf32>
    %286 = vector.extract_strided_slice %285 {offsets = [0, 0], sizes = [2, 64], strides = [1, 1]} : vector<2x256xf32> to vector<2x64xf32>
    %287 = arith.negf %286 : vector<2x64xf32>
    %288 = math.exp %287 : vector<2x64xf32>
    %cst_95 = arith.constant 1.000000e+00 : f32
    %289 = vector.broadcast %cst_95 : f32 to vector<2x64xf32>
    %290 = arith.addf %289, %288 : vector<2x64xf32>
    %291 = arith.divf %289, %290 : vector<2x64xf32>
    %292 = vector.extract_strided_slice %285 {offsets = [0, 64], sizes = [2, 64], strides = [1, 1]} : vector<2x256xf32> to vector<2x64xf32>
    %293 = arith.negf %292 : vector<2x64xf32>
    %294 = math.exp %293 : vector<2x64xf32>
    %cst_96 = arith.constant 1.000000e+00 : f32
    %295 = vector.broadcast %cst_96 : f32 to vector<2x64xf32>
    %296 = arith.addf %295, %294 : vector<2x64xf32>
    %297 = arith.divf %295, %296 : vector<2x64xf32>
    %298 = vector.extract_strided_slice %285 {offsets = [0, 128], sizes = [2, 64], strides = [1, 1]} : vector<2x256xf32> to vector<2x64xf32>
    %299 = math.tanh %298 : vector<2x64xf32>
    %300 = vector.extract_strided_slice %285 {offsets = [0, 192], sizes = [2, 64], strides = [1, 1]} : vector<2x256xf32> to vector<2x64xf32>
    %301 = arith.negf %300 : vector<2x64xf32>
    %302 = math.exp %301 : vector<2x64xf32>
    %cst_97 = arith.constant 1.000000e+00 : f32
    %303 = vector.broadcast %cst_97 : f32 to vector<2x64xf32>
    %304 = arith.addf %303, %302 : vector<2x64xf32>
    %305 = arith.divf %303, %304 : vector<2x64xf32>
    %306 = arith.mulf %297, %236 : vector<2x64xf32>
    %307 = arith.mulf %291, %299 : vector<2x64xf32>
    %308 = arith.addf %306, %307 : vector<2x64xf32>
    %309 = math.tanh %308 : vector<2x64xf32>
    %310 = arith.mulf %305, %309 : vector<2x64xf32>
    %311 = arith.truncf %310 : vector<2x64xf32> to vector<2x64xbf16>
    %312 = arith.index_cast %c3_i32 : i32 to index
    %c0_98 = arith.constant 0 : index
    %c0_99 = arith.constant 0 : index
    %313 = vector.load %arg16[%312, %c0_98, %c0_99] : memref<7x2x64xbf16, #tpu.memory_space<vmem>>, vector<1x2x64xbf16>
    %314 = vector.shape_cast %313 : vector<1x2x64xbf16> to vector<2x64xbf16>
    %315 = vector.shape_cast %311 : vector<2x64xbf16> to vector<1x2x64xbf16>
    tpu.vector_store %arg16[%312, %c0_98, %c0_99], %315 {strides = array<i32>} : memref<7x2x64xbf16, #tpu.memory_space<vmem>>, vector<1x2x64xbf16>,
    %316 = arith.index_cast %c3_i32 : i32 to index
    %c0_100 = arith.constant 0 : index
    %c0_101 = arith.constant 0 : index
    %317 = vector.load %arg17[%316, %c0_100, %c0_101] : memref<7x2x16xf32, #tpu.memory_space<vmem>>, vector<1x2x16xf32>
    %318 = vector.shape_cast %317 : vector<1x2x16xf32> to vector<2x16xf32>
    %319 = vector.shape_cast %269 : vector<2x16xf32> to vector<1x2x16xf32>
    tpu.vector_store %arg17[%316, %c0_100, %c0_101], %319 {strides = array<i32>} : memref<7x2x16xf32, #tpu.memory_space<vmem>>, vector<1x2x16xf32>,
    %c4_i32 = arith.constant 4 : i32
    %320 = arith.truncf %310 : vector<2x64xf32> to vector<2x64xbf16>
    %cst_102 = arith.constant dense<0.000000e+00> : vector<2x32xf32>
    %321 = tpu.matmul %320, %23, %cst_102 {dimension_numbers = #tpu.dot_dimension_numbers<[1], [0], [0], [1], [0, 0, 1, 1], [], []>} : vector<2x64xbf16>, vector<64x32xbf16>, vector<2x32xf32> -> vector<2x32xf32>
    %322 = vector.broadcast %24 : vector<1x32xf32> to vector<2x32xf32>
    %323 = arith.addf %321, %322 : vector<2x32xf32>
    %324 = vector.shape_cast %323 : vector<2x32xf32> to vector<2x1x32xf32>
    %325 = vector.broadcast %324 : vector<2x1x32xf32> to vector<2x16x32xf32>
    %326 = arith.addf %22, %325 : vector<2x16x32xf32>
    %327 = math.tanh %326 : vector<2x16x32xf32>
    %328 = vector.broadcast %26 : vector<1x1x32xf32> to vector<2x16x32xf32>
    %329 = arith.mulf %327, %328 : vector<2x16x32xf32>
    %cst_103 = arith.constant dense<0.000000e+00> : vector<2x16xf32>
    %330 = vector.multi_reduction <add>, %329, %cst_103 [2] : vector<2x16x32xf32> to vector<2x16xf32>
    %331 = vector.broadcast %27 : vector<1x1xf32> to vector<2x16xf32>
    %332 = arith.addf %330, %331 : vector<2x16xf32>
    %cst_104 = arith.constant dense<0xFF800000> : vector<2xf32>
    %333 = vector.multi_reduction <maximumf>, %332, %cst_104 [1] : vector<2x16xf32> to vector<2xf32>
    %334 = vector.shape_cast %333 : vector<2xf32> to vector<2x1xf32>
    %335 = vector.broadcast %334 : vector<2x1xf32> to vector<2x16xf32>
    %336 = arith.subf %332, %335 : vector<2x16xf32>
    %337 = math.exp %336 : vector<2x16xf32>
    %cst_105 = arith.constant dense<0.000000e+00> : vector<2xf32>
    %338 = vector.multi_reduction <add>, %337, %cst_105 [1] : vector<2x16xf32> to vector<2xf32>
    %339 = vector.shape_cast %338 : vector<2xf32> to vector<2x1xf32>
    %340 = vector.broadcast %339 : vector<2x1xf32> to vector<2x16xf32>
    %341 = arith.divf %337, %340 : vector<2x16xf32>
    %342 = vector.shape_cast %341 : vector<2x16xf32> to vector<2x1x16xf32>
    %343 = arith.truncf %342 : vector<2x1x16xf32> to vector<2x1x16xbf16>
    "tpu.trace_start"() <{level = 10 : i32, message = "bqn,bne->bqe"}> : () -> ()
    %cst_106 = arith.constant dense<0.000000e+00> : vector<2x1x128xf32>
    %344 = tpu.matmul %343, %0, %cst_106 {dimension_numbers = #tpu.dot_dimension_numbers<[2], [1], [1], [2], [0, 0, 0, 1, 1, 2], [0], [0]>} : vector<2x1x16xbf16>, vector<2x16x128xbf16>, vector<2x1x128xf32> -> vector<2x1x128xf32>
    "tpu.trace_stop"() : () -> ()
    %345 = vector.shape_cast %344 : vector<2x1x128xf32> to vector<2x128xf32>
    %346 = arith.index_cast %c4_i32 : i32 to index
    %c0_107 = arith.constant 0 : index
    %c0_108 = arith.constant 0 : index
    %347 = vector.load %arg1[%346, %c0_107, %c0_108] : memref<7x2x32xbf16, #tpu.memory_space<vmem>>, vector<1x2x32xbf16>
    %348 = vector.shape_cast %347 : vector<1x2x32xbf16> to vector<2x32xbf16>
    %cst_109 = arith.constant dense<0.000000e+00> : vector<2x256xf32>
    %349 = tpu.matmul %348, %28, %cst_109 {dimension_numbers = #tpu.dot_dimension_numbers<[1], [0], [0], [1], [0, 0, 1, 1], [], []>} : vector<2x32xbf16>, vector<32x256xbf16>, vector<2x256xf32> -> vector<2x256xf32>
    %350 = arith.truncf %345 : vector<2x128xf32> to vector<2x128xbf16>
    %cst_110 = arith.constant dense<0.000000e+00> : vector<2x256xf32>
    %351 = tpu.matmul %350, %29, %cst_110 {dimension_numbers = #tpu.dot_dimension_numbers<[1], [0], [0], [1], [0, 0, 1, 1], [], []>} : vector<2x128xbf16>, vector<128x256xbf16>, vector<2x256xf32> -> vector<2x256xf32>
    %352 = arith.addf %349, %351 : vector<2x256xf32>
    %353 = arith.truncf %310 : vector<2x64xf32> to vector<2x64xbf16>
    %cst_111 = arith.constant dense<0.000000e+00> : vector<2x256xf32>
    %354 = tpu.matmul %353, %30, %cst_111 {dimension_numbers = #tpu.dot_dimension_numbers<[1], [0], [0], [1], [0, 0, 1, 1], [], []>} : vector<2x64xbf16>, vector<64x256xbf16>, vector<2x256xf32> -> vector<2x256xf32>
    %355 = arith.addf %352, %354 : vector<2x256xf32>
    %356 = vector.broadcast %31 : vector<1x256xf32> to vector<2x256xf32>
    %357 = arith.addf %355, %356 : vector<2x256xf32>
    %358 = vector.extract_strided_slice %357 {offsets = [0, 0], sizes = [2, 64], strides = [1, 1]} : vector<2x256xf32> to vector<2x64xf32>
    %359 = arith.negf %358 : vector<2x64xf32>
    %360 = math.exp %359 : vector<2x64xf32>
    %cst_112 = arith.constant 1.000000e+00 : f32
    %361 = vector.broadcast %cst_112 : f32 to vector<2x64xf32>
    %362 = arith.addf %361, %360 : vector<2x64xf32>
    %363 = arith.divf %361, %362 : vector<2x64xf32>
    %364 = vector.extract_strided_slice %357 {offsets = [0, 64], sizes = [2, 64], strides = [1, 1]} : vector<2x256xf32> to vector<2x64xf32>
    %365 = arith.negf %364 : vector<2x64xf32>
    %366 = math.exp %365 : vector<2x64xf32>
    %cst_113 = arith.constant 1.000000e+00 : f32
    %367 = vector.broadcast %cst_113 : f32 to vector<2x64xf32>
    %368 = arith.addf %367, %366 : vector<2x64xf32>
    %369 = arith.divf %367, %368 : vector<2x64xf32>
    %370 = vector.extract_strided_slice %357 {offsets = [0, 128], sizes = [2, 64], strides = [1, 1]} : vector<2x256xf32> to vector<2x64xf32>
    %371 = math.tanh %370 : vector<2x64xf32>
    %372 = vector.extract_strided_slice %357 {offsets = [0, 192], sizes = [2, 64], strides = [1, 1]} : vector<2x256xf32> to vector<2x64xf32>
    %373 = arith.negf %372 : vector<2x64xf32>
    %374 = math.exp %373 : vector<2x64xf32>
    %cst_114 = arith.constant 1.000000e+00 : f32
    %375 = vector.broadcast %cst_114 : f32 to vector<2x64xf32>
    %376 = arith.addf %375, %374 : vector<2x64xf32>
    %377 = arith.divf %375, %376 : vector<2x64xf32>
    %378 = arith.mulf %369, %308 : vector<2x64xf32>
    %379 = arith.mulf %363, %371 : vector<2x64xf32>
    %380 = arith.addf %378, %379 : vector<2x64xf32>
    %381 = math.tanh %380 : vector<2x64xf32>
    %382 = arith.mulf %377, %381 : vector<2x64xf32>
    %383 = arith.truncf %382 : vector<2x64xf32> to vector<2x64xbf16>
    %384 = arith.index_cast %c4_i32 : i32 to index
    %c0_115 = arith.constant 0 : index
    %c0_116 = arith.constant 0 : index
    %385 = vector.load %arg16[%384, %c0_115, %c0_116] : memref<7x2x64xbf16, #tpu.memory_space<vmem>>, vector<1x2x64xbf16>
    %386 = vector.shape_cast %385 : vector<1x2x64xbf16> to vector<2x64xbf16>
    %387 = vector.shape_cast %383 : vector<2x64xbf16> to vector<1x2x64xbf16>
    tpu.vector_store %arg16[%384, %c0_115, %c0_116], %387 {strides = array<i32>} : memref<7x2x64xbf16, #tpu.memory_space<vmem>>, vector<1x2x64xbf16>,
    %388 = arith.index_cast %c4_i32 : i32 to index
    %c0_117 = arith.constant 0 : index
    %c0_118 = arith.constant 0 : index
    %389 = vector.load %arg17[%388, %c0_117, %c0_118] : memref<7x2x16xf32, #tpu.memory_space<vmem>>, vector<1x2x16xf32>
    %390 = vector.shape_cast %389 : vector<1x2x16xf32> to vector<2x16xf32>
    %391 = vector.shape_cast %341 : vector<2x16xf32> to vector<1x2x16xf32>
    tpu.vector_store %arg17[%388, %c0_117, %c0_118], %391 {strides = array<i32>} : memref<7x2x16xf32, #tpu.memory_space<vmem>>, vector<1x2x16xf32>,
    %c5_i32 = arith.constant 5 : i32
    %392 = arith.truncf %382 : vector<2x64xf32> to vector<2x64xbf16>
    %cst_119 = arith.constant dense<0.000000e+00> : vector<2x32xf32>
    %393 = tpu.matmul %392, %23, %cst_119 {dimension_numbers = #tpu.dot_dimension_numbers<[1], [0], [0], [1], [0, 0, 1, 1], [], []>} : vector<2x64xbf16>, vector<64x32xbf16>, vector<2x32xf32> -> vector<2x32xf32>
    %394 = vector.broadcast %24 : vector<1x32xf32> to vector<2x32xf32>
    %395 = arith.addf %393, %394 : vector<2x32xf32>
    %396 = vector.shape_cast %395 : vector<2x32xf32> to vector<2x1x32xf32>
    %397 = vector.broadcast %396 : vector<2x1x32xf32> to vector<2x16x32xf32>
    %398 = arith.addf %22, %397 : vector<2x16x32xf32>
    %399 = math.tanh %398 : vector<2x16x32xf32>
    %400 = vector.broadcast %26 : vector<1x1x32xf32> to vector<2x16x32xf32>
    %401 = arith.mulf %399, %400 : vector<2x16x32xf32>
    %cst_120 = arith.constant dense<0.000000e+00> : vector<2x16xf32>
    %402 = vector.multi_reduction <add>, %401, %cst_120 [2] : vector<2x16x32xf32> to vector<2x16xf32>
    %403 = vector.broadcast %27 : vector<1x1xf32> to vector<2x16xf32>
    %404 = arith.addf %402, %403 : vector<2x16xf32>
    %cst_121 = arith.constant dense<0xFF800000> : vector<2xf32>
    %405 = vector.multi_reduction <maximumf>, %404, %cst_121 [1] : vector<2x16xf32> to vector<2xf32>
    %406 = vector.shape_cast %405 : vector<2xf32> to vector<2x1xf32>
    %407 = vector.broadcast %406 : vector<2x1xf32> to vector<2x16xf32>
    %408 = arith.subf %404, %407 : vector<2x16xf32>
    %409 = math.exp %408 : vector<2x16xf32>
    %cst_122 = arith.constant dense<0.000000e+00> : vector<2xf32>
    %410 = vector.multi_reduction <add>, %409, %cst_122 [1] : vector<2x16xf32> to vector<2xf32>
    %411 = vector.shape_cast %410 : vector<2xf32> to vector<2x1xf32>
    %412 = vector.broadcast %411 : vector<2x1xf32> to vector<2x16xf32>
    %413 = arith.divf %409, %412 : vector<2x16xf32>
    %414 = vector.shape_cast %413 : vector<2x16xf32> to vector<2x1x16xf32>
    %415 = arith.truncf %414 : vector<2x1x16xf32> to vector<2x1x16xbf16>
    "tpu.trace_start"() <{level = 10 : i32, message = "bqn,bne->bqe"}> : () -> ()
    %cst_123 = arith.constant dense<0.000000e+00> : vector<2x1x128xf32>
    %416 = tpu.matmul %415, %0, %cst_123 {dimension_numbers = #tpu.dot_dimension_numbers<[2], [1], [1], [2], [0, 0, 0, 1, 1, 2], [0], [0]>} : vector<2x1x16xbf16>, vector<2x16x128xbf16>, vector<2x1x128xf32> -> vector<2x1x128xf32>
    "tpu.trace_stop"() : () -> ()
    %417 = vector.shape_cast %416 : vector<2x1x128xf32> to vector<2x128xf32>
    %418 = arith.index_cast %c5_i32 : i32 to index
    %c0_124 = arith.constant 0 : index
    %c0_125 = arith.constant 0 : index
    %419 = vector.load %arg1[%418, %c0_124, %c0_125] : memref<7x2x32xbf16, #tpu.memory_space<vmem>>, vector<1x2x32xbf16>
    %420 = vector.shape_cast %419 : vector<1x2x32xbf16> to vector<2x32xbf16>
    %cst_126 = arith.constant dense<0.000000e+00> : vector<2x256xf32>
    %421 = tpu.matmul %420, %28, %cst_126 {dimension_numbers = #tpu.dot_dimension_numbers<[1], [0], [0], [1], [0, 0, 1, 1], [], []>} : vector<2x32xbf16>, vector<32x256xbf16>, vector<2x256xf32> -> vector<2x256xf32>
    %422 = arith.truncf %417 : vector<2x128xf32> to vector<2x128xbf16>
    %cst_127 = arith.constant dense<0.000000e+00> : vector<2x256xf32>
    %423 = tpu.matmul %422, %29, %cst_127 {dimension_numbers = #tpu.dot_dimension_numbers<[1], [0], [0], [1], [0, 0, 1, 1], [], []>} : vector<2x128xbf16>, vector<128x256xbf16>, vector<2x256xf32> -> vector<2x256xf32>
    %424 = arith.addf %421, %423 : vector<2x256xf32>
    %425 = arith.truncf %382 : vector<2x64xf32> to vector<2x64xbf16>
    %cst_128 = arith.constant dense<0.000000e+00> : vector<2x256xf32>
    %426 = tpu.matmul %425, %30, %cst_128 {dimension_numbers = #tpu.dot_dimension_numbers<[1], [0], [0], [1], [0, 0, 1, 1], [], []>} : vector<2x64xbf16>, vector<64x256xbf16>, vector<2x256xf32> -> vector<2x256xf32>
    %427 = arith.addf %424, %426 : vector<2x256xf32>
    %428 = vector.broadcast %31 : vector<1x256xf32> to vector<2x256xf32>
    %429 = arith.addf %427, %428 : vector<2x256xf32>
    %430 = vector.extract_strided_slice %429 {offsets = [0, 0], sizes = [2, 64], strides = [1, 1]} : vector<2x256xf32> to vector<2x64xf32>
    %431 = arith.negf %430 : vector<2x64xf32>
    %432 = math.exp %431 : vector<2x64xf32>
    %cst_129 = arith.constant 1.000000e+00 : f32
    %433 = vector.broadcast %cst_129 : f32 to vector<2x64xf32>
    %434 = arith.addf %433, %432 : vector<2x64xf32>
    %435 = arith.divf %433, %434 : vector<2x64xf32>
    %436 = vector.extract_strided_slice %429 {offsets = [0, 64], sizes = [2, 64], strides = [1, 1]} : vector<2x256xf32> to vector<2x64xf32>
    %437 = arith.negf %436 : vector<2x64xf32>
    %438 = math.exp %437 : vector<2x64xf32>
    %cst_130 = arith.constant 1.000000e+00 : f32
    %439 = vector.broadcast %cst_130 : f32 to vector<2x64xf32>
    %440 = arith.addf %439, %438 : vector<2x64xf32>
    %441 = arith.divf %439, %440 : vector<2x64xf32>
    %442 = vector.extract_strided_slice %429 {offsets = [0, 128], sizes = [2, 64], strides = [1, 1]} : vector<2x256xf32> to vector<2x64xf32>
    %443 = math.tanh %442 : vector<2x64xf32>
    %444 = vector.extract_strided_slice %429 {offsets = [0, 192], sizes = [2, 64], strides = [1, 1]} : vector<2x256xf32> to vector<2x64xf32>
    %445 = arith.negf %444 : vector<2x64xf32>
    %446 = math.exp %445 : vector<2x64xf32>
    %cst_131 = arith.constant 1.000000e+00 : f32
    %447 = vector.broadcast %cst_131 : f32 to vector<2x64xf32>
    %448 = arith.addf %447, %446 : vector<2x64xf32>
    %449 = arith.divf %447, %448 : vector<2x64xf32>
    %450 = arith.mulf %441, %380 : vector<2x64xf32>
    %451 = arith.mulf %435, %443 : vector<2x64xf32>
    %452 = arith.addf %450, %451 : vector<2x64xf32>
    %453 = math.tanh %452 : vector<2x64xf32>
    %454 = arith.mulf %449, %453 : vector<2x64xf32>
    %455 = arith.truncf %454 : vector<2x64xf32> to vector<2x64xbf16>
    %456 = arith.index_cast %c5_i32 : i32 to index
    %c0_132 = arith.constant 0 : index
    %c0_133 = arith.constant 0 : index
    %457 = vector.load %arg16[%456, %c0_132, %c0_133] : memref<7x2x64xbf16, #tpu.memory_space<vmem>>, vector<1x2x64xbf16>
    %458 = vector.shape_cast %457 : vector<1x2x64xbf16> to vector<2x64xbf16>
    %459 = vector.shape_cast %455 : vector<2x64xbf16> to vector<1x2x64xbf16>
    tpu.vector_store %arg16[%456, %c0_132, %c0_133], %459 {strides = array<i32>} : memref<7x2x64xbf16, #tpu.memory_space<vmem>>, vector<1x2x64xbf16>,
    %460 = arith.index_cast %c5_i32 : i32 to index
    %c0_134 = arith.constant 0 : index
    %c0_135 = arith.constant 0 : index
    %461 = vector.load %arg17[%460, %c0_134, %c0_135] : memref<7x2x16xf32, #tpu.memory_space<vmem>>, vector<1x2x16xf32>
    %462 = vector.shape_cast %461 : vector<1x2x16xf32> to vector<2x16xf32>
    %463 = vector.shape_cast %413 : vector<2x16xf32> to vector<1x2x16xf32>
    tpu.vector_store %arg17[%460, %c0_134, %c0_135], %463 {strides = array<i32>} : memref<7x2x16xf32, #tpu.memory_space<vmem>>, vector<1x2x16xf32>,
    %c6_i32 = arith.constant 6 : i32
    %464 = arith.truncf %454 : vector<2x64xf32> to vector<2x64xbf16>
    %cst_136 = arith.constant dense<0.000000e+00> : vector<2x32xf32>
    %465 = tpu.matmul %464, %23, %cst_136 {dimension_numbers = #tpu.dot_dimension_numbers<[1], [0], [0], [1], [0, 0, 1, 1], [], []>} : vector<2x64xbf16>, vector<64x32xbf16>, vector<2x32xf32> -> vector<2x32xf32>
    %466 = vector.broadcast %24 : vector<1x32xf32> to vector<2x32xf32>
    %467 = arith.addf %465, %466 : vector<2x32xf32>
    %468 = vector.shape_cast %467 : vector<2x32xf32> to vector<2x1x32xf32>
    %469 = vector.broadcast %468 : vector<2x1x32xf32> to vector<2x16x32xf32>
    %470 = arith.addf %22, %469 : vector<2x16x32xf32>
    %471 = math.tanh %470 : vector<2x16x32xf32>
    %472 = vector.broadcast %26 : vector<1x1x32xf32> to vector<2x16x32xf32>
    %473 = arith.mulf %471, %472 : vector<2x16x32xf32>
    %cst_137 = arith.constant dense<0.000000e+00> : vector<2x16xf32>
    %474 = vector.multi_reduction <add>, %473, %cst_137 [2] : vector<2x16x32xf32> to vector<2x16xf32>
    %475 = vector.broadcast %27 : vector<1x1xf32> to vector<2x16xf32>
    %476 = arith.addf %474, %475 : vector<2x16xf32>
    %cst_138 = arith.constant dense<0xFF800000> : vector<2xf32>
    %477 = vector.multi_reduction <maximumf>, %476, %cst_138 [1] : vector<2x16xf32> to vector<2xf32>
    %478 = vector.shape_cast %477 : vector<2xf32> to vector<2x1xf32>
    %479 = vector.broadcast %478 : vector<2x1xf32> to vector<2x16xf32>
    %480 = arith.subf %476, %479 : vector<2x16xf32>
    %481 = math.exp %480 : vector<2x16xf32>
    %cst_139 = arith.constant dense<0.000000e+00> : vector<2xf32>
    %482 = vector.multi_reduction <add>, %481, %cst_139 [1] : vector<2x16xf32> to vector<2xf32>
    %483 = vector.shape_cast %482 : vector<2xf32> to vector<2x1xf32>
    %484 = vector.broadcast %483 : vector<2x1xf32> to vector<2x16xf32>
    %485 = arith.divf %481, %484 : vector<2x16xf32>
    %486 = vector.shape_cast %485 : vector<2x16xf32> to vector<2x1x16xf32>
    %487 = arith.truncf %486 : vector<2x1x16xf32> to vector<2x1x16xbf16>
    "tpu.trace_start"() <{level = 10 : i32, message = "bqn,bne->bqe"}> : () -> ()
    %cst_140 = arith.constant dense<0.000000e+00> : vector<2x1x128xf32>
    %488 = tpu.matmul %487, %0, %cst_140 {dimension_numbers = #tpu.dot_dimension_numbers<[2], [1], [1], [2], [0, 0, 0, 1, 1, 2], [0], [0]>} : vector<2x1x16xbf16>, vector<2x16x128xbf16>, vector<2x1x128xf32> -> vector<2x1x128xf32>
    "tpu.trace_stop"() : () -> ()
    %489 = vector.shape_cast %488 : vector<2x1x128xf32> to vector<2x128xf32>
    %490 = arith.index_cast %c6_i32 : i32 to index
    %c0_141 = arith.constant 0 : index
    %c0_142 = arith.constant 0 : index
    %491 = vector.load %arg1[%490, %c0_141, %c0_142] : memref<7x2x32xbf16, #tpu.memory_space<vmem>>, vector<1x2x32xbf16>
    %492 = vector.shape_cast %491 : vector<1x2x32xbf16> to vector<2x32xbf16>
    %cst_143 = arith.constant dense<0.000000e+00> : vector<2x256xf32>
    %493 = tpu.matmul %492, %28, %cst_143 {dimension_numbers = #tpu.dot_dimension_numbers<[1], [0], [0], [1], [0, 0, 1, 1], [], []>} : vector<2x32xbf16>, vector<32x256xbf16>, vector<2x256xf32> -> vector<2x256xf32>
    %494 = arith.truncf %489 : vector<2x128xf32> to vector<2x128xbf16>
    %cst_144 = arith.constant dense<0.000000e+00> : vector<2x256xf32>
    %495 = tpu.matmul %494, %29, %cst_144 {dimension_numbers = #tpu.dot_dimension_numbers<[1], [0], [0], [1], [0, 0, 1, 1], [], []>} : vector<2x128xbf16>, vector<128x256xbf16>, vector<2x256xf32> -> vector<2x256xf32>
    %496 = arith.addf %493, %495 : vector<2x256xf32>
    %497 = arith.truncf %454 : vector<2x64xf32> to vector<2x64xbf16>
    %cst_145 = arith.constant dense<0.000000e+00> : vector<2x256xf32>
    %498 = tpu.matmul %497, %30, %cst_145 {dimension_numbers = #tpu.dot_dimension_numbers<[1], [0], [0], [1], [0, 0, 1, 1], [], []>} : vector<2x64xbf16>, vector<64x256xbf16>, vector<2x256xf32> -> vector<2x256xf32>
    %499 = arith.addf %496, %498 : vector<2x256xf32>
    %500 = vector.broadcast %31 : vector<1x256xf32> to vector<2x256xf32>
    %501 = arith.addf %499, %500 : vector<2x256xf32>
    %502 = vector.extract_strided_slice %501 {offsets = [0, 0], sizes = [2, 64], strides = [1, 1]} : vector<2x256xf32> to vector<2x64xf32>
    %503 = arith.negf %502 : vector<2x64xf32>
    %504 = math.exp %503 : vector<2x64xf32>
    %cst_146 = arith.constant 1.000000e+00 : f32
    %505 = vector.broadcast %cst_146 : f32 to vector<2x64xf32>
    %506 = arith.addf %505, %504 : vector<2x64xf32>
    %507 = arith.divf %505, %506 : vector<2x64xf32>
    %508 = vector.extract_strided_slice %501 {offsets = [0, 64], sizes = [2, 64], strides = [1, 1]} : vector<2x256xf32> to vector<2x64xf32>
    %509 = arith.negf %508 : vector<2x64xf32>
    %510 = math.exp %509 : vector<2x64xf32>
    %cst_147 = arith.constant 1.000000e+00 : f32
    %511 = vector.broadcast %cst_147 : f32 to vector<2x64xf32>
    %512 = arith.addf %511, %510 : vector<2x64xf32>
    %513 = arith.divf %511, %512 : vector<2x64xf32>
    %514 = vector.extract_strided_slice %501 {offsets = [0, 128], sizes = [2, 64], strides = [1, 1]} : vector<2x256xf32> to vector<2x64xf32>
    %515 = math.tanh %514 : vector<2x64xf32>
    %516 = vector.extract_strided_slice %501 {offsets = [0, 192], sizes = [2, 64], strides = [1, 1]} : vector<2x256xf32> to vector<2x64xf32>
    %517 = arith.negf %516 : vector<2x64xf32>
    %518 = math.exp %517 : vector<2x64xf32>
    %cst_148 = arith.constant 1.000000e+00 : f32
    %519 = vector.broadcast %cst_148 : f32 to vector<2x64xf32>
    %520 = arith.addf %519, %518 : vector<2x64xf32>
    %521 = arith.divf %519, %520 : vector<2x64xf32>
    %522 = arith.mulf %513, %452 : vector<2x64xf32>
    %523 = arith.mulf %507, %515 : vector<2x64xf32>
    %524 = arith.addf %522, %523 : vector<2x64xf32>
    %525 = math.tanh %524 : vector<2x64xf32>
    %526 = arith.mulf %521, %525 : vector<2x64xf32>
    %527 = arith.truncf %526 : vector<2x64xf32> to vector<2x64xbf16>
    %528 = arith.index_cast %c6_i32 : i32 to index
    %c0_149 = arith.constant 0 : index
    %c0_150 = arith.constant 0 : index
    %529 = vector.load %arg16[%528, %c0_149, %c0_150] : memref<7x2x64xbf16, #tpu.memory_space<vmem>>, vector<1x2x64xbf16>
    %530 = vector.shape_cast %529 : vector<1x2x64xbf16> to vector<2x64xbf16>
    %531 = vector.shape_cast %527 : vector<2x64xbf16> to vector<1x2x64xbf16>
    tpu.vector_store %arg16[%528, %c0_149, %c0_150], %531 {strides = array<i32>} : memref<7x2x64xbf16, #tpu.memory_space<vmem>>, vector<1x2x64xbf16>,
    %532 = arith.index_cast %c6_i32 : i32 to index
    %c0_151 = arith.constant 0 : index
    %c0_152 = arith.constant 0 : index
    %533 = vector.load %arg17[%532, %c0_151, %c0_152] : memref<7x2x16xf32, #tpu.memory_space<vmem>>, vector<1x2x16xf32>
    %534 = vector.shape_cast %533 : vector<1x2x16xf32> to vector<2x16xf32>
    %535 = vector.shape_cast %485 : vector<2x16xf32> to vector<1x2x16xf32>
    tpu.vector_store %arg17[%532, %c0_151, %c0_152], %535 {strides = array<i32>} : memref<7x2x16xf32, #tpu.memory_space<vmem>>, vector<1x2x16xf32>,
    %c7_i32 = arith.constant 7 : i32
    return
  }
}

module attributes {stable_mosaic.version = 11 : i64} {
  func.func @_matmul_bias_kernel(%arg0: i32, %arg1: memref<16x64xbf16, #tpu.memory_space<vmem>>, %arg2: memref<64x128xbf16, #tpu.memory_space<vmem>>, %arg3: memref<1x128xf32, #tpu.memory_space<vmem>>, %arg4: memref<16x128xf32, #tpu.memory_space<vmem>>) attributes {dimension_semantics = [#tpu.dimension_semantics<parallel>], iteration_bounds = array<i64: 1>, scalar_prefetch = 0 : i64, scratch_operands = 0 : i64, tpu.core_type = #tpu.core_type<tc>, window_params = [{transform_indices = @transform_0, window_bounds = array<i64: 16, 64>}, {pipeline_mode = #tpu.pipeline_mode<synchronous>, transform_indices = @transform_1, window_bounds = array<i64: 64, 128>}, {pipeline_mode = #tpu.pipeline_mode<synchronous>, transform_indices = @transform_2, window_bounds = array<i64: 1, 128>}, {transform_indices = @transform_3, window_bounds = array<i64: 16, 128>}]} {
    %c0 = arith.constant 0 : index
    %c0_0 = arith.constant 0 : index
    %0 = vector.load %arg1[%c0, %c0_0] : memref<16x64xbf16, #tpu.memory_space<vmem>>, vector<16x64xbf16>
    %c0_1 = arith.constant 0 : index
    %c0_2 = arith.constant 0 : index
    %1 = vector.load %arg2[%c0_1, %c0_2] : memref<64x128xbf16, #tpu.memory_space<vmem>>, vector<64x128xbf16>
    %cst = arith.constant dense<0.000000e+00> : vector<16x128xf32>
    %2 = tpu.matmul %0, %1, %cst {dimension_numbers = #tpu.dot_dimension_numbers<[1], [0], [0], [1], [0, 0, 1, 1], [], []>} : vector<16x64xbf16>, vector<64x128xbf16>, vector<16x128xf32> -> vector<16x128xf32>
    %c0_3 = arith.constant 0 : index
    %c0_4 = arith.constant 0 : index
    %3 = vector.load %arg3[%c0_3, %c0_4] : memref<1x128xf32, #tpu.memory_space<vmem>>, vector<1x128xf32>
    %4 = vector.broadcast %3 : vector<1x128xf32> to vector<16x128xf32>
    %5 = arith.addf %2, %4 : vector<16x128xf32>
    %c0_5 = arith.constant 0 : index
    %c0_6 = arith.constant 0 : index
    %6 = vector.load %arg4[%c0_5, %c0_6] : memref<16x128xf32, #tpu.memory_space<vmem>>, vector<16x128xf32>
    tpu.vector_store %arg4[%c0_5, %c0_6], %5 {strides = array<i32>} : memref<16x128xf32, #tpu.memory_space<vmem>>, vector<16x128xf32>,
    return
  }
  func.func @transform_0(%arg0: i32) -> (i32, i32) {
    %c0_i32 = arith.constant 0 : i32
    %c0_i32_0 = arith.constant 0 : i32
    return %arg0, %c0_i32 : i32, i32
  }
  func.func @transform_1(%arg0: i32) -> (i32, i32) {
    %c0_i32 = arith.constant 0 : i32
    %c0_i32_0 = arith.constant 0 : i32
    %c0_i32_1 = arith.constant 0 : i32
    return %c0_i32, %c0_i32_0 : i32, i32
  }
  func.func @transform_2(%arg0: i32) -> (i32, i32) {
    %c0_i32 = arith.constant 0 : i32
    %c0_i32_0 = arith.constant 0 : i32
    %c0_i32_1 = arith.constant 0 : i32
    return %c0_i32, %c0_i32_0 : i32, i32
  }
  func.func @transform_3(%arg0: i32) -> (i32, i32) {
    %c0_i32 = arith.constant 0 : i32
    %c0_i32_0 = arith.constant 0 : i32
    return %arg0, %c0_i32 : i32, i32
  }
}

</mosaic_0001>

<llo_original>
// kernel: encoder_decoder_forward.5
$region0: #{encoder_decoder_forward.5}
  #allocation0 [shape = 'u32[]', space=smem, size = 0x4, offset = 0x4, fixed_abs, tag = 'smem constant byte address 0x4 - core index']
  #allocation1 [shape = 'u32[144,128]{1,0:T(1,128)}', space=vmem, size = 0x12000, scoped, tag = 'internal scratch']
  %s0 = inlined_call_operand.vmem [shape: bf16[16,64], index: 0, kind: input, shape index: {}]
  %s1 = inlined_call_operand.vmem [shape: bf16[64,128], index: 1, kind: input, shape index: {}]
  %s2 = inlined_call_operand.vmem [shape: f32[1,128], index: 2, kind: input, shape index: {}]
  %s3 = inlined_call_operand.vmem [shape: f32[16,128], index: 3, kind: output, shape index: {}]
  %s4 = sld [smem:[#allocation0]]
  $region22: #{encoder_decoder_forward.5} parent=0
    _
  %s6 = ssub.s32 1, %s4
  %s7 = scalar_select 0, %s6, %s4
  // Predicated region
  $region2: #{encoder_decoder_forward.5} parent=0 // pred_check
    _
  $region3: #{encoder_decoder_forward.5} parent=0 // pred_check_branch
    %9 = sbr.rel (0) target = $region5
  $region4: #{encoder_decoder_forward.5} parent=0 // pred_region
    _
  $region5: #{encoder_decoder_forward.5} parent=0 // pred_fallthru
    _
  // Predicated region
  $region6: #{encoder_decoder_forward.5} parent=0 // pred_check
    _
  $region7: #{encoder_decoder_forward.5} parent=0 // pred_check_branch
    %11 = sbr.rel (0) target = $region9
  $region8: #{encoder_decoder_forward.5} parent=0 // pred_region
    _
  $region9: #{encoder_decoder_forward.5} parent=0 // pred_fallthru
    _
  // Predicated region
  $region10: #{encoder_decoder_forward.5} parent=0 // pred_check
    _
  $region11: #{encoder_decoder_forward.5} parent=0 // pred_check_branch
    %13 = sbr.rel (0) target = $region13
  $region12: #{encoder_decoder_forward.5} parent=0 // pred_region
    _
  $region13: #{encoder_decoder_forward.5} parent=0 // pred_fallthru
    _
  %v15 = vld [vmem:[%s0] sm:$0xf]
  %v16 = vld [vmem:[%s0 + $0x4] sm:$0xf]
  %v17 = vld [vmem:[%s1] sm:$0xf]
  %v18 = vld [vmem:[%s1 + $0x4] sm:$0xf]
  %v19 = vld [vmem:[%s1 + $0x8] sm:$0xf]
  %v20 = vld [vmem:[%s1 + $0xc] sm:$0xf]
  %v21 = vld [vmem:[%s1 + $0x10] sm:$0xf]
  %v22 = vld [vmem:[%s1 + $0x14] sm:$0xf]
  %v23 = vld [vmem:[%s1 + $0x18] sm:$0xf]
  %v24 = vld [vmem:[%s1 + $0x1c] sm:$0xf]
  %v25 = vld [vmem:[%s2] sm:$0x1]
  %v27 = vlaneseq
  %v28 = vshrl.u32 %v27, 7
  %v29 = vsub.s32 0, %v28
  %v30 = vrot.slane %v25, %v29
  %v34 = vunpack.c.l.b16 %v15
  %v35 = vunpack.c.l.b16 %v16
  %v36 = vpack.c.b16 %v35, %v34
  %v45 = vunpack.c.l.b16 %v17
  %v46 = vunpack.c.l.b16 %v18
  %v47 = vunpack.c.l.b16 %v19
  %v48 = vunpack.c.l.b16 %v20
  %v49 = vunpack.c.l.b16 %v21
  %v50 = vunpack.c.l.b16 %v22
  %v51 = vunpack.c.l.b16 %v23
  %v52 = vunpack.c.l.b16 %v24
  %v53 = vpack.c.b16 %v46, %v45
  %v54 = vpack.c.b16 %v48, %v47
  %v55 = vpack.c.b16 %v50, %v49
  %v56 = vpack.c.b16 %v52, %v51
  %vm61 = vcmask 523264
  %v63 = vsel %vm61, %v36, 0
  %65 = vmatprep.subr.bf16.mxu0 0
  %66 = vmatpush1.bf16.msra.mxu0 %v53
  %67 = vmatprep.subr.bf16.mxu0 0
  %68 = vmatpush1.bf16.msra.mxu0 %v54
  %69 = vmatprep.subr.bf16.mxu0 0
  %70 = vmatpush1.bf16.msra.mxu0 %v55
  %71 = vmatprep.subr.bf16.mxu0 0
  %72 = vmatpush1.bf16.msra.mxu0 %v56
  %73 = vmatprep.subr.bf16.mxu0 0
  %74 = vmatpush1.bf16.msra.mxu0 0
  %75 = vmatprep.subr.bf16.mxu0 0
  %76 = vmatpush1.bf16.msra.mxu0 0
  %77 = vmatprep.subr.bf16.mxu0 0
  %78 = vmatpush1.bf16.msra.mxu0 0
  %79 = vmatprep.subr.bf16.mxu0 0
  %80 = vmatpush1.bf16.msra.mxu0 0
  %81 = vmatprep.subr.bf16.mxu0 0
  %82 = vmatpush1.bf16.msra.mxu0 0
  %83 = vmatprep.subr.bf16.mxu0 0
  %84 = vmatpush1.bf16.msra.mxu0 0
  %85 = vmatprep.subr.bf16.mxu0 0
  %86 = vmatpush1.bf16.msra.mxu0 0
  %87 = vmatprep.subr.bf16.mxu0 0
  %88 = vmatpush1.bf16.msra.mxu0 0
  %89 = vmatprep.subr.bf16.mxu0 0
  %90 = vmatpush1.bf16.msra.mxu0 0
  %91 = vmatprep.subr.bf16.mxu0 0
  %92 = vmatpush1.bf16.msra.mxu0 0
  %93 = vmatprep.subr.bf16.mxu0 0
  %94 = vmatpush1.bf16.msra.mxu0 0
  %95 = vmatprep.subr.bf16.mxu0 0
  %96 = vmatpush1.bf16.msra.mxu0 0
  %97 = vmatprep.mubr.bf16.mxu0 0
  %98 = vmatmul.mubr.bf16.gmra.mrb[0].mxu0 %v63
  %v99 = vpop.f32.mrb[0].mxu0
  %v100 = vadd.f32 %v30, %v99
  %v101 = vpop.f32.mrb[0].mxu0
  %v102 = vpop.f32.mrb[0].mxu0
  %v103 = vadd.f32 %v30, %v102
  %v104 = vpop.f32.mrb[0].mxu0
  %105 = vdwg.mxu0
  %106 = vst [vmem:[%s3] sm:$0xff] %v100
  %107 = vst [vmem:[%s3 + $0x8] sm:$0xff] %v103
  // Predicated region
  $region14: #{encoder_decoder_forward.5} parent=0 // pred_check
    _
  $region15: #{encoder_decoder_forward.5} parent=0 // pred_check_branch
    %109 = sbr.rel (0) target = $region17
  $region16: #{encoder_decoder_forward.5} parent=0 // pred_region
    _
  $region17: #{encoder_decoder_forward.5} parent=0 // pred_fallthru
    _
  // Predicated region
  $region18: #{encoder_decoder_forward.5} parent=0 // pred_check
    _
  $region19: #{encoder_decoder_forward.5} parent=0 // pred_check_branch
    %111 = sbr.rel (0) target = $region21
  $region20: #{encoder_decoder_forward.5} parent=0 // pred_region
    _
  $region21: #{encoder_decoder_forward.5} parent=0 // pred_fallthru
    _

// kernel: encoder_decoder_forward.3
$region0: #{encoder_decoder_forward.3}
  #allocation0 [shape = 'u32[]', space=smem, size = 0x4, offset = 0x4, fixed_abs, tag = 'smem constant byte address 0x4 - core index']
  #allocation1 [shape = 'u32[144,128]{1,0:T(1,128)}', space=vmem, size = 0x12000, scoped, tag = 'internal scratch']
  %s0 = inlined_call_operand.vmem [shape: bf16[32,128], index: 0, kind: input, shape index: {}]
  %s1 = inlined_call_operand.vmem [shape: bf16[128,128], index: 1, kind: input, shape index: {}]
  %s2 = inlined_call_operand.vmem [shape: f32[1,128], index: 2, kind: input, shape index: {}]
  %s3 = inlined_call_operand.vmem [shape: bf16[32,128], index: 3, kind: output, shape index: {}]
  %s4 = sld [smem:[#allocation0]]
  $region22: #{encoder_decoder_forward.3} parent=0
    _
  %s6 = ssub.s32 1, %s4
  %s7 = scalar_select 0, %s6, %s4
  // Predicated region
  $region2: #{encoder_decoder_forward.3} parent=0 // pred_check
    _
  $region3: #{encoder_decoder_forward.3} parent=0 // pred_check_branch
    %9 = sbr.rel (0) target = $region5
  $region4: #{encoder_decoder_forward.3} parent=0 // pred_region
    _
  $region5: #{encoder_decoder_forward.3} parent=0 // pred_fallthru
    _
  // Predicated region
  $region6: #{encoder_decoder_forward.3} parent=0 // pred_check
    _
  $region7: #{encoder_decoder_forward.3} parent=0 // pred_check_branch
    %11 = sbr.rel (0) target = $region9
  $region8: #{encoder_decoder_forward.3} parent=0 // pred_region
    _
  $region9: #{encoder_decoder_forward.3} parent=0 // pred_fallthru
    _
  // Predicated region
  $region10: #{encoder_decoder_forward.3} parent=0 // pred_check
    _
  $region11: #{encoder_decoder_forward.3} parent=0 // pred_check_branch
    %13 = sbr.rel (0) target = $region13
  $region12: #{encoder_decoder_forward.3} parent=0 // pred_region
    _
  $region13: #{encoder_decoder_forward.3} parent=0 // pred_fallthru
    _
  %v15 = vld [vmem:[%s0] sm:$0xf]
  %v16 = vld [vmem:[%s0 + $0x4] sm:$0xf]
  %v17 = vld [vmem:[%s0 + $0x8] sm:$0xf]
  %v18 = vld [vmem:[%s0 + $0xc] sm:$0xf]
  %v19 = vld [vmem:[%s1] sm:$0xf]
  %v20 = vld [vmem:[%s1 + $0x4] sm:$0xf]
  %v21 = vld [vmem:[%s1 + $0x8] sm:$0xf]
  %v22 = vld [vmem:[%s1 + $0xc] sm:$0xf]
  %v23 = vld [vmem:[%s1 + $0x10] sm:$0xf]
  %v24 = vld [vmem:[%s1 + $0x14] sm:$0xf]
  %v25 = vld [vmem:[%s1 + $0x18] sm:$0xf]
  %v26 = vld [vmem:[%s1 + $0x1c] sm:$0xf]
  %v27 = vld [vmem:[%s1 + $0x20] sm:$0xf]
  %v28 = vld [vmem:[%s1 + $0x24] sm:$0xf]
  %v29 = vld [vmem:[%s1 + $0x28] sm:$0xf]
  %v30 = vld [vmem:[%s1 + $0x2c] sm:$0xf]
  %v31 = vld [vmem:[%s1 + $0x30] sm:$0xf]
  %v32 = vld [vmem:[%s1 + $0x34] sm:$0xf]
  %v33 = vld [vmem:[%s1 + $0x38] sm:$0xf]
  %v34 = vld [vmem:[%s1 + $0x3c] sm:$0xf]
  %v35 = vld [vmem:[%s2] sm:$0x1]
  %v37 = vlaneseq
  %v38 = vshrl.u32 %v37, 7
  %v39 = vsub.s32 0, %v38
  %v40 = vrot.slane %v35, %v39
  %v46 = vunpack.c.l.b16 %v15
  %v47 = vunpack.c.l.b16 %v16
  %v48 = vunpack.c.l.b16 %v17
  %v49 = vunpack.c.l.b16 %v18
  %v50 = vpack.c.b16 %v47, %v46
  %v51 = vpack.c.b16 %v49, %v48
  %v70 = vunpack.c.l.b16 %v19
  %v71 = vunpack.c.l.b16 %v20
  %v72 = vunpack.c.l.b16 %v21
  %v73 = vunpack.c.l.b16 %v22
  %v74 = vunpack.c.l.b16 %v23
  %v75 = vunpack.c.l.b16 %v24
  %v76 = vunpack.c.l.b16 %v25
  %v77 = vunpack.c.l.b16 %v26
  %v78 = vunpack.c.l.b16 %v27
  %v79 = vunpack.c.l.b16 %v28
  %v80 = vunpack.c.l.b16 %v29
  %v81 = vunpack.c.l.b16 %v30
  %v82 = vunpack.c.l.b16 %v31
  %v83 = vunpack.c.l.b16 %v32
  %v84 = vunpack.c.l.b16 %v33
  %v85 = vunpack.c.l.b16 %v34
  %v86 = vpack.c.b16 %v71, %v70
  %v87 = vpack.c.b16 %v73, %v72
  %v88 = vpack.c.b16 %v75, %v74
  %v89 = vpack.c.b16 %v77, %v76
  %v90 = vpack.c.b16 %v79, %v78
  %v91 = vpack.c.b16 %v81, %v80
  %v92 = vpack.c.b16 %v83, %v82
  %v93 = vpack.c.b16 %v85, %v84
  %102 = vmatprep.subr.bf16.mxu0 0
  %103 = vmatpush1.bf16.msra.mxu0 %v86
  %104 = vmatprep.subr.bf16.mxu0 0
  %105 = vmatpush1.bf16.msra.mxu0 %v87
  %106 = vmatprep.subr.bf16.mxu0 0
  %107 = vmatpush1.bf16.msra.mxu0 %v88
  %108 = vmatprep.subr.bf16.mxu0 0
  %109 = vmatpush1.bf16.msra.mxu0 %v89
  %110 = vmatprep.subr.bf16.mxu0 0
  %111 = vmatpush1.bf16.msra.mxu0 %v90
  %112 = vmatprep.subr.bf16.mxu0 0
  %113 = vmatpush1.bf16.msra.mxu0 %v91
  %114 = vmatprep.subr.bf16.mxu0 0
  %115 = vmatpush1.bf16.msra.mxu0 %v92
  %116 = vmatprep.subr.bf16.mxu0 0
  %117 = vmatpush1.bf16.msra.mxu0 %v93
  %118 = vmatprep.subr.bf16.mxu0 0
  %119 = vmatpush1.bf16.msra.mxu0 0
  %120 = vmatprep.subr.bf16.mxu0 0
  %121 = vmatpush1.bf16.msra.mxu0 0
  %122 = vmatprep.subr.bf16.mxu0 0
  %123 = vmatpush1.bf16.msra.mxu0 0
  %124 = vmatprep.subr.bf16.mxu0 0
  %125 = vmatpush1.bf16.msra.mxu0 0
  %126 = vmatprep.subr.bf16.mxu0 0
  %127 = vmatpush1.bf16.msra.mxu0 0
  %128 = vmatprep.subr.bf16.mxu0 0
  %129 = vmatpush1.bf16.msra.mxu0 0
  %130 = vmatprep.subr.bf16.mxu0 0
  %131 = vmatpush1.bf16.msra.mxu0 0
  %132 = vmatprep.subr.bf16.mxu0 0
  %133 = vmatpush1.bf16.msra.mxu0 0
  %134 = vmatprep.mubr.bf16.mxu0 0
  %135 = vmatmul.mubr.bf16.gmra.mrb[0].mxu0 %v50
  %v136 = vpop.f32.mrb[0].mxu0
  %v137 = vadd.f32 %v40, %v136
  %v138 = vpop.f32.mrb[0].mxu0
  %v139 = vpop.f32.mrb[0].mxu0
  %v140 = vadd.f32 %v40, %v139
  %v141 = vpop.f32.mrb[0].mxu0
  %142 = vmatprep.mubr.bf16.mxu0 0
  %143 = vmatmul.mubr.bf16.gmra.mrb[0].mxu0 %v51
  %v144 = vpop.f32.mrb[0].mxu0
  %v145 = vadd.f32 %v40, %v144
  %v146 = vpop.f32.mrb[0].mxu0
  %v147 = vpop.f32.mrb[0].mxu0
  %v148 = vadd.f32 %v40, %v147
  %v149 = vpop.f32.mrb[0].mxu0
  %150 = vdwg.mxu0
  %v151 = vpack.c.bf16 %v140, %v137
  %v152 = vpack.c.bf16 %v148, %v145
  %v155 = vunpack.c.l.b16 %v151
  %v156 = vunpack.c.h.b16 %v151
  %v157 = vunpack.c.l.b16 %v152
  %v158 = vunpack.c.h.b16 %v152
  %v159 = vpack.c.b16 %v155, %v155
  %v160 = vpack.c.b16 %v156, %v156
  %v161 = vpack.c.b16 %v157, %v157
  %v162 = vpack.c.b16 %v158, %v158
  %167 = vst [vmem:[%s3] sm:$0xf] %v159
  %168 = vst [vmem:[%s3 + $0x4] sm:$0xf] %v160
  %169 = vst [vmem:[%s3 + $0x8] sm:$0xf] %v161
  %170 = vst [vmem:[%s3 + $0xc] sm:$0xf] %v162
  // Predicated region
  $region14: #{encoder_decoder_forward.3} parent=0 // pred_check
    _
  $region15: #{encoder_decoder_forward.3} parent=0 // pred_check_branch
    %172 = sbr.rel (0) target = $region17
  $region16: #{encoder_decoder_forward.3} parent=0 // pred_region
    _
  $region17: #{encoder_decoder_forward.3} parent=0 // pred_fallthru
    _
  // Predicated region
  $region18: #{encoder_decoder_forward.3} parent=0 // pred_check
    _
  $region19: #{encoder_decoder_forward.3} parent=0 // pred_check_branch
    %174 = sbr.rel (0) target = $region21
  $region20: #{encoder_decoder_forward.3} parent=0 // pred_region
    _
  $region21: #{encoder_decoder_forward.3} parent=0 // pred_fallthru
    _

// kernel: encoder_decoder_forward.4
$region0: #{encoder_decoder_forward.4}
  #allocation0 [shape = 'u32[]', space=smem, size = 0x4, offset = 0x4, fixed_abs, tag = 'smem constant byte address 0x4 - core index']
  #allocation1 [shape = 'u32[144,128]{1,0:T(1,128)}', space=vmem, size = 0x12000, scoped, tag = 'internal scratch']
  #allocation2 [shape = 'f32[1,1]{1,0:T(1,128)S(1)}', space=vmem, size = 0x200, scoped, tag = 'scoped memory for encoder_decoder_forward.4']
  %s0 = inlined_call_operand.vmem [shape: bf16[2,16,128], index: 0, kind: input, shape index: {}]
  %s1 = inlined_call_operand.vmem [shape: bf16[7,2,32], index: 1, kind: input, shape index: {}]
  %s2 = inlined_call_operand.vmem [shape: bf16[128,32], index: 2, kind: input, shape index: {}]
  %s3 = inlined_call_operand.vmem [shape: f32[1,32], index: 3, kind: input, shape index: {}]
  %s4 = inlined_call_operand.vmem [shape: bf16[64,32], index: 4, kind: input, shape index: {}]
  %s5 = inlined_call_operand.vmem [shape: f32[1,32], index: 5, kind: input, shape index: {}]
  %s6 = inlined_call_operand.vmem [shape: f32[1,32], index: 6, kind: input, shape index: {}]
  %s7 = inlined_call_operand.<no memory space> [shape: f32[1,1], index: 7, kind: input, shape index: {}]
  %s8 = inlined_call_operand.vmem [shape: bf16[128,64], index: 8, kind: input, shape index: {}]
  %s9 = inlined_call_operand.vmem [shape: f32[1,64], index: 9, kind: input, shape index: {}]
  %s10 = inlined_call_operand.vmem [shape: bf16[128,64], index: 10, kind: input, shape index: {}]
  %s11 = inlined_call_operand.vmem [shape: f32[1,64], index: 11, kind: input, shape index: {}]
  %s12 = inlined_call_operand.vmem [shape: bf16[32,256], index: 12, kind: input, shape index: {}]
  %s13 = inlined_call_operand.vmem [shape: bf16[128,256], index: 13, kind: input, shape index: {}]
  %s14 = inlined_call_operand.vmem [shape: bf16[64,256], index: 14, kind: input, shape index: {}]
  %s15 = inlined_call_operand.vmem [shape: f32[1,256], index: 15, kind: input, shape index: {}]
  %s16 = inlined_call_operand.vmem [shape: bf16[7,2,64], index: 16, kind: output, shape index: {0}]
  %s17 = inlined_call_operand.hbm [shape: f32[7,2,16], index: 17, kind: output, shape index: {1}]
  %18 = xla_tuple %s16, %s17
  %s19 = sld [smem:[#allocation0]]
  $region82: #{encoder_decoder_forward.4} parent=0
    _
  %s21 = ssub.s32 1, %s19
  %s22 = scalar_select 0, %s21, %s19
  %v23 = vstv %s7
  %24 = vst [vmem:[#allocation2] sm:$0x1] %v23
  $region1: #{encoder_decoder_forward.4} parent=0
    #allocation3 [shape = 'u8[7168]{0}', space=vmem, size = 0x1c00, scoped, tag = 'output window, operand 1, single buffered']
    #allocation4 [shape = 's32[1]{0}', space=sflag, size = 0x4, scoped, tag = 'scoped memory for encoder_decoder_forward.4']
    %25 = vsyncpa [#allocation4], 0
    // Predicated region
    $region2: #{encoder_decoder_forward.4} parent=1 // pred_check
      _
    $region3: #{encoder_decoder_forward.4} parent=1 // pred_check_branch
      %27 = sbr.rel (0) target = $region5
    $region4: #{encoder_decoder_forward.4} parent=1 // pred_region
      _
    $region5: #{encoder_decoder_forward.4} parent=1 // pred_fallthru
      _
    // Predicated region
    $region6: #{encoder_decoder_forward.4} parent=1 // pred_check
      _
    $region7: #{encoder_decoder_forward.4} parent=1 // pred_check_branch
      %29 = sbr.rel (0) target = $region9
    $region8: #{encoder_decoder_forward.4} parent=1 // pred_region
      _
    $region9: #{encoder_decoder_forward.4} parent=1 // pred_fallthru
      _
    // Predicated region
    $region10: #{encoder_decoder_forward.4} parent=1 // pred_check
      _
    $region11: #{encoder_decoder_forward.4} parent=1 // pred_check_branch
      %31 = sbr.rel (0) target = $region13
    $region12: #{encoder_decoder_forward.4} parent=1 // pred_region
      _
    $region13: #{encoder_decoder_forward.4} parent=1 // pred_fallthru
      _
    // Predicated region
    $region14: #{encoder_decoder_forward.4} parent=1 // pred_check
      _
    $region15: #{encoder_decoder_forward.4} parent=1 // pred_check_branch
      %33 = sbr.rel (0) target = $region17
    $region16: #{encoder_decoder_forward.4} parent=1 // pred_region
      _
    $region17: #{encoder_decoder_forward.4} parent=1 // pred_fallthru
      _
    // Predicated region
    $region18: #{encoder_decoder_forward.4} parent=1 // pred_check
      _
    $region19: #{encoder_decoder_forward.4} parent=1 // pred_check_branch
      %35 = sbr.rel (0) target = $region21
    $region20: #{encoder_decoder_forward.4} parent=1 // pred_region
      _
    $region21: #{encoder_decoder_forward.4} parent=1 // pred_fallthru
      _
    // Predicated region
    $region22: #{encoder_decoder_forward.4} parent=1 // pred_check
      _
    $region23: #{encoder_decoder_forward.4} parent=1 // pred_check_branch
      %37 = sbr.rel (0) target = $region25
    $region24: #{encoder_decoder_forward.4} parent=1 // pred_region
      _
    $region25: #{encoder_decoder_forward.4} parent=1 // pred_fallthru
      _
    // Predicated region
    $region26: #{encoder_decoder_forward.4} parent=1 // pred_check
      _
    $region27: #{encoder_decoder_forward.4} parent=1 // pred_check_branch
      %39 = sbr.rel (0) target = $region29
    $region28: #{encoder_decoder_forward.4} parent=1 // pred_region
      _
    $region29: #{encoder_decoder_forward.4} parent=1 // pred_fallthru
      _
    // Predicated region
    $region30: #{encoder_decoder_forward.4} parent=1 // pred_check
      _
    $region31: #{encoder_decoder_forward.4} parent=1 // pred_check_branch
      %41 = sbr.rel (0) target = $region33
    $region32: #{encoder_decoder_forward.4} parent=1 // pred_region
      _
    $region33: #{encoder_decoder_forward.4} parent=1 // pred_fallthru
      _
    // Predicated region
    $region34: #{encoder_decoder_forward.4} parent=1 // pred_check
      _
    $region35: #{encoder_decoder_forward.4} parent=1 // pred_check_branch
      %43 = sbr.rel (0) target = $region37
    $region36: #{encoder_decoder_forward.4} parent=1 // pred_region
      _
    $region37: #{encoder_decoder_forward.4} parent=1 // pred_fallthru
      _
    // Predicated region
    $region38: #{encoder_decoder_forward.4} parent=1 // pred_check
      _
    $region39: #{encoder_decoder_forward.4} parent=1 // pred_check_branch
      %45 = sbr.rel (0) target = $region41
    $region40: #{encoder_decoder_forward.4} parent=1 // pred_region
      _
    $region41: #{encoder_decoder_forward.4} parent=1 // pred_fallthru
      _
    // Predicated region
    $region42: #{encoder_decoder_forward.4} parent=1 // pred_check
      _
    $region43: #{encoder_decoder_forward.4} parent=1 // pred_check_branch
      %47 = sbr.rel (0) target = $region45
    $region44: #{encoder_decoder_forward.4} parent=1 // pred_region
      _
    $region45: #{encoder_decoder_forward.4} parent=1 // pred_fallthru
      _
    // Predicated region
    $region46: #{encoder_decoder_forward.4} parent=1 // pred_check
      _
    $region47: #{encoder_decoder_forward.4} parent=1 // pred_check_branch
      %49 = sbr.rel (0) target = $region49
    $region48: #{encoder_decoder_forward.4} parent=1 // pred_region
      _
    $region49: #{encoder_decoder_forward.4} parent=1 // pred_fallthru
      _
    // Predicated region
    $region50: #{encoder_decoder_forward.4} parent=1 // pred_check
      _
    $region51: #{encoder_decoder_forward.4} parent=1 // pred_check_branch
      %51 = sbr.rel (0) target = $region53
    $region52: #{encoder_decoder_forward.4} parent=1 // pred_region
      _
    $region53: #{encoder_decoder_forward.4} parent=1 // pred_fallthru
      _
    // Predicated region
    $region54: #{encoder_decoder_forward.4} parent=1 // pred_check
      _
    $region55: #{encoder_decoder_forward.4} parent=1 // pred_check_branch
      %53 = sbr.rel (0) target = $region57
    $region56: #{encoder_decoder_forward.4} parent=1 // pred_region
      _
    $region57: #{encoder_decoder_forward.4} parent=1 // pred_fallthru
      _
    // Predicated region
    $region58: #{encoder_decoder_forward.4} parent=1 // pred_check
      _
    $region59: #{encoder_decoder_forward.4} parent=1 // pred_check_branch
      %55 = sbr.rel (0) target = $region61
    $region60: #{encoder_decoder_forward.4} parent=1 // pred_region
      _
    $region61: #{encoder_decoder_forward.4} parent=1 // pred_fallthru
      _
    // Predicated region
    $region62: #{encoder_decoder_forward.4} parent=1 // pred_check
      _
    $region63: #{encoder_decoder_forward.4} parent=1 // pred_check_branch
      %57 = sbr.rel (0) target = $region65
    $region64: #{encoder_decoder_forward.4} parent=1 // pred_region
      _
    $region65: #{encoder_decoder_forward.4} parent=1 // pred_fallthru
      _
    %v59 = vld [vmem:[%s0] sm:$0xf]
    %v60 = vld [vmem:[%s0 + $0x4] sm:$0xf]
    %v61 = vld [vmem:[%s0 + $0x8] sm:$0xf]
    %v62 = vld [vmem:[%s0 + $0xc] sm:$0xf]
    %v63 = vunpack.c.l.bf16 %v59
    %v64 = vunpack.c.l.bf16 %v60
    %v65 = vunpack.c.l.bf16 %v61
    %v66 = vunpack.c.l.bf16 %v62
    %v67 = vadd.f32 %v63, %v64
    %v68 = vrot.slane %v67, 4
    %v69 = vadd.f32 %v67, %v68
    %v70 = vrot.slane %v69, 2
    %v71 = vadd.f32 %v69, %v70
    %v72 = vrot.slane %v71, 1
    %v73 = vadd.f32 %v71, %v72
    %v74 = vadd.f32 %v65, %v66
    %v75 = vrot.slane %v74, 4
    %v76 = vadd.f32 %v74, %v75
    %v77 = vrot.slane %v76, 2
    %v78 = vadd.f32 %v76, %v77
    %v79 = vrot.slane %v78, 1
    %v80 = vadd.f32 %v78, %v79
    %v81 = vrcp.pop 16.0
    %v82 = vmul.f32 %v73, %v81
    %v83 = vmul.f32 %v80, %v81
    %v84 = vpack.c.bf16 %v82, %v82
    %v85 = vpack.c.bf16 %v83, %v83
    %v86 = vld [vmem:[%s8] sm:$0xf]
    %v87 = vld [vmem:[%s8 + $0x4] sm:$0xf]
    %v88 = vld [vmem:[%s8 + $0x8] sm:$0xf]
    %v89 = vld [vmem:[%s8 + $0xc] sm:$0xf]
    %v90 = vld [vmem:[%s8 + $0x10] sm:$0xf]
    %v91 = vld [vmem:[%s8 + $0x14] sm:$0xf]
    %v92 = vld [vmem:[%s8 + $0x18] sm:$0xf]
    %v93 = vld [vmem:[%s8 + $0x1c] sm:$0xf]
    %v94 = vld [vmem:[%s8 + $0x20] sm:$0xf]
    %v95 = vld [vmem:[%s8 + $0x24] sm:$0xf]
    %v96 = vld [vmem:[%s8 + $0x28] sm:$0xf]
    %v97 = vld [vmem:[%s8 + $0x2c] sm:$0xf]
    %v98 = vld [vmem:[%s8 + $0x30] sm:$0xf]
    %v99 = vld [vmem:[%s8 + $0x34] sm:$0xf]
    %v100 = vld [vmem:[%s8 + $0x38] sm:$0xf]
    %v101 = vld [vmem:[%s8 + $0x3c] sm:$0xf]
    %v102 = vld [vmem:[%s9] sm:$0x1]
    %v104 = vlaneseq
    %v105 = vshrl.u32 %v104, 7
    %v106 = vsub.s32 0, %v105
    %v107 = vrot.slane %v102, %v106
    %v111 = vunpack.c.l.b16 %v84
    %v112 = vunpack.c.l.b16 %v85
    %vm113 = vcmask 1041409
    %v114 = vsel %vm113, %v112, %v111
    %v115 = vpack.c.b16 %v114, %v114
    %v133 = vunpack.c.l.b16 %v86
    %v134 = vunpack.c.l.b16 %v87
    %v135 = vunpack.c.l.b16 %v88
    %v136 = vunpack.c.l.b16 %v89
    %v137 = vunpack.c.l.b16 %v90
    %v138 = vunpack.c.l.b16 %v91
    %v139 = vunpack.c.l.b16 %v92
    %v140 = vunpack.c.l.b16 %v93
    %v141 = vunpack.c.l.b16 %v94
    %v142 = vunpack.c.l.b16 %v95
    %v143 = vunpack.c.l.b16 %v96
    %v144 = vunpack.c.l.b16 %v97
    %v145 = vunpack.c.l.b16 %v98
    %v146 = vunpack.c.l.b16 %v99
    %v147 = vunpack.c.l.b16 %v100
    %v148 = vunpack.c.l.b16 %v101
    %v149 = vpack.c.b16 %v134, %v133
    %v150 = vpack.c.b16 %v136, %v135
    %v151 = vpack.c.b16 %v138, %v137
    %v152 = vpack.c.b16 %v140, %v139
    %v153 = vpack.c.b16 %v142, %v141
    %v154 = vpack.c.b16 %v144, %v143
    %v155 = vpack.c.b16 %v146, %v145
    %v156 = vpack.c.b16 %v148, %v147
    %165 = vmatprep.subr.bf16.mxu0 0
    %166 = vmatpush1.bf16.msra.mxu0 %v149
    %167 = vmatprep.subr.bf16.mxu0 0
    %168 = vmatpush1.bf16.msra.mxu0 %v150
    %169 = vmatprep.subr.bf16.mxu0 0
    %170 = vmatpush1.bf16.msra.mxu0 %v151
    %171 = vmatprep.subr.bf16.mxu0 0
    %172 = vmatpush1.bf16.msra.mxu0 %v152
    %173 = vmatprep.subr.bf16.mxu0 0
    %174 = vmatpush1.bf16.msra.mxu0 %v153
    %175 = vmatprep.subr.bf16.mxu0 0
    %176 = vmatpush1.bf16.msra.mxu0 %v154
    %177 = vmatprep.subr.bf16.mxu0 0
    %178 = vmatpush1.bf16.msra.mxu0 %v155
    %179 = vmatprep.subr.bf16.mxu0 0
    %180 = vmatpush1.bf16.msra.mxu0 %v156
    %181 = vmatprep.subr.bf16.mxu0 0
    %182 = vmatpush1.bf16.msra.mxu0 0
    %183 = vmatprep.subr.bf16.mxu0 0
    %184 = vmatpush1.bf16.msra.mxu0 0
    %185 = vmatprep.subr.bf16.mxu0 0
    %186 = vmatpush1.bf16.msra.mxu0 0
    %187 = vmatprep.subr.bf16.mxu0 0
    %188 = vmatpush1.bf16.msra.mxu0 0
    %189 = vmatprep.subr.bf16.mxu0 0
    %190 = vmatpush1.bf16.msra.mxu0 0
    %191 = vmatprep.subr.bf16.mxu0 0
    %192 = vmatpush1.bf16.msra.mxu0 0
    %193 = vmatprep.subr.bf16.mxu0 0
    %194 = vmatpush1.bf16.msra.mxu0 0
    %195 = vmatprep.subr.bf16.mxu0 0
    %196 = vmatpush1.bf16.msra.mxu0 0
    %197 = vmatprep.mubr.bf16.mxu0 0
    %198 = vmatmul.mubr.bf16.gmra.mrb[0].mxu0 %v115
    %v199 = vpop.f32.mrb[0].mxu0
    %v200 = vadd.f32 %v107, %v199
    %v201 = vpop.f32.mrb[0].mxu0
    %v202 = vpop.f32.mrb[0].mxu0
    %v203 = vpop.f32.mrb[0].mxu0
    %204 = vdwg.mxu0
    %v205 = vld [vmem:[%s10] sm:$0xf]
    %v206 = vld [vmem:[%s10 + $0x4] sm:$0xf]
    %v207 = vld [vmem:[%s10 + $0x8] sm:$0xf]
    %v208 = vld [vmem:[%s10 + $0xc] sm:$0xf]
    %v209 = vld [vmem:[%s10 + $0x10] sm:$0xf]
    %v210 = vld [vmem:[%s10 + $0x14] sm:$0xf]
    %v211 = vld [vmem:[%s10 + $0x18] sm:$0xf]
    %v212 = vld [vmem:[%s10 + $0x1c] sm:$0xf]
    %v213 = vld [vmem:[%s10 + $0x20] sm:$0xf]
    %v214 = vld [vmem:[%s10 + $0x24] sm:$0xf]
    %v215 = vld [vmem:[%s10 + $0x28] sm:$0xf]
    %v216 = vld [vmem:[%s10 + $0x2c] sm:$0xf]
    %v217 = vld [vmem:[%s10 + $0x30] sm:$0xf]
    %v218 = vld [vmem:[%s10 + $0x34] sm:$0xf]
    %v219 = vld [vmem:[%s10 + $0x38] sm:$0xf]
    %v220 = vld [vmem:[%s10 + $0x3c] sm:$0xf]
    %v221 = vld [vmem:[%s11] sm:$0x1]
    %v223 = vlaneseq
    %v224 = vshrl.u32 %v223, 7
    %v225 = vsub.s32 0, %v224
    %v226 = vrot.slane %v221, %v225
    %v244 = vunpack.c.l.b16 %v205
    %v245 = vunpack.c.l.b16 %v206
    %v246 = vunpack.c.l.b16 %v207
    %v247 = vunpack.c.l.b16 %v208
    %v248 = vunpack.c.l.b16 %v209
    %v249 = vunpack.c.l.b16 %v210
    %v250 = vunpack.c.l.b16 %v211
    %v251 = vunpack.c.l.b16 %v212
    %v252 = vunpack.c.l.b16 %v213
    %v253 = vunpack.c.l.b16 %v214
    %v254 = vunpack.c.l.b16 %v215
    %v255 = vunpack.c.l.b16 %v216
    %v256 = vunpack.c.l.b16 %v217
    %v257 = vunpack.c.l.b16 %v218
    %v258 = vunpack.c.l.b16 %v219
    %v259 = vunpack.c.l.b16 %v220
    %v260 = vpack.c.b16 %v245, %v244
    %v261 = vpack.c.b16 %v247, %v246
    %v262 = vpack.c.b16 %v249, %v248
    %v263 = vpack.c.b16 %v251, %v250
    %v264 = vpack.c.b16 %v253, %v252
    %v265 = vpack.c.b16 %v255, %v254
    %v266 = vpack.c.b16 %v257, %v256
    %v267 = vpack.c.b16 %v259, %v258
    %276 = vmatprep.subr.bf16.mxu0 0
    %277 = vmatpush1.bf16.msra.mxu0 %v260
    %278 = vmatprep.subr.bf16.mxu0 0
    %279 = vmatpush1.bf16.msra.mxu0 %v261
    %280 = vmatprep.subr.bf16.mxu0 0
    %281 = vmatpush1.bf16.msra.mxu0 %v262
    %282 = vmatprep.subr.bf16.mxu0 0
    %283 = vmatpush1.bf16.msra.mxu0 %v263
    %284 = vmatprep.subr.bf16.mxu0 0
    %285 = vmatpush1.bf16.msra.mxu0 %v264
    %286 = vmatprep.subr.bf16.mxu0 0
    %287 = vmatpush1.bf16.msra.mxu0 %v265
    %288 = vmatprep.subr.bf16.mxu0 0
    %289 = vmatpush1.bf16.msra.mxu0 %v266
    %290 = vmatprep.subr.bf16.mxu0 0
    %291 = vmatpush1.bf16.msra.mxu0 %v267
    %292 = vmatprep.subr.bf16.mxu0 0
    %293 = vmatpush1.bf16.msra.mxu0 0
    %294 = vmatprep.subr.bf16.mxu0 0
    %295 = vmatpush1.bf16.msra.mxu0 0
    %296 = vmatprep.subr.bf16.mxu0 0
    %297 = vmatpush1.bf16.msra.mxu0 0
    %298 = vmatprep.subr.bf16.mxu0 0
    %299 = vmatpush1.bf16.msra.mxu0 0
    %300 = vmatprep.subr.bf16.mxu0 0
    %301 = vmatpush1.bf16.msra.mxu0 0
    %302 = vmatprep.subr.bf16.mxu0 0
    %303 = vmatpush1.bf16.msra.mxu0 0
    %304 = vmatprep.subr.bf16.mxu0 0
    %305 = vmatpush1.bf16.msra.mxu0 0
    %306 = vmatprep.subr.bf16.mxu0 0
    %307 = vmatpush1.bf16.msra.mxu0 0
    %308 = vmatprep.mubr.bf16.mxu0 0
    %309 = vmatmul.mubr.bf16.gmra.mrb[0].mxu0 %v115
    %v310 = vpop.f32.mrb[0].mxu0
    %v311 = vadd.f32 %v226, %v310
    %v312 = vpop.f32.mrb[0].mxu0
    %v313 = vpop.f32.mrb[0].mxu0
    %v314 = vpop.f32.mrb[0].mxu0
    %315 = vdwg.mxu0
    %v316 = vld [vmem:[%s2] sm:$0xf]
    %v317 = vld [vmem:[%s2 + $0x4] sm:$0xf]
    %v318 = vld [vmem:[%s2 + $0x8] sm:$0xf]
    %v319 = vld [vmem:[%s2 + $0xc] sm:$0xf]
    %v320 = vld [vmem:[%s2 + $0x10] sm:$0xf]
    %v321 = vld [vmem:[%s2 + $0x14] sm:$0xf]
    %v322 = vld [vmem:[%s2 + $0x18] sm:$0xf]
    %v323 = vld [vmem:[%s2 + $0x1c] sm:$0xf]
    %v324 = vld [vmem:[%s2 + $0x20] sm:$0xf]
    %v325 = vld [vmem:[%s2 + $0x24] sm:$0xf]
    %v326 = vld [vmem:[%s2 + $0x28] sm:$0xf]
    %v327 = vld [vmem:[%s2 + $0x2c] sm:$0xf]
    %v328 = vld [vmem:[%s2 + $0x30] sm:$0xf]
    %v329 = vld [vmem:[%s2 + $0x34] sm:$0xf]
    %v330 = vld [vmem:[%s2 + $0x38] sm:$0xf]
    %v331 = vld [vmem:[%s2 + $0x3c] sm:$0xf]
    %v332 = vld [vmem:[%s3] sm:$0x1]
    %v334 = vlaneseq
    %v335 = vshrl.u32 %v334, 7
    %v336 = vsub.s32 0, %v335
    %v337 = vrot.slane %v332, %v336
    %v343 = vunpack.c.l.b16 %v59
    %v344 = vunpack.c.l.b16 %v60
    %v345 = vunpack.c.l.b16 %v61
    %v346 = vunpack.c.l.b16 %v62
    %v347 = vpack.c.b16 %v344, %v343
    %v348 = vpack.c.b16 %v346, %v345
    %v367 = vunpack.c.l.b16 %v316
    %v368 = vunpack.c.l.b16 %v317
    %v369 = vunpack.c.l.b16 %v318
    %v370 = vunpack.c.l.b16 %v319
    %v371 = vunpack.c.l.b16 %v320
    %v372 = vunpack.c.l.b16 %v321
    %v373 = vunpack.c.l.b16 %v322
    %v374 = vunpack.c.l.b16 %v323
    %v375 = vunpack.c.l.b16 %v324
    %v376 = vunpack.c.l.b16 %v325
    %v377 = vunpack.c.l.b16 %v326
    %v378 = vunpack.c.l.b16 %v327
    %v379 = vunpack.c.l.b16 %v328
    %v380 = vunpack.c.l.b16 %v329
    %v381 = vunpack.c.l.b16 %v330
    %v382 = vunpack.c.l.b16 %v331
    %v383 = vpack.c.b16 %v368, %v367
    %v384 = vpack.c.b16 %v370, %v369
    %v385 = vpack.c.b16 %v372, %v371
    %v386 = vpack.c.b16 %v374, %v373
    %v387 = vpack.c.b16 %v376, %v375
    %v388 = vpack.c.b16 %v378, %v377
    %v389 = vpack.c.b16 %v380, %v379
    %v390 = vpack.c.b16 %v382, %v381
    %399 = vmatprep.subr.bf16.mxu0 0
    %400 = vmatpush1.bf16.msra.mxu0 %v383
    %401 = vmatprep.subr.bf16.mxu0 0
    %402 = vmatpush1.bf16.msra.mxu0 %v384
    %403 = vmatprep.subr.bf16.mxu0 0
    %404 = vmatpush1.bf16.msra.mxu0 %v385
    %405 = vmatprep.subr.bf16.mxu0 0
    %406 = vmatpush1.bf16.msra.mxu0 %v386
    %407 = vmatprep.subr.bf16.mxu0 0
    %408 = vmatpush1.bf16.msra.mxu0 %v387
    %409 = vmatprep.subr.bf16.mxu0 0
    %410 = vmatpush1.bf16.msra.mxu0 %v388
    %411 = vmatprep.subr.bf16.mxu0 0
    %412 = vmatpush1.bf16.msra.mxu0 %v389
    %413 = vmatprep.subr.bf16.mxu0 0
    %414 = vmatpush1.bf16.msra.mxu0 %v390
    %415 = vmatprep.subr.bf16.mxu0 0
    %416 = vmatpush1.bf16.msra.mxu0 0
    %417 = vmatprep.subr.bf16.mxu0 0
    %418 = vmatpush1.bf16.msra.mxu0 0
    %419 = vmatprep.subr.bf16.mxu0 0
    %420 = vmatpush1.bf16.msra.mxu0 0
    %421 = vmatprep.subr.bf16.mxu0 0
    %422 = vmatpush1.bf16.msra.mxu0 0
    %423 = vmatprep.subr.bf16.mxu0 0
    %424 = vmatpush1.bf16.msra.mxu0 0
    %425 = vmatprep.subr.bf16.mxu0 0
    %426 = vmatpush1.bf16.msra.mxu0 0
    %427 = vmatprep.subr.bf16.mxu0 0
    %428 = vmatpush1.bf16.msra.mxu0 0
    %429 = vmatprep.subr.bf16.mxu0 0
    %430 = vmatpush1.bf16.msra.mxu0 0
    %431 = vmatprep.mubr.bf16.mxu0 0
    %432 = vmatmul.mubr.bf16.gmra.mrb[0].mxu0 %v347
    %v433 = vpop.f32.mrb[0].mxu0
    %v434 = vadd.f32 %v337, %v433
    %v435 = vpop.f32.mrb[0].mxu0
    %v436 = vpop.f32.mrb[0].mxu0
    %v437 = vadd.f32 %v337, %v436
    %v438 = vpop.f32.mrb[0].mxu0
    %439 = vmatprep.mubr.bf16.mxu0 0
    %440 = vmatmul.mubr.bf16.gmra.mrb[0].mxu0 %v348
    %v441 = vpop.f32.mrb[0].mxu0
    %v442 = vadd.f32 %v337, %v441
    %v443 = vpop.f32.mrb[0].mxu0
    %v444 = vpop.f32.mrb[0].mxu0
    %v445 = vadd.f32 %v337, %v444
    %v446 = vpop.f32.mrb[0].mxu0
    %447 = vdwg.mxu0
    %v448 = vld [vmem:[%s4] sm:$0xf]
    %v449 = vld [vmem:[%s4 + $0x4] sm:$0xf]
    %v450 = vld [vmem:[%s4 + $0x8] sm:$0xf]
    %v451 = vld [vmem:[%s4 + $0xc] sm:$0xf]
    %v452 = vld [vmem:[%s4 + $0x10] sm:$0xf]
    %v453 = vld [vmem:[%s4 + $0x14] sm:$0xf]
    %v454 = vld [vmem:[%s4 + $0x18] sm:$0xf]
    %v455 = vld [vmem:[%s4 + $0x1c] sm:$0xf]
    %v456 = vld [vmem:[%s5] sm:$0x1]
    %v457 = vld [vmem:[%s6] sm:$0x1]
    %v458 = vld [vmem:[#allocation2] sm:$0x1]
    %v459 = vld [vmem:[%s12] sm:$0xff]
    %v460 = vld [vmem:[%s12 + $0x8] sm:$0xff]
    %v461 = vld [vmem:[%s12 + $0x10] sm:$0xff]
    %v462 = vld [vmem:[%s12 + $0x18] sm:$0xff]
    %v463 = vld [vmem:[%s13] sm:$0xff]
    %v464 = vld [vmem:[%s13 + $0x8] sm:$0xff]
    %v465 = vld [vmem:[%s13 + $0x10] sm:$0xff]
    %v466 = vld [vmem:[%s13 + $0x18] sm:$0xff]
    %v467 = vld [vmem:[%s13 + $0x20] sm:$0xff]
    %v468 = vld [vmem:[%s13 + $0x28] sm:$0xff]
    %v469 = vld [vmem:[%s13 + $0x30] sm:$0xff]
    %v470 = vld [vmem:[%s13 + $0x38] sm:$0xff]
    %v471 = vld [vmem:[%s13 + $0x40] sm:$0xff]
    %v472 = vld [vmem:[%s13 + $0x48] sm:$0xff]
    %v473 = vld [vmem:[%s13 + $0x50] sm:$0xff]
    %v474 = vld [vmem:[%s13 + $0x58] sm:$0xff]
    %v475 = vld [vmem:[%s13 + $0x60] sm:$0xff]
    %v476 = vld [vmem:[%s13 + $0x68] sm:$0xff]
    %v477 = vld [vmem:[%s13 + $0x70] sm:$0xff]
    %v478 = vld [vmem:[%s13 + $0x78] sm:$0xff]
    %v479 = vld [vmem:[%s14] sm:$0xff]
    %v480 = vld [vmem:[%s14 + $0x8] sm:$0xff]
    %v481 = vld [vmem:[%s14 + $0x10] sm:$0xff]
    %v482 = vld [vmem:[%s14 + $0x18] sm:$0xff]
    %v483 = vld [vmem:[%s14 + $0x20] sm:$0xff]
    %v484 = vld [vmem:[%s14 + $0x28] sm:$0xff]
    %v485 = vld [vmem:[%s14 + $0x30] sm:$0xff]
    %v486 = vld [vmem:[%s14 + $0x38] sm:$0xff]
    %v487 = vld [vmem:[%s15] sm:$0x3]
    %v488 = vpack.c.bf16 %v200, %v200
    %v490 = vlaneseq
    %v491 = vshrl.u32 %v490, 7
    %v492 = vsub.s32 0, %v491
    %v493 = vrot.slane %v456, %v492
    %v503 = vunpack.c.l.b16 %v448
    %v504 = vunpack.c.l.b16 %v449
    %v505 = vunpack.c.l.b16 %v450
    %v506 = vunpack.c.l.b16 %v451
    %v507 = vunpack.c.l.b16 %v452
    %v508 = vunpack.c.l.b16 %v453
    %v509 = vunpack.c.l.b16 %v454
    %v510 = vunpack.c.l.b16 %v455
    %v511 = vpack.c.b16 %v504, %v503
    %v512 = vpack.c.b16 %v506, %v505
    %v513 = vpack.c.b16 %v508, %v507
    %v514 = vpack.c.b16 %v510, %v509
    %vm519 = vcmask 523264
    %v521 = vsel %vm519, %v488, 0
    %523 = vmatprep.subr.bf16.mxu0 0
    %524 = vmatpush1.bf16.msra.mxu0 %v511
    %525 = vmatprep.subr.bf16.mxu0 0
    %526 = vmatpush1.bf16.msra.mxu0 %v512
    %527 = vmatprep.subr.bf16.mxu0 0
    %528 = vmatpush1.bf16.msra.mxu0 %v513
    %529 = vmatprep.subr.bf16.mxu0 0
    %530 = vmatpush1.bf16.msra.mxu0 %v514
    %531 = vmatprep.subr.bf16.mxu0 0
    %532 = vmatpush1.bf16.msra.mxu0 0
    %533 = vmatprep.subr.bf16.mxu0 0
    %534 = vmatpush1.bf16.msra.mxu0 0
    %535 = vmatprep.subr.bf16.mxu0 0
    %536 = vmatpush1.bf16.msra.mxu0 0
    %537 = vmatprep.subr.bf16.mxu0 0
    %538 = vmatpush1.bf16.msra.mxu0 0
    %539 = vmatprep.subr.bf16.mxu0 0
    %540 = vmatpush1.bf16.msra.mxu0 0
    %541 = vmatprep.subr.bf16.mxu0 0
    %542 = vmatpush1.bf16.msra.mxu0 0
    %543 = vmatprep.subr.bf16.mxu0 0
    %544 = vmatpush1.bf16.msra.mxu0 0
    %545 = vmatprep.subr.bf16.mxu0 0
    %546 = vmatpush1.bf16.msra.mxu0 0
    %547 = vmatprep.subr.bf16.mxu0 0
    %548 = vmatpush1.bf16.msra.mxu0 0
    %549 = vmatprep.subr.bf16.mxu0 0
    %550 = vmatpush1.bf16.msra.mxu0 0
    %551 = vmatprep.subr.bf16.mxu0 0
    %552 = vmatpush1.bf16.msra.mxu0 0
    %553 = vmatprep.subr.bf16.mxu0 0
    %554 = vmatpush1.bf16.msra.mxu0 0
    %555 = vmatprep.mubr.bf16.mxu0 0
    %556 = vmatmul.mubr.bf16.gmra.mrb[0].mxu0 %v521
    %v557 = vpop.f32.mrb[0].mxu0
    %v558 = vadd.f32 %v493, %v557
    %v559 = vpop.f32.mrb[0].mxu0
    %v560 = vpop.f32.mrb[0].mxu0
    %v561 = vpop.f32.mrb[0].mxu0
    %562 = vdwg.mxu0
    %v565 = vunpack.c.l.s4 1966171168
    %v566 = vunpack.c.0.s8 %v565
    %v567 = vlaneseq
    %v568 = vshrl.u32 %v567, 7
    %v569 = vsub.s32 %v566, %v568
    %v570 = vrot.slane %v558, %v569
    %v571 = vcombine.high %v570, %v570
    %v573 = vunpack.c.l.s4 1966171168
    %v574 = vunpack.c.0.s8 %v573
    %v575 = vlaneseq
    %v576 = vshrl.u32 %v575, 7
    %v577 = vsub.s32 %v574, %v576
    %v578 = vrot.slane %v570, %v577
    %v580 = vunpack.c.l.s4 1966171168
    %v581 = vunpack.c.0.s8 %v580
    %v582 = vlaneseq
    %v583 = vshrl.u32 %v582, 7
    %v584 = vsub.s32 %v581, %v583
    %v585 = vrot.slane %v571, %v584
    %v586 = vlaneseq
    %v587 = vshrl.u32 %v586, 7
    %v588 = vsub.s32 0, %v587
    %v589 = vrot.slane %v578, %v588
    %v590 = vlaneseq
    %v591 = vshrl.u32 %v590, 7
    %v592 = vsub.s32 0, %v591
    %v593 = vrot.slane %v585, %v592
    %v596 = vadd.f32 %v434, %v589
    %v597 = vadd.f32 %v437, %v589
    %v598 = vadd.f32 %v442, %v593
    %v599 = vadd.f32 %v445, %v593
    %v600 = vtanh.pop %v596
    %v601 = vtanh.pop %v597
    %v602 = vtanh.pop %v598
    %v603 = vtanh.pop %v599
    %v605 = vlaneseq
    %v606 = vshrl.u32 %v605, 7
    %v607 = vsub.s32 0, %v606
    %v608 = vrot.slane %v457, %v607
    %v610 = vmul.f32 %v600, %v608
    %v611 = vmul.f32 %v601, %v608
    %v612 = vmul.f32 %v602, %v608
    %v613 = vmul.f32 %v603, %v608
    %vm614 = vcmask 261120
    %v615 = vsel %vm614, %v610, 0.0
    %616 = vadd.xlane.f32.xlu0 %v615
    %v617 = vpop.xlane.xlu0 %616
    %v618 = vsel %vm614, %v611, 0.0
    %619 = vadd.xlane.f32.xlu0 %v618
    %v620 = vpop.xlane.xlu0 %619
    %v621 = vsel %vm614, %v612, 0.0
    %622 = vadd.xlane.f32.xlu0 %v621
    %v623 = vpop.xlane.xlu0 %622
    %v624 = vsel %vm614, %v613, 0.0
    %625 = vadd.xlane.f32.xlu0 %v624
    %v626 = vpop.xlane.xlu0 %625
    %v628 = vlaneseq
    %v629 = vshrl.u32 %v628, 7
    %v630 = vsub.s32 0, %v629
    %v631 = vrot.slane %v458, %v630
    %632 = vset.pattern.permute.xlu0 0
    %633 = vperm.xlu0 %632, %v631
    %v634 = vpop.permute.xlu0 %633
    %v636 = vadd.f32 %v617, %v634
    %v637 = vadd.f32 %v620, %v634
    %v638 = vadd.f32 %v623, %v634
    %v639 = vadd.f32 %v626, %v634
    %v644 = vlaneseq
    %v645 = vand.u32 %v644, 127
    %v646 = vlaneseq
    %v647 = vshrl.u32 %v646, 7
    %v648 = vsub.s32 %v645, %v647
    %v649 = vrot.slane %v636, %v648
    %v650 = vadd.s32 %v645, 4294967288
    %v651 = vlaneseq
    %v652 = vshrl.u32 %v651, 7
    %v653 = vsub.s32 %v650, %v652
    %v654 = vrot.slane %v637, %v653
    %vm655 = vcmask 130112
    %v656 = vsel %vm655, %v654, %v649
    %v657 = vlaneseq
    %v658 = vshrl.u32 %v657, 7
    %v659 = vsub.s32 %v645, %v658
    %v660 = vrot.slane %v638, %v659
    %v661 = vlaneseq
    %v662 = vshrl.u32 %v661, 7
    %v663 = vsub.s32 %v650, %v662
    %v664 = vrot.slane %v639, %v663
    %v665 = vsel %vm655, %v664, %v660
    %v666 = vsel %vm113, %v665, %v656
    %vm668 = vcmask 123904
    %v669 = vsel %vm668, %v666, -inf
    %670 = vmax.xlane.f32.xlu0 %v669
    %v671 = vpop.xlane.xlu0 %670
    %v673 = vlaneseq
    %v674 = vshrl.u32 %v673, 7
    %v675 = vsub.s32 0, %v674
    %v676 = vrot.slane %v671, %v675
    %v677 = vlaneseq
    %v678 = vshrl.u32 %v677, 7
    %v679 = vsub.s32 1, %v678
    %v680 = vrot.slane %v671, %v679
    %v683 = vsub.f32 %v636, %v676
    %v684 = vsub.f32 %v637, %v676
    %v685 = vsub.f32 %v638, %v680
    %v686 = vsub.f32 %v639, %v680
    %v687 = vmul.f32 %v683, 1.442695
    %v688 = vpow.pop %v687
    %v689 = vmul.f32 %v684, 1.442695
    %v690 = vpow.pop %v689
    %v691 = vmul.f32 %v685, 1.442695
    %v692 = vpow.pop %v691
    %v693 = vmul.f32 %v686, 1.442695
    %v694 = vpow.pop %v693
    %699 = vset.pattern.permute.xlu0 0
    %700 = vperm.xlu0 %699, %v688
    %v701 = vpop.permute.xlu0 %700
    %702 = vset.pattern.permute.xlu0 0
    %703 = vperm.xlu0 %702, %v690
    %v704 = vpop.permute.xlu0 %703
    %705 = vset.pattern.permute.xlu0 0
    %706 = vperm.xlu0 %705, %v692
    %v707 = vpop.permute.xlu0 %706
    %708 = vset.pattern.permute.xlu0 0
    %709 = vperm.xlu0 %708, %v694
    %v710 = vpop.permute.xlu0 %709
    %v711 = vlaneseq
    %v712 = vshrl.u32 %v711, 7
    %v713 = vsub.s32 %v645, %v712
    %v714 = vrot.slane %v701, %v713
    %v715 = vlaneseq
    %v716 = vshrl.u32 %v715, 7
    %v717 = vsub.s32 %v650, %v716
    %v718 = vrot.slane %v704, %v717
    %v719 = vsel %vm655, %v718, %v714
    %v720 = vlaneseq
    %v721 = vshrl.u32 %v720, 7
    %v722 = vsub.s32 %v645, %v721
    %v723 = vrot.slane %v707, %v722
    %v724 = vlaneseq
    %v725 = vshrl.u32 %v724, 7
    %v726 = vsub.s32 %v650, %v725
    %v727 = vrot.slane %v710, %v726
    %v728 = vsel %vm655, %v727, %v723
    %v729 = vsel %vm113, %v728, %v719
    %v731 = vsel %vm668, %v729, 0.0
    %732 = vadd.xlane.f32.xlu0 %v731
    %v733 = vpop.xlane.xlu0 %732
    %v735 = vlaneseq
    %v736 = vshrl.u32 %v735, 7
    %v737 = vsub.s32 0, %v736
    %v738 = vrot.slane %v733, %v737
    %v739 = vlaneseq
    %v740 = vshrl.u32 %v739, 7
    %v741 = vsub.s32 1, %v740
    %v742 = vrot.slane %v733, %v741
    %v745 = vrcp.pop %v738
    %v746 = vmul.f32 %v688, %v745
    %v747 = vmul.f32 %v690, %v745
    %v748 = vrcp.pop %v742
    %v749 = vmul.f32 %v692, %v748
    %v750 = vmul.f32 %v694, %v748
    %v751 = vpack.c.bf16 %v747, %v746
    %v752 = vpack.c.bf16 %v750, %v749
    %v754 = vunpack.c.l.b16 %v751
    %v755 = vunpack.c.h.b16 %v751
    %756 = vset.pattern.permute.xlu0 0
    %757 = vperm.xlu0 %756, %v754
    %v758 = vpop.permute.xlu0 %757
    %759 = vset.pattern.permute.xlu0 0
    %760 = vperm.xlu0 %759, %v755
    %v761 = vpop.permute.xlu0 %760
    %v762 = vlaneseq
    %v763 = vshrl.u32 %v762, 7
    %v764 = vsub.s32 %v645, %v763
    %v765 = vrot.slane %v758, %v764
    %v766 = vlaneseq
    %v767 = vshrl.u32 %v766, 7
    %v768 = vsub.s32 %v650, %v767
    %v769 = vrot.slane %v761, %v768
    %v770 = vsel %vm655, %v769, %v765
    %v771 = vpack.c.b16 %v770, %v770
    %vm772 = vcmask 130048
    %v774 = vsel %vm772, %v771, 0
    %776 = vmatprep.subr.bf16.mxu0 0
    %777 = vmatpush1.bf16.msra.mxu0 %v347
    %778 = vmatprep.subr.bf16.mxu0 0
    %779 = vmatpush1.bf16.msra.mxu0 0
    %780 = vmatprep.subr.bf16.mxu0 0
    %781 = vmatpush1.bf16.msra.mxu0 0
    %782 = vmatprep.subr.bf16.mxu0 0
    %783 = vmatpush1.bf16.msra.mxu0 0
    %784 = vmatprep.subr.bf16.mxu0 0
    %785 = vmatpush1.bf16.msra.mxu0 0
    %786 = vmatprep.subr.bf16.mxu0 0
    %787 = vmatpush1.bf16.msra.mxu0 0
    %788 = vmatprep.subr.bf16.mxu0 0
    %789 = vmatpush1.bf16.msra.mxu0 0
    %790 = vmatprep.subr.bf16.mxu0 0
    %791 = vmatpush1.bf16.msra.mxu0 0
    %792 = vmatprep.subr.bf16.mxu0 0
    %793 = vmatpush1.bf16.msra.mxu0 0
    %794 = vmatprep.subr.bf16.mxu0 0
    %795 = vmatpush1.bf16.msra.mxu0 0
    %796 = vmatprep.subr.bf16.mxu0 0
    %797 = vmatpush1.bf16.msra.mxu0 0
    %798 = vmatprep.subr.bf16.mxu0 0
    %799 = vmatpush1.bf16.msra.mxu0 0
    %800 = vmatprep.subr.bf16.mxu0 0
    %801 = vmatpush1.bf16.msra.mxu0 0
    %802 = vmatprep.subr.bf16.mxu0 0
    %803 = vmatpush1.bf16.msra.mxu0 0
    %804 = vmatprep.subr.bf16.mxu0 0
    %805 = vmatpush1.bf16.msra.mxu0 0
    %806 = vmatprep.subr.bf16.mxu0 0
    %807 = vmatpush1.bf16.msra.mxu0 0
    %808 = vmatprep.mubr.bf16.mxu0 0
    %809 = vmatmul.mubr.bf16.gmra.mrb[0].mxu0 %v774
    %v810 = vpop.f32.mrb[0].mxu0
    %v811 = vadd.f32 0.0, %v810
    %v812 = vpop.f32.mrb[0].mxu0
    %v813 = vpop.f32.mrb[0].mxu0
    %v814 = vpop.f32.mrb[0].mxu0
    %815 = vdwg.mxu0
    %v817 = vunpack.c.l.b16 %v752
    %v818 = vunpack.c.h.b16 %v752
    %819 = vset.pattern.permute.xlu0 0
    %820 = vperm.xlu0 %819, %v817
    %v821 = vpop.permute.xlu0 %820
    %822 = vset.pattern.permute.xlu0 0
    %823 = vperm.xlu0 %822, %v818
    %v824 = vpop.permute.xlu0 %823
    %v825 = vlaneseq
    %v826 = vshrl.u32 %v825, 7
    %v827 = vsub.s32 %v645, %v826
    %v828 = vrot.slane %v821, %v827
    %v829 = vlaneseq
    %v830 = vshrl.u32 %v829, 7
    %v831 = vsub.s32 %v650, %v830
    %v832 = vrot.slane %v824, %v831
    %v833 = vsel %vm655, %v832, %v828
    %v834 = vpack.c.b16 %v833, %v833
    %v836 = vsel %vm772, %v834, 0
    %838 = vmatprep.subr.bf16.mxu0 0
    %839 = vmatpush1.bf16.msra.mxu0 %v348
    %840 = vmatprep.subr.bf16.mxu0 0
    %841 = vmatpush1.bf16.msra.mxu0 0
    %842 = vmatprep.subr.bf16.mxu0 0
    %843 = vmatpush1.bf16.msra.mxu0 0
    %844 = vmatprep.subr.bf16.mxu0 0
    %845 = vmatpush1.bf16.msra.mxu0 0
    %846 = vmatprep.subr.bf16.mxu0 0
    %847 = vmatpush1.bf16.msra.mxu0 0
    %848 = vmatprep.subr.bf16.mxu0 0
    %849 = vmatpush1.bf16.msra.mxu0 0
    %850 = vmatprep.subr.bf16.mxu0 0
    %851 = vmatpush1.bf16.msra.mxu0 0
    %852 = vmatprep.subr.bf16.mxu0 0
    %853 = vmatpush1.bf16.msra.mxu0 0
    %854 = vmatprep.subr.bf16.mxu0 0
    %855 = vmatpush1.bf16.msra.mxu0 0
    %856 = vmatprep.subr.bf16.mxu0 0
    %857 = vmatpush1.bf16.msra.mxu0 0
    %858 = vmatprep.subr.bf16.mxu0 0
    %859 = vmatpush1.bf16.msra.mxu0 0
    %860 = vmatprep.subr.bf16.mxu0 0
    %861 = vmatpush1.bf16.msra.mxu0 0
    %862 = vmatprep.subr.bf16.mxu0 0
    %863 = vmatpush1.bf16.msra.mxu0 0
    %864 = vmatprep.subr.bf16.mxu0 0
    %865 = vmatpush1.bf16.msra.mxu0 0
    %866 = vmatprep.subr.bf16.mxu0 0
    %867 = vmatpush1.bf16.msra.mxu0 0
    %868 = vmatprep.subr.bf16.mxu0 0
    %869 = vmatpush1.bf16.msra.mxu0 0
    %870 = vmatprep.mubr.bf16.mxu0 0
    %871 = vmatmul.mubr.bf16.gmra.mrb[0].mxu0 %v836
    %v872 = vpop.f32.mrb[0].mxu0
    %v873 = vadd.f32 0.0, %v872
    %v874 = vpop.f32.mrb[0].mxu0
    %v875 = vpop.f32.mrb[0].mxu0
    %v876 = vpop.f32.mrb[0].mxu0
    %877 = vdwg.mxu0
    %v878 = vld [vmem:[%s1] sm:$0x1]
    %v879 = vpack.c.bf16 %v811, %v811
    %v880 = vpack.c.bf16 %v873, %v873
    %v883 = vunpack.c.l.b16 %v879
    %v884 = vunpack.c.l.b16 %v880
    %v885 = vrot.slane %v884, 7
    %v886 = vsel %vm113, %v885, %v883
    %v887 = vpack.c.b16 %v886, %v886
    %v905 = vunpack.c.l.b16 %v463
    %v906 = vunpack.c.h.b16 %v463
    %v907 = vunpack.c.l.b16 %v464
    %v908 = vunpack.c.h.b16 %v464
    %v909 = vunpack.c.l.b16 %v465
    %v910 = vunpack.c.h.b16 %v465
    %v911 = vunpack.c.l.b16 %v466
    %v912 = vunpack.c.h.b16 %v466
    %v913 = vunpack.c.l.b16 %v467
    %v914 = vunpack.c.h.b16 %v467
    %v915 = vunpack.c.l.b16 %v468
    %v916 = vunpack.c.h.b16 %v468
    %v917 = vunpack.c.l.b16 %v469
    %v918 = vunpack.c.h.b16 %v469
    %v919 = vunpack.c.l.b16 %v470
    %v920 = vunpack.c.h.b16 %v470
    %v921 = vunpack.c.l.b16 %v471
    %v922 = vunpack.c.h.b16 %v471
    %v923 = vunpack.c.l.b16 %v472
    %v924 = vunpack.c.h.b16 %v472
    %v925 = vunpack.c.l.b16 %v473
    %v926 = vunpack.c.h.b16 %v473
    %v927 = vunpack.c.l.b16 %v474
    %v928 = vunpack.c.h.b16 %v474
    %v929 = vunpack.c.l.b16 %v475
    %v930 = vunpack.c.h.b16 %v475
    %v931 = vunpack.c.l.b16 %v476
    %v932 = vunpack.c.h.b16 %v476
    %v933 = vunpack.c.l.b16 %v477
    %v934 = vunpack.c.h.b16 %v477
    %v935 = vunpack.c.l.b16 %v478
    %v936 = vunpack.c.h.b16 %v478
    %v937 = vpack.c.b16 %v907, %v905
    %v938 = vpack.c.b16 %v908, %v906
    %v939 = vpack.c.b16 %v911, %v909
    %v940 = vpack.c.b16 %v912, %v910
    %v941 = vpack.c.b16 %v915, %v913
    %v942 = vpack.c.b16 %v916, %v914
    %v943 = vpack.c.b16 %v919, %v917
    %v944 = vpack.c.b16 %v920, %v918
    %v945 = vpack.c.b16 %v923, %v921
    %v946 = vpack.c.b16 %v924, %v922
    %v947 = vpack.c.b16 %v927, %v925
    %v948 = vpack.c.b16 %v928, %v926
    %v949 = vpack.c.b16 %v931, %v929
    %v950 = vpack.c.b16 %v932, %v930
    %v951 = vpack.c.b16 %v935, %v933
    %v952 = vpack.c.b16 %v936, %v934
    %969 = vmatprep.subr.bf16.mxu0 %v938
    %970 = vmatpush1.bf16.msra.mxu0 %v937
    %971 = vmatprep.subr.bf16.mxu0 %v940
    %972 = vmatpush1.bf16.msra.mxu0 %v939
    %973 = vmatprep.subr.bf16.mxu0 %v942
    %974 = vmatpush1.bf16.msra.mxu0 %v941
    %975 = vmatprep.subr.bf16.mxu0 %v944
    %976 = vmatpush1.bf16.msra.mxu0 %v943
    %977 = vmatprep.subr.bf16.mxu0 %v946
    %978 = vmatpush1.bf16.msra.mxu0 %v945
    %979 = vmatprep.subr.bf16.mxu0 %v948
    %980 = vmatpush1.bf16.msra.mxu0 %v947
    %981 = vmatprep.subr.bf16.mxu0 %v950
    %982 = vmatpush1.bf16.msra.mxu0 %v949
    %983 = vmatprep.subr.bf16.mxu0 %v952
    %984 = vmatpush1.bf16.msra.mxu0 %v951
    %985 = vmatprep.subr.bf16.mxu0 0
    %986 = vmatpush1.bf16.msra.mxu0 0
    %987 = vmatprep.subr.bf16.mxu0 0
    %988 = vmatpush1.bf16.msra.mxu0 0
    %989 = vmatprep.subr.bf16.mxu0 0
    %990 = vmatpush1.bf16.msra.mxu0 0
    %991 = vmatprep.subr.bf16.mxu0 0
    %992 = vmatpush1.bf16.msra.mxu0 0
    %993 = vmatprep.subr.bf16.mxu0 0
    %994 = vmatpush1.bf16.msra.mxu0 0
    %995 = vmatprep.subr.bf16.mxu0 0
    %996 = vmatpush1.bf16.msra.mxu0 0
    %997 = vmatprep.subr.bf16.mxu0 0
    %998 = vmatpush1.bf16.msra.mxu0 0
    %999 = vmatprep.subr.bf16.mxu0 0
    %1000 = vmatpush1.bf16.msra.mxu0 0
    %1001 = vmatprep.mubr.bf16.mxu0 0
    %1002 = vmatmul.mubr.bf16.gmra.mrb[0].mxu0 %v887
    %v1003 = vpop.f32.mrb[0].mxu0
    %v1004 = vadd.f32 0.0, %v1003
    %v1005 = vpop.f32.mrb[0].mxu0
    %v1006 = vadd.f32 0.0, %v1005
    %v1007 = vpop.f32.mrb[0].mxu0
    %v1008 = vpop.f32.mrb[0].mxu0
    %1009 = vdwg.mxu0
    %v1014 = vunpack.c.l.b16 %v459
    %v1015 = vunpack.c.h.b16 %v459
    %v1016 = vunpack.c.l.b16 %v460
    %v1017 = vunpack.c.h.b16 %v460
    %v1018 = vunpack.c.l.b16 %v461
    %v1019 = vunpack.c.h.b16 %v461
    %v1020 = vunpack.c.l.b16 %v462
    %v1021 = vunpack.c.h.b16 %v462
    %v1022 = vpack.c.b16 %v1016, %v1014
    %v1023 = vpack.c.b16 %v1017, %v1015
    %v1024 = vpack.c.b16 %v1020, %v1018
    %v1025 = vpack.c.b16 %v1021, %v1019
    %v1031 = vsel %vm614, %v878, 0
    %1033 = vmatprep.subr.bf16.mxu0 %v1023
    %1034 = vmatpush1.bf16.msra.mxu0 %v1022
    %1035 = vmatprep.subr.bf16.mxu0 %v1025
    %1036 = vmatpush1.bf16.msra.mxu0 %v1024
    %1037 = vmatprep.subr.bf16.mxu0 0
    %1038 = vmatpush1.bf16.msra.mxu0 0
    %1039 = vmatprep.subr.bf16.mxu0 0
    %1040 = vmatpush1.bf16.msra.mxu0 0
    %1041 = vmatprep.subr.bf16.mxu0 0
    %1042 = vmatpush1.bf16.msra.mxu0 0
    %1043 = vmatprep.subr.bf16.mxu0 0
    %1044 = vmatpush1.bf16.msra.mxu0 0
    %1045 = vmatprep.subr.bf16.mxu0 0
    %1046 = vmatpush1.bf16.msra.mxu0 0
    %1047 = vmatprep.subr.bf16.mxu0 0
    %1048 = vmatpush1.bf16.msra.mxu0 0
    %1049 = vmatprep.subr.bf16.mxu0 0
    %1050 = vmatpush1.bf16.msra.mxu0 0
    %1051 = vmatprep.subr.bf16.mxu0 0
    %1052 = vmatpush1.bf16.msra.mxu0 0
    %1053 = vmatprep.subr.bf16.mxu0 0
    %1054 = vmatpush1.bf16.msra.mxu0 0
    %1055 = vmatprep.subr.bf16.mxu0 0
    %1056 = vmatpush1.bf16.msra.mxu0 0
    %1057 = vmatprep.subr.bf16.mxu0 0
    %1058 = vmatpush1.bf16.msra.mxu0 0
    %1059 = vmatprep.subr.bf16.mxu0 0
    %1060 = vmatpush1.bf16.msra.mxu0 0
    %1061 = vmatprep.subr.bf16.mxu0 0
    %1062 = vmatpush1.bf16.msra.mxu0 0
    %1063 = vmatprep.subr.bf16.mxu0 0
    %1064 = vmatpush1.bf16.msra.mxu0 0
    %1065 = vmatprep.mubr.bf16.mxu0 0
    %1066 = vmatmul.mubr.bf16.gmra.mrb[0].mxu0 %v1031
    %v1067 = vpop.f32.mrb[0].mxu0
    %v1068 = vadd.f32 %v1004, %v1067
    %v1069 = vpop.f32.mrb[0].mxu0
    %v1070 = vadd.f32 %v1006, %v1069
    %v1071 = vpop.f32.mrb[0].mxu0
    %v1072 = vpop.f32.mrb[0].mxu0
    %1073 = vdwg.mxu0
    %v1082 = vunpack.c.l.b16 %v479
    %v1083 = vunpack.c.h.b16 %v479
    %v1084 = vunpack.c.l.b16 %v480
    %v1085 = vunpack.c.h.b16 %v480
    %v1086 = vunpack.c.l.b16 %v481
    %v1087 = vunpack.c.h.b16 %v481
    %v1088 = vunpack.c.l.b16 %v482
    %v1089 = vunpack.c.h.b16 %v482
    %v1090 = vunpack.c.l.b16 %v483
    %v1091 = vunpack.c.h.b16 %v483
    %v1092 = vunpack.c.l.b16 %v484
    %v1093 = vunpack.c.h.b16 %v484
    %v1094 = vunpack.c.l.b16 %v485
    %v1095 = vunpack.c.h.b16 %v485
    %v1096 = vunpack.c.l.b16 %v486
    %v1097 = vunpack.c.h.b16 %v486
    %v1098 = vpack.c.b16 %v1084, %v1082
    %v1099 = vpack.c.b16 %v1085, %v1083
    %v1100 = vpack.c.b16 %v1088, %v1086
    %v1101 = vpack.c.b16 %v1089, %v1087
    %v1102 = vpack.c.b16 %v1092, %v1090
    %v1103 = vpack.c.b16 %v1093, %v1091
    %v1104 = vpack.c.b16 %v1096, %v1094
    %v1105 = vpack.c.b16 %v1097, %v1095
    %1114 = vmatprep.subr.bf16.mxu0 %v1099
    %1115 = vmatpush1.bf16.msra.mxu0 %v1098
    %1116 = vmatprep.subr.bf16.mxu0 %v1101
    %1117 = vmatpush1.bf16.msra.mxu0 %v1100
    %1118 = vmatprep.subr.bf16.mxu0 %v1103
    %1119 = vmatpush1.bf16.msra.mxu0 %v1102
    %1120 = vmatprep.subr.bf16.mxu0 %v1105
    %1121 = vmatpush1.bf16.msra.mxu0 %v1104
    %1122 = vmatprep.subr.bf16.mxu0 0
    %1123 = vmatpush1.bf16.msra.mxu0 0
    %1124 = vmatprep.subr.bf16.mxu0 0
    %1125 = vmatpush1.bf16.msra.mxu0 0
    %1126 = vmatprep.subr.bf16.mxu0 0
    %1127 = vmatpush1.bf16.msra.mxu0 0
    %1128 = vmatprep.subr.bf16.mxu0 0
    %1129 = vmatpush1.bf16.msra.mxu0 0
    %1130 = vmatprep.subr.bf16.mxu0 0
    %1131 = vmatpush1.bf16.msra.mxu0 0
    %1132 = vmatprep.subr.bf16.mxu0 0
    %1133 = vmatpush1.bf16.msra.mxu0 0
    %1134 = vmatprep.subr.bf16.mxu0 0
    %1135 = vmatpush1.bf16.msra.mxu0 0
    %1136 = vmatprep.subr.bf16.mxu0 0
    %1137 = vmatpush1.bf16.msra.mxu0 0
    %1138 = vmatprep.subr.bf16.mxu0 0
    %1139 = vmatpush1.bf16.msra.mxu0 0
    %1140 = vmatprep.subr.bf16.mxu0 0
    %1141 = vmatpush1.bf16.msra.mxu0 0
    %1142 = vmatprep.subr.bf16.mxu0 0
    %1143 = vmatpush1.bf16.msra.mxu0 0
    %1144 = vmatprep.subr.bf16.mxu0 0
    %1145 = vmatpush1.bf16.msra.mxu0 0
    %1146 = vmatprep.mubr.bf16.mxu0 0
    %1147 = vmatmul.mubr.bf16.gmra.mrb[0].mxu0 %v521
    %v1148 = vpop.f32.mrb[0].mxu0
    %v1149 = vadd.f32 0.0, %v1148
    %v1150 = vpop.f32.mrb[0].mxu0
    %v1151 = vadd.f32 0.0, %v1150
    %v1152 = vpop.f32.mrb[0].mxu0
    %v1153 = vpop.f32.mrb[0].mxu0
    %1154 = vdwg.mxu0
    %v1155 = vadd.f32 %v1068, %v1149
    %v1156 = vadd.f32 %v1070, %v1151
    %v1158 = vlaneseq
    %v1159 = vshrl.u32 %v1158, 7
    %v1160 = vsub.s32 0, %v1159
    %v1161 = vrot.slane %v487, %v1160
    %v1162 = vlaneseq
    %v1163 = vshrl.u32 %v1162, 7
    %v1164 = vsub.s32 1, %v1163
    %v1165 = vrot.slane %v487, %v1164
    %v1168 = vadd.f32 %v1155, %v1161
    %v1169 = vadd.f32 %v1156, %v1165
    %v1170 = vxor.u32 %v1168, 2147483648
    %v1171 = vmul.f32 %v1170, 1.442695
    %v1172 = vpow.pop %v1171
    %v1173 = vadd.f32 %v1172, 1.0
    %v1174 = vrcp.pop %v1173
    %v1175 = vmul.f32 1.0, %v1174
    %v1176 = vtanh.pop %v1169
    %v1177 = vxor.u32 %v1169, 2147483648
    %v1178 = vmul.f32 %v1177, 1.442695
    %v1179 = vpow.pop %v1178
    %v1180 = vadd.f32 %v1179, 1.0
    %v1181 = vrcp.pop %v1180
    %v1182 = vmul.f32 1.0, %v1181
    %1184 = vrot.lane.b32.xlu0 %v311, 64
    %v1185 = vpop.permute.xlu0 %1184
    %v1187 = vmul.f32 %v1175, %v1185
    %v1188 = vmul.f32 %v1175, %v1176
    %1190 = vrot.lane.b32.xlu0 %v1188, 64
    %v1191 = vpop.permute.xlu0 %1190
    %v1193 = vadd.f32 %v1187, %v1191
    %v1194 = vtanh.pop %v1193
    %v1195 = vmul.f32 %v1182, %v1194
    %v1196 = vpack.c.bf16 %v1195, %v1195
    %v1199 = vunpack.c.l.s4 1966171168
    %v1200 = vunpack.c.0.s8 %v1199
    %v1201 = vlaneseq
    %v1202 = vshrl.u32 %v1201, 7
    %v1203 = vsub.s32 %v1200, %v1202
    %v1204 = vrot.slane %v1196, %v1203
    %v1206 = vunpack.c.l.s4 1966171168
    %v1207 = vunpack.c.0.s8 %v1206
    %v1208 = vlaneseq
    %v1209 = vshrl.u32 %v1208, 7
    %v1210 = vsub.s32 %v1207, %v1209
    %v1211 = vrot.slane %v1204, %v1210
    %1212 = vrot.lane.b32.xlu0 %v1211, 64
    %v1213 = vpop.permute.xlu0 %1212
    %vm1215 = vcmask 516096
    %1216 = vst.msk [vmem:[%s16] sm:$0x1] %vm1215, %v1213
    %1221 = vset.pattern.permute.xlu0 0
    %1222 = vperm.xlu0 %1221, %v746
    %v1223 = vpop.permute.xlu0 %1222
    %1224 = vset.pattern.permute.xlu0 0
    %1225 = vperm.xlu0 %1224, %v747
    %v1226 = vpop.permute.xlu0 %1225
    %1227 = vset.pattern.permute.xlu0 0
    %1228 = vperm.xlu0 %1227, %v749
    %v1229 = vpop.permute.xlu0 %1228
    %1230 = vset.pattern.permute.xlu0 0
    %1231 = vperm.xlu0 %1230, %v750
    %v1232 = vpop.permute.xlu0 %1231
    %v1233 = vlaneseq
    %v1234 = vshrl.u32 %v1233, 7
    %v1235 = vsub.s32 %v645, %v1234
    %v1236 = vrot.slane %v1223, %v1235
    %v1237 = vlaneseq
    %v1238 = vshrl.u32 %v1237, 7
    %v1239 = vsub.s32 %v650, %v1238
    %v1240 = vrot.slane %v1226, %v1239
    %v1241 = vsel %vm655, %v1240, %v1236
    %v1242 = vlaneseq
    %v1243 = vshrl.u32 %v1242, 7
    %v1244 = vsub.s32 %v645, %v1243
    %v1245 = vrot.slane %v1229, %v1244
    %v1246 = vlaneseq
    %v1247 = vshrl.u32 %v1246, 7
    %v1248 = vsub.s32 %v650, %v1247
    %v1249 = vrot.slane %v1232, %v1248
    %v1250 = vsel %vm655, %v1249, %v1245
    %v1251 = vsel %vm113, %v1250, %v1241
    %1253 = vst.msk [vmem:[#allocation3] sm:$0x3] %vm668, %v1251
    %1254 = vrot.lane.b32.xlu0 %v1196, 64
    %v1255 = vpop.permute.xlu0 %1254
    %v1257 = vsel %vm519, %v1255, 0
    %1259 = vmatprep.subr.bf16.mxu0 0
    %1260 = vmatpush1.bf16.msra.mxu0 %v511
    %1261 = vmatprep.subr.bf16.mxu0 0
    %1262 = vmatpush1.bf16.msra.mxu0 %v512
    %1263 = vmatprep.subr.bf16.mxu0 0
    %1264 = vmatpush1.bf16.msra.mxu0 %v513
    %1265 = vmatprep.subr.bf16.mxu0 0
    %1266 = vmatpush1.bf16.msra.mxu0 %v514
    %1267 = vmatprep.subr.bf16.mxu0 0
    %1268 = vmatpush1.bf16.msra.mxu0 0
    %1269 = vmatprep.subr.bf16.mxu0 0
    %1270 = vmatpush1.bf16.msra.mxu0 0
    %1271 = vmatprep.subr.bf16.mxu0 0
    %1272 = vmatpush1.bf16.msra.mxu0 0
    %1273 = vmatprep.subr.bf16.mxu0 0
    %1274 = vmatpush1.bf16.msra.mxu0 0
    %1275 = vmatprep.subr.bf16.mxu0 0
    %1276 = vmatpush1.bf16.msra.mxu0 0
    %1277 = vmatprep.subr.bf16.mxu0 0
    %1278 = vmatpush1.bf16.msra.mxu0 0
    %1279 = vmatprep.subr.bf16.mxu0 0
    %1280 = vmatpush1.bf16.msra.mxu0 0
    %1281 = vmatprep.subr.bf16.mxu0 0
    %1282 = vmatpush1.bf16.msra.mxu0 0
    %1283 = vmatprep.subr.bf16.mxu0 0
    %1284 = vmatpush1.bf16.msra.mxu0 0
    %1285 = vmatprep.subr.bf16.mxu0 0
    %1286 = vmatpush1.bf16.msra.mxu0 0
    %1287 = vmatprep.subr.bf16.mxu0 0
    %1288 = vmatpush1.bf16.msra.mxu0 0
    %1289 = vmatprep.subr.bf16.mxu0 0
    %1290 = vmatpush1.bf16.msra.mxu0 0
    %1291 = vmatprep.mubr.bf16.mxu0 0
    %1292 = vmatmul.mubr.bf16.gmra.mrb[0].mxu0 %v1257
    %v1293 = vpop.f32.mrb[0].mxu0
    %v1294 = vadd.f32 %v493, %v1293
    %v1295 = vpop.f32.mrb[0].mxu0
    %v1296 = vpop.f32.mrb[0].mxu0
    %v1297 = vpop.f32.mrb[0].mxu0
    %1298 = vdwg.mxu0
    %v1301 = vunpack.c.l.s4 1966171168
    %v1302 = vunpack.c.0.s8 %v1301
    %v1303 = vlaneseq
    %v1304 = vshrl.u32 %v1303, 7
    %v1305 = vsub.s32 %v1302, %v1304
    %v1306 = vrot.slane %v1294, %v1305
    %v1307 = vcombine.high %v1306, %v1306
    %v1309 = vunpack.c.l.s4 1966171168
    %v1310 = vunpack.c.0.s8 %v1309
    %v1311 = vlaneseq
    %v1312 = vshrl.u32 %v1311, 7
    %v1313 = vsub.s32 %v1310, %v1312
    %v1314 = vrot.slane %v1306, %v1313
    %v1316 = vunpack.c.l.s4 1966171168
    %v1317 = vunpack.c.0.s8 %v1316
    %v1318 = vlaneseq
    %v1319 = vshrl.u32 %v1318, 7
    %v1320 = vsub.s32 %v1317, %v1319
    %v1321 = vrot.slane %v1307, %v1320
    %v1322 = vlaneseq
    %v1323 = vshrl.u32 %v1322, 7
    %v1324 = vsub.s32 0, %v1323
    %v1325 = vrot.slane %v1314, %v1324
    %v1326 = vlaneseq
    %v1327 = vshrl.u32 %v1326, 7
    %v1328 = vsub.s32 0, %v1327
    %v1329 = vrot.slane %v1321, %v1328
    %v1332 = vadd.f32 %v434, %v1325
    %v1333 = vadd.f32 %v437, %v1325
    %v1334 = vadd.f32 %v442, %v1329
    %v1335 = vadd.f32 %v445, %v1329
    %v1336 = vtanh.pop %v1332
    %v1337 = vtanh.pop %v1333
    %v1338 = vtanh.pop %v1334
    %v1339 = vtanh.pop %v1335
    %v1340 = vmul.f32 %v1336, %v608
    %v1341 = vmul.f32 %v1337, %v608
    %v1342 = vmul.f32 %v1338, %v608
    %v1343 = vmul.f32 %v1339, %v608
    %v1344 = vsel %vm614, %v1340, 0.0
    %1345 = vadd.xlane.f32.xlu0 %v1344
    %v1346 = vpop.xlane.xlu0 %1345
    %v1347 = vsel %vm614, %v1341, 0.0
    %1348 = vadd.xlane.f32.xlu0 %v1347
    %v1349 = vpop.xlane.xlu0 %1348
    %v1350 = vsel %vm614, %v1342, 0.0
    %1351 = vadd.xlane.f32.xlu0 %v1350
    %v1352 = vpop.xlane.xlu0 %1351
    %v1353 = vsel %vm614, %v1343, 0.0
    %1354 = vadd.xlane.f32.xlu0 %v1353
    %v1355 = vpop.xlane.xlu0 %1354
    %v1356 = vadd.f32 %v1346, %v634
    %v1357 = vadd.f32 %v1349, %v634
    %v1358 = vadd.f32 %v1352, %v634
    %v1359 = vadd.f32 %v1355, %v634
    %v1364 = vlaneseq
    %v1365 = vshrl.u32 %v1364, 7
    %v1366 = vsub.s32 %v645, %v1365
    %v1367 = vrot.slane %v1356, %v1366
    %v1368 = vlaneseq
    %v1369 = vshrl.u32 %v1368, 7
    %v1370 = vsub.s32 %v650, %v1369
    %v1371 = vrot.slane %v1357, %v1370
    %v1372 = vsel %vm655, %v1371, %v1367
    %v1373 = vlaneseq
    %v1374 = vshrl.u32 %v1373, 7
    %v1375 = vsub.s32 %v645, %v1374
    %v1376 = vrot.slane %v1358, %v1375
    %v1377 = vlaneseq
    %v1378 = vshrl.u32 %v1377, 7
    %v1379 = vsub.s32 %v650, %v1378
    %v1380 = vrot.slane %v1359, %v1379
    %v1381 = vsel %vm655, %v1380, %v1376
    %v1382 = vsel %vm113, %v1381, %v1372
    %v1384 = vsel %vm668, %v1382, -inf
    %1385 = vmax.xlane.f32.xlu0 %v1384
    %v1386 = vpop.xlane.xlu0 %1385
    %v1388 = vlaneseq
    %v1389 = vshrl.u32 %v1388, 7
    %v1390 = vsub.s32 0, %v1389
    %v1391 = vrot.slane %v1386, %v1390
    %v1392 = vlaneseq
    %v1393 = vshrl.u32 %v1392, 7
    %v1394 = vsub.s32 1, %v1393
    %v1395 = vrot.slane %v1386, %v1394
    %v1398 = vsub.f32 %v1356, %v1391
    %v1399 = vsub.f32 %v1357, %v1391
    %v1400 = vsub.f32 %v1358, %v1395
    %v1401 = vsub.f32 %v1359, %v1395
    %v1402 = vmul.f32 %v1398, 1.442695
    %v1403 = vpow.pop %v1402
    %v1404 = vmul.f32 %v1399, 1.442695
    %v1405 = vpow.pop %v1404
    %v1406 = vmul.f32 %v1400, 1.442695
    %v1407 = vpow.pop %v1406
    %v1408 = vmul.f32 %v1401, 1.442695
    %v1409 = vpow.pop %v1408
    %1414 = vset.pattern.permute.xlu0 0
    %1415 = vperm.xlu0 %1414, %v1403
    %v1416 = vpop.permute.xlu0 %1415
    %1417 = vset.pattern.permute.xlu0 0
    %1418 = vperm.xlu0 %1417, %v1405
    %v1419 = vpop.permute.xlu0 %1418
    %1420 = vset.pattern.permute.xlu0 0
    %1421 = vperm.xlu0 %1420, %v1407
    %v1422 = vpop.permute.xlu0 %1421
    %1423 = vset.pattern.permute.xlu0 0
    %1424 = vperm.xlu0 %1423, %v1409
    %v1425 = vpop.permute.xlu0 %1424
    %v1426 = vlaneseq
    %v1427 = vshrl.u32 %v1426, 7
    %v1428 = vsub.s32 %v645, %v1427
    %v1429 = vrot.slane %v1416, %v1428
    %v1430 = vlaneseq
    %v1431 = vshrl.u32 %v1430, 7
    %v1432 = vsub.s32 %v650, %v1431
    %v1433 = vrot.slane %v1419, %v1432
    %v1434 = vsel %vm655, %v1433, %v1429
    %v1435 = vlaneseq
    %v1436 = vshrl.u32 %v1435, 7
    %v1437 = vsub.s32 %v645, %v1436
    %v1438 = vrot.slane %v1422, %v1437
    %v1439 = vlaneseq
    %v1440 = vshrl.u32 %v1439, 7
    %v1441 = vsub.s32 %v650, %v1440
    %v1442 = vrot.slane %v1425, %v1441
    %v1443 = vsel %vm655, %v1442, %v1438
    %v1444 = vsel %vm113, %v1443, %v1434
    %v1446 = vsel %vm668, %v1444, 0.0
    %1447 = vadd.xlane.f32.xlu0 %v1446
    %v1448 = vpop.xlane.xlu0 %1447
    %v1450 = vlaneseq
    %v1451 = vshrl.u32 %v1450, 7
    %v1452 = vsub.s32 0, %v1451
    %v1453 = vrot.slane %v1448, %v1452
    %v1454 = vlaneseq
    %v1455 = vshrl.u32 %v1454, 7
    %v1456 = vsub.s32 1, %v1455
    %v1457 = vrot.slane %v1448, %v1456
    %v1460 = vrcp.pop %v1453
    %v1461 = vmul.f32 %v1403, %v1460
    %v1462 = vmul.f32 %v1405, %v1460
    %v1463 = vrcp.pop %v1457
    %v1464 = vmul.f32 %v1407, %v1463
    %v1465 = vmul.f32 %v1409, %v1463
    %v1466 = vpack.c.bf16 %v1462, %v1461
    %v1467 = vpack.c.bf16 %v1465, %v1464
    %v1469 = vunpack.c.l.b16 %v1466
    %v1470 = vunpack.c.h.b16 %v1466
    %1471 = vset.pattern.permute.xlu0 0
    %1472 = vperm.xlu0 %1471, %v1469
    %v1473 = vpop.permute.xlu0 %1472
    %1474 = vset.pattern.permute.xlu0 0
    %1475 = vperm.xlu0 %1474, %v1470
    %v1476 = vpop.permute.xlu0 %1475
    %v1477 = vlaneseq
    %v1478 = vshrl.u32 %v1477, 7
    %v1479 = vsub.s32 %v645, %v1478
    %v1480 = vrot.slane %v1473, %v1479
    %v1481 = vlaneseq
    %v1482 = vshrl.u32 %v1481, 7
    %v1483 = vsub.s32 %v650, %v1482
    %v1484 = vrot.slane %v1476, %v1483
    %v1485 = vsel %vm655, %v1484, %v1480
    %v1486 = vpack.c.b16 %v1485, %v1485
    %v1488 = vsel %vm772, %v1486, 0
    %1490 = vmatprep.subr.bf16.mxu0 0
    %1491 = vmatpush1.bf16.msra.mxu0 %v347
    %1492 = vmatprep.subr.bf16.mxu0 0
    %1493 = vmatpush1.bf16.msra.mxu0 0
    %1494 = vmatprep.subr.bf16.mxu0 0
    %1495 = vmatpush1.bf16.msra.mxu0 0
    %1496 = vmatprep.subr.bf16.mxu0 0
    %1497 = vmatpush1.bf16.msra.mxu0 0
    %1498 = vmatprep.subr.bf16.mxu0 0
    %1499 = vmatpush1.bf16.msra.mxu0 0
    %1500 = vmatprep.subr.bf16.mxu0 0
    %1501 = vmatpush1.bf16.msra.mxu0 0
    %1502 = vmatprep.subr.bf16.mxu0 0
    %1503 = vmatpush1.bf16.msra.mxu0 0
    %1504 = vmatprep.subr.bf16.mxu0 0
    %1505 = vmatpush1.bf16.msra.mxu0 0
    %1506 = vmatprep.subr.bf16.mxu0 0
    %1507 = vmatpush1.bf16.msra.mxu0 0
    %1508 = vmatprep.subr.bf16.mxu0 0
    %1509 = vmatpush1.bf16.msra.mxu0 0
    %1510 = vmatprep.subr.bf16.mxu0 0
    %1511 = vmatpush1.bf16.msra.mxu0 0
    %1512 = vmatprep.subr.bf16.mxu0 0
    %1513 = vmatpush1.bf16.msra.mxu0 0
    %1514 = vmatprep.subr.bf16.mxu0 0
    %1515 = vmatpush1.bf16.msra.mxu0 0
    %1516 = vmatprep.subr.bf16.mxu0 0
    %1517 = vmatpush1.bf16.msra.mxu0 0
    %1518 = vmatprep.subr.bf16.mxu0 0
    %1519 = vmatpush1.bf16.msra.mxu0 0
    %1520 = vmatprep.subr.bf16.mxu0 0
    %1521 = vmatpush1.bf16.msra.mxu0 0
    %1522 = vmatprep.mubr.bf16.mxu0 0
    %1523 = vmatmul.mubr.bf16.gmra.mrb[0].mxu0 %v1488
    %v1524 = vpop.f32.mrb[0].mxu0
    %v1525 = vadd.f32 0.0, %v1524
    %v1526 = vpop.f32.mrb[0].mxu0
    %v1527 = vpop.f32.mrb[0].mxu0
    %v1528 = vpop.f32.mrb[0].mxu0
    %1529 = vdwg.mxu0
    %v1531 = vunpack.c.l.b16 %v1467
    %v1532 = vunpack.c.h.b16 %v1467
    %1533 = vset.pattern.permute.xlu0 0
    %1534 = vperm.xlu0 %1533, %v1531
    %v1535 = vpop.permute.xlu0 %1534
    %1536 = vset.pattern.permute.xlu0 0
    %1537 = vperm.xlu0 %1536, %v1532
    %v1538 = vpop.permute.xlu0 %1537
    %v1539 = vlaneseq
    %v1540 = vshrl.u32 %v1539, 7
    %v1541 = vsub.s32 %v645, %v1540
    %v1542 = vrot.slane %v1535, %v1541
    %v1543 = vlaneseq
    %v1544 = vshrl.u32 %v1543, 7
    %v1545 = vsub.s32 %v650, %v1544
    %v1546 = vrot.slane %v1538, %v1545
    %v1547 = vsel %vm655, %v1546, %v1542
    %v1548 = vpack.c.b16 %v1547, %v1547
    %v1550 = vsel %vm772, %v1548, 0
    %1552 = vmatprep.subr.bf16.mxu0 0
    %1553 = vmatpush1.bf16.msra.mxu0 %v348
    %1554 = vmatprep.subr.bf16.mxu0 0
    %1555 = vmatpush1.bf16.msra.mxu0 0
    %1556 = vmatprep.subr.bf16.mxu0 0
    %1557 = vmatpush1.bf16.msra.mxu0 0
    %1558 = vmatprep.subr.bf16.mxu0 0
    %1559 = vmatpush1.bf16.msra.mxu0 0
    %1560 = vmatprep.subr.bf16.mxu0 0
    %1561 = vmatpush1.bf16.msra.mxu0 0
    %1562 = vmatprep.subr.bf16.mxu0 0
    %1563 = vmatpush1.bf16.msra.mxu0 0
    %1564 = vmatprep.subr.bf16.mxu0 0
    %1565 = vmatpush1.bf16.msra.mxu0 0
    %1566 = vmatprep.subr.bf16.mxu0 0
    %1567 = vmatpush1.bf16.msra.mxu0 0
    %1568 = vmatprep.subr.bf16.mxu0 0
    %1569 = vmatpush1.bf16.msra.mxu0 0
    %1570 = vmatprep.subr.bf16.mxu0 0
    %1571 = vmatpush1.bf16.msra.mxu0 0
    %1572 = vmatprep.subr.bf16.mxu0 0
    %1573 = vmatpush1.bf16.msra.mxu0 0
    %1574 = vmatprep.subr.bf16.mxu0 0
    %1575 = vmatpush1.bf16.msra.mxu0 0
    %1576 = vmatprep.subr.bf16.mxu0 0
    %1577 = vmatpush1.bf16.msra.mxu0 0
    %1578 = vmatprep.subr.bf16.mxu0 0
    %1579 = vmatpush1.bf16.msra.mxu0 0
    %1580 = vmatprep.subr.bf16.mxu0 0
    %1581 = vmatpush1.bf16.msra.mxu0 0
    %1582 = vmatprep.subr.bf16.mxu0 0
    %1583 = vmatpush1.bf16.msra.mxu0 0
    %1584 = vmatprep.mubr.bf16.mxu0 0
    %1585 = vmatmul.mubr.bf16.gmra.mrb[0].mxu0 %v1550
    %v1586 = vpop.f32.mrb[0].mxu0
    %v1587 = vadd.f32 0.0, %v1586
    %v1588 = vpop.f32.mrb[0].mxu0
    %v1589 = vpop.f32.mrb[0].mxu0
    %v1590 = vpop.f32.mrb[0].mxu0
    %1591 = vdwg.mxu0
    %s1592 = scalar_lea.vmem %s1, 1
    %v1593 = vld [vmem:[%s1592] sm:$0x1]
    %v1594 = vpack.c.bf16 %v1525, %v1525
    %v1595 = vpack.c.bf16 %v1587, %v1587
    %v1598 = vunpack.c.l.b16 %v1594
    %v1599 = vunpack.c.l.b16 %v1595
    %v1600 = vrot.slane %v1599, 7
    %v1601 = vsel %vm113, %v1600, %v1598
    %v1602 = vpack.c.b16 %v1601, %v1601
    %1604 = vmatprep.subr.bf16.mxu0 %v938
    %1605 = vmatpush1.bf16.msra.mxu0 %v937
    %1606 = vmatprep.subr.bf16.mxu0 %v940
    %1607 = vmatpush1.bf16.msra.mxu0 %v939
    %1608 = vmatprep.subr.bf16.mxu0 %v942
    %1609 = vmatpush1.bf16.msra.mxu0 %v941
    %1610 = vmatprep.subr.bf16.mxu0 %v944
    %1611 = vmatpush1.bf16.msra.mxu0 %v943
    %1612 = vmatprep.subr.bf16.mxu0 %v946
    %1613 = vmatpush1.bf16.msra.mxu0 %v945
    %1614 = vmatprep.subr.bf16.mxu0 %v948
    %1615 = vmatpush1.bf16.msra.mxu0 %v947
    %1616 = vmatprep.subr.bf16.mxu0 %v950
    %1617 = vmatpush1.bf16.msra.mxu0 %v949
    %1618 = vmatprep.subr.bf16.mxu0 %v952
    %1619 = vmatpush1.bf16.msra.mxu0 %v951
    %1620 = vmatprep.subr.bf16.mxu0 0
    %1621 = vmatpush1.bf16.msra.mxu0 0
    %1622 = vmatprep.subr.bf16.mxu0 0
    %1623 = vmatpush1.bf16.msra.mxu0 0
    %1624 = vmatprep.subr.bf16.mxu0 0
    %1625 = vmatpush1.bf16.msra.mxu0 0
    %1626 = vmatprep.subr.bf16.mxu0 0
    %1627 = vmatpush1.bf16.msra.mxu0 0
    %1628 = vmatprep.subr.bf16.mxu0 0
    %1629 = vmatpush1.bf16.msra.mxu0 0
    %1630 = vmatprep.subr.bf16.mxu0 0
    %1631 = vmatpush1.bf16.msra.mxu0 0
    %1632 = vmatprep.subr.bf16.mxu0 0
    %1633 = vmatpush1.bf16.msra.mxu0 0
    %1634 = vmatprep.subr.bf16.mxu0 0
    %1635 = vmatpush1.bf16.msra.mxu0 0
    %1636 = vmatprep.mubr.bf16.mxu0 0
    %1637 = vmatmul.mubr.bf16.gmra.mrb[0].mxu0 %v1602
    %v1638 = vpop.f32.mrb[0].mxu0
    %v1639 = vadd.f32 0.0, %v1638
    %v1640 = vpop.f32.mrb[0].mxu0
    %v1641 = vadd.f32 0.0, %v1640
    %v1642 = vpop.f32.mrb[0].mxu0
    %v1643 = vpop.f32.mrb[0].mxu0
    %1644 = vdwg.mxu0
    %v1646 = vsel %vm614, %v1593, 0
    %1648 = vmatprep.subr.bf16.mxu0 %v1023
    %1649 = vmatpush1.bf16.msra.mxu0 %v1022
    %1650 = vmatprep.subr.bf16.mxu0 %v1025
    %1651 = vmatpush1.bf16.msra.mxu0 %v1024
    %1652 = vmatprep.subr.bf16.mxu0 0
    %1653 = vmatpush1.bf16.msra.mxu0 0
    %1654 = vmatprep.subr.bf16.mxu0 0
    %1655 = vmatpush1.bf16.msra.mxu0 0
    %1656 = vmatprep.subr.bf16.mxu0 0
    %1657 = vmatpush1.bf16.msra.mxu0 0
    %1658 = vmatprep.subr.bf16.mxu0 0
    %1659 = vmatpush1.bf16.msra.mxu0 0
    %1660 = vmatprep.subr.bf16.mxu0 0
    %1661 = vmatpush1.bf16.msra.mxu0 0
    %1662 = vmatprep.subr.bf16.mxu0 0
    %1663 = vmatpush1.bf16.msra.mxu0 0
    %1664 = vmatprep.subr.bf16.mxu0 0
    %1665 = vmatpush1.bf16.msra.mxu0 0
    %1666 = vmatprep.subr.bf16.mxu0 0
    %1667 = vmatpush1.bf16.msra.mxu0 0
    %1668 = vmatprep.subr.bf16.mxu0 0
    %1669 = vmatpush1.bf16.msra.mxu0 0
    %1670 = vmatprep.subr.bf16.mxu0 0
    %1671 = vmatpush1.bf16.msra.mxu0 0
    %1672 = vmatprep.subr.bf16.mxu0 0
    %1673 = vmatpush1.bf16.msra.mxu0 0
    %1674 = vmatprep.subr.bf16.mxu0 0
    %1675 = vmatpush1.bf16.msra.mxu0 0
    %1676 = vmatprep.subr.bf16.mxu0 0
    %1677 = vmatpush1.bf16.msra.mxu0 0
    %1678 = vmatprep.subr.bf16.mxu0 0
    %1679 = vmatpush1.bf16.msra.mxu0 0
    %1680 = vmatprep.mubr.bf16.mxu0 0
    %1681 = vmatmul.mubr.bf16.gmra.mrb[0].mxu0 %v1646
    %v1682 = vpop.f32.mrb[0].mxu0
    %v1683 = vadd.f32 %v1639, %v1682
    %v1684 = vpop.f32.mrb[0].mxu0
    %v1685 = vadd.f32 %v1641, %v1684
    %v1686 = vpop.f32.mrb[0].mxu0
    %v1687 = vpop.f32.mrb[0].mxu0
    %1688 = vdwg.mxu0
    %1689 = vmatprep.subr.bf16.mxu0 %v1099
    %1690 = vmatpush1.bf16.msra.mxu0 %v1098
    %1691 = vmatprep.subr.bf16.mxu0 %v1101
    %1692 = vmatpush1.bf16.msra.mxu0 %v1100
    %1693 = vmatprep.subr.bf16.mxu0 %v1103
    %1694 = vmatpush1.bf16.msra.mxu0 %v1102
    %1695 = vmatprep.subr.bf16.mxu0 %v1105
    %1696 = vmatpush1.bf16.msra.mxu0 %v1104
    %1697 = vmatprep.subr.bf16.mxu0 0
    %1698 = vmatpush1.bf16.msra.mxu0 0
    %1699 = vmatprep.subr.bf16.mxu0 0
    %1700 = vmatpush1.bf16.msra.mxu0 0
    %1701 = vmatprep.subr.bf16.mxu0 0
    %1702 = vmatpush1.bf16.msra.mxu0 0
    %1703 = vmatprep.subr.bf16.mxu0 0
    %1704 = vmatpush1.bf16.msra.mxu0 0
    %1705 = vmatprep.subr.bf16.mxu0 0
    %1706 = vmatpush1.bf16.msra.mxu0 0
    %1707 = vmatprep.subr.bf16.mxu0 0
    %1708 = vmatpush1.bf16.msra.mxu0 0
    %1709 = vmatprep.subr.bf16.mxu0 0
    %1710 = vmatpush1.bf16.msra.mxu0 0
    %1711 = vmatprep.subr.bf16.mxu0 0
    %1712 = vmatpush1.bf16.msra.mxu0 0
    %1713 = vmatprep.subr.bf16.mxu0 0
    %1714 = vmatpush1.bf16.msra.mxu0 0
    %1715 = vmatprep.subr.bf16.mxu0 0
    %1716 = vmatpush1.bf16.msra.mxu0 0
    %1717 = vmatprep.subr.bf16.mxu0 0
    %1718 = vmatpush1.bf16.msra.mxu0 0
    %1719 = vmatprep.subr.bf16.mxu0 0
    %1720 = vmatpush1.bf16.msra.mxu0 0
    %1721 = vmatprep.mubr.bf16.mxu0 0
    %1722 = vmatmul.mubr.bf16.gmra.mrb[0].mxu0 %v1257
    %v1723 = vpop.f32.mrb[0].mxu0
    %v1724 = vadd.f32 0.0, %v1723
    %v1725 = vpop.f32.mrb[0].mxu0
    %v1726 = vadd.f32 0.0, %v1725
    %v1727 = vpop.f32.mrb[0].mxu0
    %v1728 = vpop.f32.mrb[0].mxu0
    %1729 = vdwg.mxu0
    %v1730 = vadd.f32 %v1683, %v1724
    %v1731 = vadd.f32 %v1685, %v1726
    %v1732 = vadd.f32 %v1730, %v1161
    %v1733 = vadd.f32 %v1731, %v1165
    %v1734 = vxor.u32 %v1732, 2147483648
    %v1735 = vmul.f32 %v1734, 1.442695
    %v1736 = vpow.pop %v1735
    %v1737 = vadd.f32 %v1736, 1.0
    %v1738 = vrcp.pop %v1737
    %v1739 = vmul.f32 1.0, %v1738
    %v1740 = vtanh.pop %v1733
    %v1741 = vxor.u32 %v1733, 2147483648
    %v1742 = vmul.f32 %v1741, 1.442695
    %v1743 = vpow.pop %v1742
    %v1744 = vadd.f32 %v1743, 1.0
    %v1745 = vrcp.pop %v1744
    %v1746 = vmul.f32 1.0, %v1745
    %v1747 = vmul.f32 %v1739, %v1193
    %v1748 = vmul.f32 %v1739, %v1740
    %1750 = vrot.lane.b32.xlu0 %v1748, 64
    %v1751 = vpop.permute.xlu0 %1750
    %v1753 = vadd.f32 %v1747, %v1751
    %v1754 = vtanh.pop %v1753
    %v1755 = vmul.f32 %v1746, %v1754
    %v1756 = vpack.c.bf16 %v1755, %v1755
    %v1759 = vunpack.c.l.s4 1966171168
    %v1760 = vunpack.c.0.s8 %v1759
    %v1761 = vlaneseq
    %v1762 = vshrl.u32 %v1761, 7
    %v1763 = vsub.s32 %v1760, %v1762
    %v1764 = vrot.slane %v1756, %v1763
    %v1766 = vunpack.c.l.s4 1966171168
    %v1767 = vunpack.c.0.s8 %v1766
    %v1768 = vlaneseq
    %v1769 = vshrl.u32 %v1768, 7
    %v1770 = vsub.s32 %v1767, %v1769
    %v1771 = vrot.slane %v1764, %v1770
    %1772 = vrot.lane.b32.xlu0 %v1771, 64
    %v1773 = vpop.permute.xlu0 %1772
    %s1775 = scalar_lea.vmem %s16, 1
    %1776 = vst.msk [vmem:[%s1775] sm:$0x1] %vm1215, %v1773
    %1781 = vset.pattern.permute.xlu0 0
    %1782 = vperm.xlu0 %1781, %v1461
    %v1783 = vpop.permute.xlu0 %1782
    %1784 = vset.pattern.permute.xlu0 0
    %1785 = vperm.xlu0 %1784, %v1462
    %v1786 = vpop.permute.xlu0 %1785
    %1787 = vset.pattern.permute.xlu0 0
    %1788 = vperm.xlu0 %1787, %v1464
    %v1789 = vpop.permute.xlu0 %1788
    %1790 = vset.pattern.permute.xlu0 0
    %1791 = vperm.xlu0 %1790, %v1465
    %v1792 = vpop.permute.xlu0 %1791
    %v1793 = vlaneseq
    %v1794 = vshrl.u32 %v1793, 7
    %v1795 = vsub.s32 %v645, %v1794
    %v1796 = vrot.slane %v1783, %v1795
    %v1797 = vlaneseq
    %v1798 = vshrl.u32 %v1797, 7
    %v1799 = vsub.s32 %v650, %v1798
    %v1800 = vrot.slane %v1786, %v1799
    %v1801 = vsel %vm655, %v1800, %v1796
    %v1802 = vlaneseq
    %v1803 = vshrl.u32 %v1802, 7
    %v1804 = vsub.s32 %v645, %v1803
    %v1805 = vrot.slane %v1789, %v1804
    %v1806 = vlaneseq
    %v1807 = vshrl.u32 %v1806, 7
    %v1808 = vsub.s32 %v650, %v1807
    %v1809 = vrot.slane %v1792, %v1808
    %v1810 = vsel %vm655, %v1809, %v1805
    %v1811 = vsel %vm113, %v1810, %v1801
    %s1813 = scalar_lea.vmem [#allocation3], 2
    %1814 = vst.msk [vmem:[%s1813] sm:$0x3] %vm668, %v1811
    %1815 = vrot.lane.b32.xlu0 %v1756, 64
    %v1816 = vpop.permute.xlu0 %1815
    %v1818 = vsel %vm519, %v1816, 0
    %1820 = vmatprep.subr.bf16.mxu0 0
    %1821 = vmatpush1.bf16.msra.mxu0 %v511
    %1822 = vmatprep.subr.bf16.mxu0 0
    %1823 = vmatpush1.bf16.msra.mxu0 %v512
    %1824 = vmatprep.subr.bf16.mxu0 0
    %1825 = vmatpush1.bf16.msra.mxu0 %v513
    %1826 = vmatprep.subr.bf16.mxu0 0
    %1827 = vmatpush1.bf16.msra.mxu0 %v514
    %1828 = vmatprep.subr.bf16.mxu0 0
    %1829 = vmatpush1.bf16.msra.mxu0 0
    %1830 = vmatprep.subr.bf16.mxu0 0
    %1831 = vmatpush1.bf16.msra.mxu0 0
    %1832 = vmatprep.subr.bf16.mxu0 0
    %1833 = vmatpush1.bf16.msra.mxu0 0
    %1834 = vmatprep.subr.bf16.mxu0 0
    %1835 = vmatpush1.bf16.msra.mxu0 0
    %1836 = vmatprep.subr.bf16.mxu0 0
    %1837 = vmatpush1.bf16.msra.mxu0 0
    %1838 = vmatprep.subr.bf16.mxu0 0
    %1839 = vmatpush1.bf16.msra.mxu0 0
    %1840 = vmatprep.subr.bf16.mxu0 0
    %1841 = vmatpush1.bf16.msra.mxu0 0
    %1842 = vmatprep.subr.bf16.mxu0 0
    %1843 = vmatpush1.bf16.msra.mxu0 0
    %1844 = vmatprep.subr.bf16.mxu0 0
    %1845 = vmatpush1.bf16.msra.mxu0 0
    %1846 = vmatprep.subr.bf16.mxu0 0
    %1847 = vmatpush1.bf16.msra.mxu0 0
    %1848 = vmatprep.subr.bf16.mxu0 0
    %1849 = vmatpush1.bf16.msra.mxu0 0
    %1850 = vmatprep.subr.bf16.mxu0 0
    %1851 = vmatpush1.bf16.msra.mxu0 0
    %1852 = vmatprep.mubr.bf16.mxu0 0
    %1853 = vmatmul.mubr.bf16.gmra.mrb[0].mxu0 %v1818
    %v1854 = vpop.f32.mrb[0].mxu0
    %v1855 = vadd.f32 %v493, %v1854
    %v1856 = vpop.f32.mrb[0].mxu0
    %v1857 = vpop.f32.mrb[0].mxu0
    %v1858 = vpop.f32.mrb[0].mxu0
    %1859 = vdwg.mxu0
    %v1862 = vunpack.c.l.s4 1966171168
    %v1863 = vunpack.c.0.s8 %v1862
    %v1864 = vlaneseq
    %v1865 = vshrl.u32 %v1864, 7
    %v1866 = vsub.s32 %v1863, %v1865
    %v1867 = vrot.slane %v1855, %v1866
    %v1868 = vcombine.high %v1867, %v1867
    %v1870 = vunpack.c.l.s4 1966171168
    %v1871 = vunpack.c.0.s8 %v1870
    %v1872 = vlaneseq
    %v1873 = vshrl.u32 %v1872, 7
    %v1874 = vsub.s32 %v1871, %v1873
    %v1875 = vrot.slane %v1867, %v1874
    %v1877 = vunpack.c.l.s4 1966171168
    %v1878 = vunpack.c.0.s8 %v1877
    %v1879 = vlaneseq
    %v1880 = vshrl.u32 %v1879, 7
    %v1881 = vsub.s32 %v1878, %v1880
    %v1882 = vrot.slane %v1868, %v1881
    %v1883 = vlaneseq
    %v1884 = vshrl.u32 %v1883, 7
    %v1885 = vsub.s32 0, %v1884
    %v1886 = vrot.slane %v1875, %v1885
    %v1887 = vlaneseq
    %v1888 = vshrl.u32 %v1887, 7
    %v1889 = vsub.s32 0, %v1888
    %v1890 = vrot.slane %v1882, %v1889
    %v1893 = vadd.f32 %v434, %v1886
    %v1894 = vadd.f32 %v437, %v1886
    %v1895 = vadd.f32 %v442, %v1890
    %v1896 = vadd.f32 %v445, %v1890
    %v1897 = vtanh.pop %v1893
    %v1898 = vtanh.pop %v1894
    %v1899 = vtanh.pop %v1895
    %v1900 = vtanh.pop %v1896
    %v1901 = vmul.f32 %v1897, %v608
    %v1902 = vmul.f32 %v1898, %v608
    %v1903 = vmul.f32 %v1899, %v608
    %v1904 = vmul.f32 %v1900, %v608
    %v1905 = vsel %vm614, %v1901, 0.0
    %1906 = vadd.xlane.f32.xlu0 %v1905
    %v1907 = vpop.xlane.xlu0 %1906
    %v1908 = vsel %vm614, %v1902, 0.0
    %1909 = vadd.xlane.f32.xlu0 %v1908
    %v1910 = vpop.xlane.xlu0 %1909
    %v1911 = vsel %vm614, %v1903, 0.0
    %1912 = vadd.xlane.f32.xlu0 %v1911
    %v1913 = vpop.xlane.xlu0 %1912
    %v1914 = vsel %vm614, %v1904, 0.0
    %1915 = vadd.xlane.f32.xlu0 %v1914
    %v1916 = vpop.xlane.xlu0 %1915
    %v1917 = vadd.f32 %v1907, %v634
    %v1918 = vadd.f32 %v1910, %v634
    %v1919 = vadd.f32 %v1913, %v634
    %v1920 = vadd.f32 %v1916, %v634
    %v1925 = vlaneseq
    %v1926 = vshrl.u32 %v1925, 7
    %v1927 = vsub.s32 %v645, %v1926
    %v1928 = vrot.slane %v1917, %v1927
    %v1929 = vlaneseq
    %v1930 = vshrl.u32 %v1929, 7
    %v1931 = vsub.s32 %v650, %v1930
    %v1932 = vrot.slane %v1918, %v1931
    %v1933 = vsel %vm655, %v1932, %v1928
    %v1934 = vlaneseq
    %v1935 = vshrl.u32 %v1934, 7
    %v1936 = vsub.s32 %v645, %v1935
    %v1937 = vrot.slane %v1919, %v1936
    %v1938 = vlaneseq
    %v1939 = vshrl.u32 %v1938, 7
    %v1940 = vsub.s32 %v650, %v1939
    %v1941 = vrot.slane %v1920, %v1940
    %v1942 = vsel %vm655, %v1941, %v1937
    %v1943 = vsel %vm113, %v1942, %v1933
    %v1945 = vsel %vm668, %v1943, -inf
    %1946 = vmax.xlane.f32.xlu0 %v1945
    %v1947 = vpop.xlane.xlu0 %1946
    %v1949 = vlaneseq
    %v1950 = vshrl.u32 %v1949, 7
    %v1951 = vsub.s32 0, %v1950
    %v1952 = vrot.slane %v1947, %v1951
    %v1953 = vlaneseq
    %v1954 = vshrl.u32 %v1953, 7
    %v1955 = vsub.s32 1, %v1954
    %v1956 = vrot.slane %v1947, %v1955
    %v1959 = vsub.f32 %v1917, %v1952
    %v1960 = vsub.f32 %v1918, %v1952
    %v1961 = vsub.f32 %v1919, %v1956
    %v1962 = vsub.f32 %v1920, %v1956
    %v1963 = vmul.f32 %v1959, 1.442695
    %v1964 = vpow.pop %v1963
    %v1965 = vmul.f32 %v1960, 1.442695
    %v1966 = vpow.pop %v1965
    %v1967 = vmul.f32 %v1961, 1.442695
    %v1968 = vpow.pop %v1967
    %v1969 = vmul.f32 %v1962, 1.442695
    %v1970 = vpow.pop %v1969
    %1975 = vset.pattern.permute.xlu0 0
    %1976 = vperm.xlu0 %1975, %v1964
    %v1977 = vpop.permute.xlu0 %1976
    %1978 = vset.pattern.permute.xlu0 0
    %1979 = vperm.xlu0 %1978, %v1966
    %v1980 = vpop.permute.xlu0 %1979
    %1981 = vset.pattern.permute.xlu0 0
    %1982 = vperm.xlu0 %1981, %v1968
    %v1983 = vpop.permute.xlu0 %1982
    %1984 = vset.pattern.permute.xlu0 0
    %1985 = vperm.xlu0 %1984, %v1970
    %v1986 = vpop.permute.xlu0 %1985
    %v1987 = vlaneseq
    %v1988 = vshrl.u32 %v1987, 7
    %v1989 = vsub.s32 %v645, %v1988
    %v1990 = vrot.slane %v1977, %v1989
    %v1991 = vlaneseq
    %v1992 = vshrl.u32 %v1991, 7
    %v1993 = vsub.s32 %v650, %v1992
    %v1994 = vrot.slane %v1980, %v1993
    %v1995 = vsel %vm655, %v1994, %v1990
    %v1996 = vlaneseq
    %v1997 = vshrl.u32 %v1996, 7
    %v1998 = vsub.s32 %v645, %v1997
    %v1999 = vrot.slane %v1983, %v1998
    %v2000 = vlaneseq
    %v2001 = vshrl.u32 %v2000, 7
    %v2002 = vsub.s32 %v650, %v2001
    %v2003 = vrot.slane %v1986, %v2002
    %v2004 = vsel %vm655, %v2003, %v1999
    %v2005 = vsel %vm113, %v2004, %v1995
    %v2007 = vsel %vm668, %v2005, 0.0
    %2008 = vadd.xlane.f32.xlu0 %v2007
    %v2009 = vpop.xlane.xlu0 %2008
    %v2011 = vlaneseq
    %v2012 = vshrl.u32 %v2011, 7
    %v2013 = vsub.s32 0, %v2012
    %v2014 = vrot.slane %v2009, %v2013
    %v2015 = vlaneseq
    %v2016 = vshrl.u32 %v2015, 7
    %v2017 = vsub.s32 1, %v2016
    %v2018 = vrot.slane %v2009, %v2017
    %v2021 = vrcp.pop %v2014
    %v2022 = vmul.f32 %v1964, %v2021
    %v2023 = vmul.f32 %v1966, %v2021
    %v2024 = vrcp.pop %v2018
    %v2025 = vmul.f32 %v1968, %v2024
    %v2026 = vmul.f32 %v1970, %v2024
    %v2027 = vpack.c.bf16 %v2023, %v2022
    %v2028 = vpack.c.bf16 %v2026, %v2025
    %v2030 = vunpack.c.l.b16 %v2027
    %v2031 = vunpack.c.h.b16 %v2027
    %2032 = vset.pattern.permute.xlu0 0
    %2033 = vperm.xlu0 %2032, %v2030
    %v2034 = vpop.permute.xlu0 %2033
    %2035 = vset.pattern.permute.xlu0 0
    %2036 = vperm.xlu0 %2035, %v2031
    %v2037 = vpop.permute.xlu0 %2036
    %v2038 = vlaneseq
    %v2039 = vshrl.u32 %v2038, 7
    %v2040 = vsub.s32 %v645, %v2039
    %v2041 = vrot.slane %v2034, %v2040
    %v2042 = vlaneseq
    %v2043 = vshrl.u32 %v2042, 7
    %v2044 = vsub.s32 %v650, %v2043
    %v2045 = vrot.slane %v2037, %v2044
    %v2046 = vsel %vm655, %v2045, %v2041
    %v2047 = vpack.c.b16 %v2046, %v2046
    %v2049 = vsel %vm772, %v2047, 0
    %2051 = vmatprep.subr.bf16.mxu0 0
    %2052 = vmatpush1.bf16.msra.mxu0 %v347
    %2053 = vmatprep.subr.bf16.mxu0 0
    %2054 = vmatpush1.bf16.msra.mxu0 0
    %2055 = vmatprep.subr.bf16.mxu0 0
    %2056 = vmatpush1.bf16.msra.mxu0 0
    %2057 = vmatprep.subr.bf16.mxu0 0
    %2058 = vmatpush1.bf16.msra.mxu0 0
    %2059 = vmatprep.subr.bf16.mxu0 0
    %2060 = vmatpush1.bf16.msra.mxu0 0
    %2061 = vmatprep.subr.bf16.mxu0 0
    %2062 = vmatpush1.bf16.msra.mxu0 0
    %2063 = vmatprep.subr.bf16.mxu0 0
    %2064 = vmatpush1.bf16.msra.mxu0 0
    %2065 = vmatprep.subr.bf16.mxu0 0
    %2066 = vmatpush1.bf16.msra.mxu0 0
    %2067 = vmatprep.subr.bf16.mxu0 0
    %2068 = vmatpush1.bf16.msra.mxu0 0
    %2069 = vmatprep.subr.bf16.mxu0 0
    %2070 = vmatpush1.bf16.msra.mxu0 0
    %2071 = vmatprep.subr.bf16.mxu0 0
    %2072 = vmatpush1.bf16.msra.mxu0 0
    %2073 = vmatprep.subr.bf16.mxu0 0
    %2074 = vmatpush1.bf16.msra.mxu0 0
    %2075 = vmatprep.subr.bf16.mxu0 0
    %2076 = vmatpush1.bf16.msra.mxu0 0
    %2077 = vmatprep.subr.bf16.mxu0 0
    %2078 = vmatpush1.bf16.msra.mxu0 0
    %2079 = vmatprep.subr.bf16.mxu0 0
    %2080 = vmatpush1.bf16.msra.mxu0 0
    %2081 = vmatprep.subr.bf16.mxu0 0
    %2082 = vmatpush1.bf16.msra.mxu0 0
    %2083 = vmatprep.mubr.bf16.mxu0 0
    %2084 = vmatmul.mubr.bf16.gmra.mrb[0].mxu0 %v2049
    %v2085 = vpop.f32.mrb[0].mxu0
    %v2086 = vadd.f32 0.0, %v2085
    %v2087 = vpop.f32.mrb[0].mxu0
    %v2088 = vpop.f32.mrb[0].mxu0
    %v2089 = vpop.f32.mrb[0].mxu0
    %2090 = vdwg.mxu0
    %v2092 = vunpack.c.l.b16 %v2028
    %v2093 = vunpack.c.h.b16 %v2028
    %2094 = vset.pattern.permute.xlu0 0
    %2095 = vperm.xlu0 %2094, %v2092
    %v2096 = vpop.permute.xlu0 %2095
    %2097 = vset.pattern.permute.xlu0 0
    %2098 = vperm.xlu0 %2097, %v2093
    %v2099 = vpop.permute.xlu0 %2098
    %v2100 = vlaneseq
    %v2101 = vshrl.u32 %v2100, 7
    %v2102 = vsub.s32 %v645, %v2101
    %v2103 = vrot.slane %v2096, %v2102
    %v2104 = vlaneseq
    %v2105 = vshrl.u32 %v2104, 7
    %v2106 = vsub.s32 %v650, %v2105
    %v2107 = vrot.slane %v2099, %v2106
    %v2108 = vsel %vm655, %v2107, %v2103
    %v2109 = vpack.c.b16 %v2108, %v2108
    %v2111 = vsel %vm772, %v2109, 0
    %2113 = vmatprep.subr.bf16.mxu0 0
    %2114 = vmatpush1.bf16.msra.mxu0 %v348
    %2115 = vmatprep.subr.bf16.mxu0 0
    %2116 = vmatpush1.bf16.msra.mxu0 0
    %2117 = vmatprep.subr.bf16.mxu0 0
    %2118 = vmatpush1.bf16.msra.mxu0 0
    %2119 = vmatprep.subr.bf16.mxu0 0
    %2120 = vmatpush1.bf16.msra.mxu0 0
    %2121 = vmatprep.subr.bf16.mxu0 0
    %2122 = vmatpush1.bf16.msra.mxu0 0
    %2123 = vmatprep.subr.bf16.mxu0 0
    %2124 = vmatpush1.bf16.msra.mxu0 0
    %2125 = vmatprep.subr.bf16.mxu0 0
    %2126 = vmatpush1.bf16.msra.mxu0 0
    %2127 = vmatprep.subr.bf16.mxu0 0
    %2128 = vmatpush1.bf16.msra.mxu0 0
    %2129 = vmatprep.subr.bf16.mxu0 0
    %2130 = vmatpush1.bf16.msra.mxu0 0
    %2131 = vmatprep.subr.bf16.mxu0 0
    %2132 = vmatpush1.bf16.msra.mxu0 0
    %2133 = vmatprep.subr.bf16.mxu0 0
    %2134 = vmatpush1.bf16.msra.mxu0 0
    %2135 = vmatprep.subr.bf16.mxu0 0
    %2136 = vmatpush1.bf16.msra.mxu0 0
    %2137 = vmatprep.subr.bf16.mxu0 0
    %2138 = vmatpush1.bf16.msra.mxu0 0
    %2139 = vmatprep.subr.bf16.mxu0 0
    %2140 = vmatpush1.bf16.msra.mxu0 0
    %2141 = vmatprep.subr.bf16.mxu0 0
    %2142 = vmatpush1.bf16.msra.mxu0 0
    %2143 = vmatprep.subr.bf16.mxu0 0
    %2144 = vmatpush1.bf16.msra.mxu0 0
    %2145 = vmatprep.mubr.bf16.mxu0 0
    %2146 = vmatmul.mubr.bf16.gmra.mrb[0].mxu0 %v2111
    %v2147 = vpop.f32.mrb[0].mxu0
    %v2148 = vadd.f32 0.0, %v2147
    %v2149 = vpop.f32.mrb[0].mxu0
    %v2150 = vpop.f32.mrb[0].mxu0
    %v2151 = vpop.f32.mrb[0].mxu0
    %2152 = vdwg.mxu0
    %s2153 = scalar_lea.vmem %s1, 2
    %v2154 = vld [vmem:[%s2153] sm:$0x1]
    %v2155 = vpack.c.bf16 %v2086, %v2086
    %v2156 = vpack.c.bf16 %v2148, %v2148
    %v2159 = vunpack.c.l.b16 %v2155
    %v2160 = vunpack.c.l.b16 %v2156
    %v2161 = vrot.slane %v2160, 7
    %v2162 = vsel %vm113, %v2161, %v2159
    %v2163 = vpack.c.b16 %v2162, %v2162
    %2165 = vmatprep.subr.bf16.mxu0 %v938
    %2166 = vmatpush1.bf16.msra.mxu0 %v937
    %2167 = vmatprep.subr.bf16.mxu0 %v940
    %2168 = vmatpush1.bf16.msra.mxu0 %v939
    %2169 = vmatprep.subr.bf16.mxu0 %v942
    %2170 = vmatpush1.bf16.msra.mxu0 %v941
    %2171 = vmatprep.subr.bf16.mxu0 %v944
    %2172 = vmatpush1.bf16.msra.mxu0 %v943
    %2173 = vmatprep.subr.bf16.mxu0 %v946
    %2174 = vmatpush1.bf16.msra.mxu0 %v945
    %2175 = vmatprep.subr.bf16.mxu0 %v948
    %2176 = vmatpush1.bf16.msra.mxu0 %v947
    %2177 = vmatprep.subr.bf16.mxu0 %v950
    %2178 = vmatpush1.bf16.msra.mxu0 %v949
    %2179 = vmatprep.subr.bf16.mxu0 %v952
    %2180 = vmatpush1.bf16.msra.mxu0 %v951
    %2181 = vmatprep.subr.bf16.mxu0 0
    %2182 = vmatpush1.bf16.msra.mxu0 0
    %2183 = vmatprep.subr.bf16.mxu0 0
    %2184 = vmatpush1.bf16.msra.mxu0 0
    %2185 = vmatprep.subr.bf16.mxu0 0
    %2186 = vmatpush1.bf16.msra.mxu0 0
    %2187 = vmatprep.subr.bf16.mxu0 0
    %2188 = vmatpush1.bf16.msra.mxu0 0
    %2189 = vmatprep.subr.bf16.mxu0 0
    %2190 = vmatpush1.bf16.msra.mxu0 0
    %2191 = vmatprep.subr.bf16.mxu0 0
    %2192 = vmatpush1.bf16.msra.mxu0 0
    %2193 = vmatprep.subr.bf16.mxu0 0
    %2194 = vmatpush1.bf16.msra.mxu0 0
    %2195 = vmatprep.subr.bf16.mxu0 0
    %2196 = vmatpush1.bf16.msra.mxu0 0
    %2197 = vmatprep.mubr.bf16.mxu0 0
    %2198 = vmatmul.mubr.bf16.gmra.mrb[0].mxu0 %v2163
    %v2199 = vpop.f32.mrb[0].mxu0
    %v2200 = vadd.f32 0.0, %v2199
    %v2201 = vpop.f32.mrb[0].mxu0
    %v2202 = vadd.f32 0.0, %v2201
    %v2203 = vpop.f32.mrb[0].mxu0
    %v2204 = vpop.f32.mrb[0].mxu0
    %2205 = vdwg.mxu0
    %v2207 = vsel %vm614, %v2154, 0
    %2209 = vmatprep.subr.bf16.mxu0 %v1023
    %2210 = vmatpush1.bf16.msra.mxu0 %v1022
    %2211 = vmatprep.subr.bf16.mxu0 %v1025
    %2212 = vmatpush1.bf16.msra.mxu0 %v1024
    %2213 = vmatprep.subr.bf16.mxu0 0
    %2214 = vmatpush1.bf16.msra.mxu0 0
    %2215 = vmatprep.subr.bf16.mxu0 0
    %2216 = vmatpush1.bf16.msra.mxu0 0
    %2217 = vmatprep.subr.bf16.mxu0 0
    %2218 = vmatpush1.bf16.msra.mxu0 0
    %2219 = vmatprep.subr.bf16.mxu0 0
    %2220 = vmatpush1.bf16.msra.mxu0 0
    %2221 = vmatprep.subr.bf16.mxu0 0
    %2222 = vmatpush1.bf16.msra.mxu0 0
    %2223 = vmatprep.subr.bf16.mxu0 0
    %2224 = vmatpush1.bf16.msra.mxu0 0
    %2225 = vmatprep.subr.bf16.mxu0 0
    %2226 = vmatpush1.bf16.msra.mxu0 0
    %2227 = vmatprep.subr.bf16.mxu0 0
    %2228 = vmatpush1.bf16.msra.mxu0 0
    %2229 = vmatprep.subr.bf16.mxu0 0
    %2230 = vmatpush1.bf16.msra.mxu0 0
    %2231 = vmatprep.subr.bf16.mxu0 0
    %2232 = vmatpush1.bf16.msra.mxu0 0
    %2233 = vmatprep.subr.bf16.mxu0 0
    %2234 = vmatpush1.bf16.msra.mxu0 0
    %2235 = vmatprep.subr.bf16.mxu0 0
    %2236 = vmatpush1.bf16.msra.mxu0 0
    %2237 = vmatprep.subr.bf16.mxu0 0
    %2238 = vmatpush1.bf16.msra.mxu0 0
    %2239 = vmatprep.subr.bf16.mxu0 0
    %2240 = vmatpush1.bf16.msra.mxu0 0
    %2241 = vmatprep.mubr.bf16.mxu0 0
    %2242 = vmatmul.mubr.bf16.gmra.mrb[0].mxu0 %v2207
    %v2243 = vpop.f32.mrb[0].mxu0
    %v2244 = vadd.f32 %v2200, %v2243
    %v2245 = vpop.f32.mrb[0].mxu0
    %v2246 = vadd.f32 %v2202, %v2245
    %v2247 = vpop.f32.mrb[0].mxu0
    %v2248 = vpop.f32.mrb[0].mxu0
    %2249 = vdwg.mxu0
    %2250 = vmatprep.subr.bf16.mxu0 %v1099
    %2251 = vmatpush1.bf16.msra.mxu0 %v1098
    %2252 = vmatprep.subr.bf16.mxu0 %v1101
    %2253 = vmatpush1.bf16.msra.mxu0 %v1100
    %2254 = vmatprep.subr.bf16.mxu0 %v1103
    %2255 = vmatpush1.bf16.msra.mxu0 %v1102
    %2256 = vmatprep.subr.bf16.mxu0 %v1105
    %2257 = vmatpush1.bf16.msra.mxu0 %v1104
    %2258 = vmatprep.subr.bf16.mxu0 0
    %2259 = vmatpush1.bf16.msra.mxu0 0
    %2260 = vmatprep.subr.bf16.mxu0 0
    %2261 = vmatpush1.bf16.msra.mxu0 0
    %2262 = vmatprep.subr.bf16.mxu0 0
    %2263 = vmatpush1.bf16.msra.mxu0 0
    %2264 = vmatprep.subr.bf16.mxu0 0
    %2265 = vmatpush1.bf16.msra.mxu0 0
    %2266 = vmatprep.subr.bf16.mxu0 0
    %2267 = vmatpush1.bf16.msra.mxu0 0
    %2268 = vmatprep.subr.bf16.mxu0 0
    %2269 = vmatpush1.bf16.msra.mxu0 0
    %2270 = vmatprep.subr.bf16.mxu0 0
    %2271 = vmatpush1.bf16.msra.mxu0 0
    %2272 = vmatprep.subr.bf16.mxu0 0
    %2273 = vmatpush1.bf16.msra.mxu0 0
    %2274 = vmatprep.subr.bf16.mxu0 0
    %2275 = vmatpush1.bf16.msra.mxu0 0
    %2276 = vmatprep.subr.bf16.mxu0 0
    %2277 = vmatpush1.bf16.msra.mxu0 0
    %2278 = vmatprep.subr.bf16.mxu0 0
    %2279 = vmatpush1.bf16.msra.mxu0 0
    %2280 = vmatprep.subr.bf16.mxu0 0
    %2281 = vmatpush1.bf16.msra.mxu0 0
    %2282 = vmatprep.mubr.bf16.mxu0 0
    %2283 = vmatmul.mubr.bf16.gmra.mrb[0].mxu0 %v1818
    %v2284 = vpop.f32.mrb[0].mxu0
    %v2285 = vadd.f32 0.0, %v2284
    %v2286 = vpop.f32.mrb[0].mxu0
    %v2287 = vadd.f32 0.0, %v2286
    %v2288 = vpop.f32.mrb[0].mxu0
    %v2289 = vpop.f32.mrb[0].mxu0
    %2290 = vdwg.mxu0
    %v2291 = vadd.f32 %v2244, %v2285
    %v2292 = vadd.f32 %v2246, %v2287
    %v2293 = vadd.f32 %v2291, %v1161
    %v2294 = vadd.f32 %v2292, %v1165
    %v2295 = vxor.u32 %v2293, 2147483648
    %v2296 = vmul.f32 %v2295, 1.442695
    %v2297 = vpow.pop %v2296
    %v2298 = vadd.f32 %v2297, 1.0
    %v2299 = vrcp.pop %v2298
    %v2300 = vmul.f32 1.0, %v2299
    %v2301 = vtanh.pop %v2294
    %v2302 = vxor.u32 %v2294, 2147483648
    %v2303 = vmul.f32 %v2302, 1.442695
    %v2304 = vpow.pop %v2303
    %v2305 = vadd.f32 %v2304, 1.0
    %v2306 = vrcp.pop %v2305
    %v2307 = vmul.f32 1.0, %v2306
    %v2308 = vmul.f32 %v2300, %v1753
    %v2309 = vmul.f32 %v2300, %v2301
    %2311 = vrot.lane.b32.xlu0 %v2309, 64
    %v2312 = vpop.permute.xlu0 %2311
    %v2314 = vadd.f32 %v2308, %v2312
    %v2315 = vtanh.pop %v2314
    %v2316 = vmul.f32 %v2307, %v2315
    %v2317 = vpack.c.bf16 %v2316, %v2316
    %v2320 = vunpack.c.l.s4 1966171168
    %v2321 = vunpack.c.0.s8 %v2320
    %v2322 = vlaneseq
    %v2323 = vshrl.u32 %v2322, 7
    %v2324 = vsub.s32 %v2321, %v2323
    %v2325 = vrot.slane %v2317, %v2324
    %v2327 = vunpack.c.l.s4 1966171168
    %v2328 = vunpack.c.0.s8 %v2327
    %v2329 = vlaneseq
    %v2330 = vshrl.u32 %v2329, 7
    %v2331 = vsub.s32 %v2328, %v2330
    %v2332 = vrot.slane %v2325, %v2331
    %2333 = vrot.lane.b32.xlu0 %v2332, 64
    %v2334 = vpop.permute.xlu0 %2333
    %s2336 = scalar_lea.vmem %s16, 2
    %2337 = vst.msk [vmem:[%s2336] sm:$0x1] %vm1215, %v2334
    %2342 = vset.pattern.permute.xlu0 0
    %2343 = vperm.xlu0 %2342, %v2022
    %v2344 = vpop.permute.xlu0 %2343
    %2345 = vset.pattern.permute.xlu0 0
    %2346 = vperm.xlu0 %2345, %v2023
    %v2347 = vpop.permute.xlu0 %2346
    %2348 = vset.pattern.permute.xlu0 0
    %2349 = vperm.xlu0 %2348, %v2025
    %v2350 = vpop.permute.xlu0 %2349
    %2351 = vset.pattern.permute.xlu0 0
    %2352 = vperm.xlu0 %2351, %v2026
    %v2353 = vpop.permute.xlu0 %2352
    %v2354 = vlaneseq
    %v2355 = vshrl.u32 %v2354, 7
    %v2356 = vsub.s32 %v645, %v2355
    %v2357 = vrot.slane %v2344, %v2356
    %v2358 = vlaneseq
    %v2359 = vshrl.u32 %v2358, 7
    %v2360 = vsub.s32 %v650, %v2359
    %v2361 = vrot.slane %v2347, %v2360
    %v2362 = vsel %vm655, %v2361, %v2357
    %v2363 = vlaneseq
    %v2364 = vshrl.u32 %v2363, 7
    %v2365 = vsub.s32 %v645, %v2364
    %v2366 = vrot.slane %v2350, %v2365
    %v2367 = vlaneseq
    %v2368 = vshrl.u32 %v2367, 7
    %v2369 = vsub.s32 %v650, %v2368
    %v2370 = vrot.slane %v2353, %v2369
    %v2371 = vsel %vm655, %v2370, %v2366
    %v2372 = vsel %vm113, %v2371, %v2362
    %s2374 = scalar_lea.vmem [#allocation3], 4
    %2375 = vst.msk [vmem:[%s2374] sm:$0x3] %vm668, %v2372
    %2376 = vrot.lane.b32.xlu0 %v2317, 64
    %v2377 = vpop.permute.xlu0 %2376
    %v2379 = vsel %vm519, %v2377, 0
    %2381 = vmatprep.subr.bf16.mxu0 0
    %2382 = vmatpush1.bf16.msra.mxu0 %v511
    %2383 = vmatprep.subr.bf16.mxu0 0
    %2384 = vmatpush1.bf16.msra.mxu0 %v512
    %2385 = vmatprep.subr.bf16.mxu0 0
    %2386 = vmatpush1.bf16.msra.mxu0 %v513
    %2387 = vmatprep.subr.bf16.mxu0 0
    %2388 = vmatpush1.bf16.msra.mxu0 %v514
    %2389 = vmatprep.subr.bf16.mxu0 0
    %2390 = vmatpush1.bf16.msra.mxu0 0
    %2391 = vmatprep.subr.bf16.mxu0 0
    %2392 = vmatpush1.bf16.msra.mxu0 0
    %2393 = vmatprep.subr.bf16.mxu0 0
    %2394 = vmatpush1.bf16.msra.mxu0 0
    %2395 = vmatprep.subr.bf16.mxu0 0
    %2396 = vmatpush1.bf16.msra.mxu0 0
    %2397 = vmatprep.subr.bf16.mxu0 0
    %2398 = vmatpush1.bf16.msra.mxu0 0
    %2399 = vmatprep.subr.bf16.mxu0 0
    %2400 = vmatpush1.bf16.msra.mxu0 0
    %2401 = vmatprep.subr.bf16.mxu0 0
    %2402 = vmatpush1.bf16.msra.mxu0 0
    %2403 = vmatprep.subr.bf16.mxu0 0
    %2404 = vmatpush1.bf16.msra.mxu0 0
    %2405 = vmatprep.subr.bf16.mxu0 0
    %2406 = vmatpush1.bf16.msra.mxu0 0
    %2407 = vmatprep.subr.bf16.mxu0 0
    %2408 = vmatpush1.bf16.msra.mxu0 0
    %2409 = vmatprep.subr.bf16.mxu0 0
    %2410 = vmatpush1.bf16.msra.mxu0 0
    %2411 = vmatprep.subr.bf16.mxu0 0
    %2412 = vmatpush1.bf16.msra.mxu0 0
    %2413 = vmatprep.mubr.bf16.mxu0 0
    %2414 = vmatmul.mubr.bf16.gmra.mrb[0].mxu0 %v2379
    %v2415 = vpop.f32.mrb[0].mxu0
    %v2416 = vadd.f32 %v493, %v2415
    %v2417 = vpop.f32.mrb[0].mxu0
    %v2418 = vpop.f32.mrb[0].mxu0
    %v2419 = vpop.f32.mrb[0].mxu0
    %2420 = vdwg.mxu0
    %v2423 = vunpack.c.l.s4 1966171168
    %v2424 = vunpack.c.0.s8 %v2423
    %v2425 = vlaneseq
    %v2426 = vshrl.u32 %v2425, 7
    %v2427 = vsub.s32 %v2424, %v2426
    %v2428 = vrot.slane %v2416, %v2427
    %v2429 = vcombine.high %v2428, %v2428
    %v2431 = vunpack.c.l.s4 1966171168
    %v2432 = vunpack.c.0.s8 %v2431
    %v2433 = vlaneseq
    %v2434 = vshrl.u32 %v2433, 7
    %v2435 = vsub.s32 %v2432, %v2434
    %v2436 = vrot.slane %v2428, %v2435
    %v2438 = vunpack.c.l.s4 1966171168
    %v2439 = vunpack.c.0.s8 %v2438
    %v2440 = vlaneseq
    %v2441 = vshrl.u32 %v2440, 7
    %v2442 = vsub.s32 %v2439, %v2441
    %v2443 = vrot.slane %v2429, %v2442
    %v2444 = vlaneseq
    %v2445 = vshrl.u32 %v2444, 7
    %v2446 = vsub.s32 0, %v2445
    %v2447 = vrot.slane %v2436, %v2446
    %v2448 = vlaneseq
    %v2449 = vshrl.u32 %v2448, 7
    %v2450 = vsub.s32 0, %v2449
    %v2451 = vrot.slane %v2443, %v2450
    %v2454 = vadd.f32 %v434, %v2447
    %v2455 = vadd.f32 %v437, %v2447
    %v2456 = vadd.f32 %v442, %v2451
    %v2457 = vadd.f32 %v445, %v2451
    %v2458 = vtanh.pop %v2454
    %v2459 = vtanh.pop %v2455
    %v2460 = vtanh.pop %v2456
    %v2461 = vtanh.pop %v2457
    %v2462 = vmul.f32 %v2458, %v608
    %v2463 = vmul.f32 %v2459, %v608
    %v2464 = vmul.f32 %v2460, %v608
    %v2465 = vmul.f32 %v2461, %v608
    %v2466 = vsel %vm614, %v2462, 0.0
    %2467 = vadd.xlane.f32.xlu0 %v2466
    %v2468 = vpop.xlane.xlu0 %2467
    %v2469 = vsel %vm614, %v2463, 0.0
    %2470 = vadd.xlane.f32.xlu0 %v2469
    %v2471 = vpop.xlane.xlu0 %2470
    %v2472 = vsel %vm614, %v2464, 0.0
    %2473 = vadd.xlane.f32.xlu0 %v2472
    %v2474 = vpop.xlane.xlu0 %2473
    %v2475 = vsel %vm614, %v2465, 0.0
    %2476 = vadd.xlane.f32.xlu0 %v2475
    %v2477 = vpop.xlane.xlu0 %2476
    %v2478 = vadd.f32 %v2468, %v634
    %v2479 = vadd.f32 %v2471, %v634
    %v2480 = vadd.f32 %v2474, %v634
    %v2481 = vadd.f32 %v2477, %v634
    %v2486 = vlaneseq
    %v2487 = vshrl.u32 %v2486, 7
    %v2488 = vsub.s32 %v645, %v2487
    %v2489 = vrot.slane %v2478, %v2488
    %v2490 = vlaneseq
    %v2491 = vshrl.u32 %v2490, 7
    %v2492 = vsub.s32 %v650, %v2491
    %v2493 = vrot.slane %v2479, %v2492
    %v2494 = vsel %vm655, %v2493, %v2489
    %v2495 = vlaneseq
    %v2496 = vshrl.u32 %v2495, 7
    %v2497 = vsub.s32 %v645, %v2496
    %v2498 = vrot.slane %v2480, %v2497
    %v2499 = vlaneseq
    %v2500 = vshrl.u32 %v2499, 7
    %v2501 = vsub.s32 %v650, %v2500
    %v2502 = vrot.slane %v2481, %v2501
    %v2503 = vsel %vm655, %v2502, %v2498
    %v2504 = vsel %vm113, %v2503, %v2494
    %v2506 = vsel %vm668, %v2504, -inf
    %2507 = vmax.xlane.f32.xlu0 %v2506
    %v2508 = vpop.xlane.xlu0 %2507
    %v2510 = vlaneseq
    %v2511 = vshrl.u32 %v2510, 7
    %v2512 = vsub.s32 0, %v2511
    %v2513 = vrot.slane %v2508, %v2512
    %v2514 = vlaneseq
    %v2515 = vshrl.u32 %v2514, 7
    %v2516 = vsub.s32 1, %v2515
    %v2517 = vrot.slane %v2508, %v2516
    %v2520 = vsub.f32 %v2478, %v2513
    %v2521 = vsub.f32 %v2479, %v2513
    %v2522 = vsub.f32 %v2480, %v2517
    %v2523 = vsub.f32 %v2481, %v2517
    %v2524 = vmul.f32 %v2520, 1.442695
    %v2525 = vpow.pop %v2524
    %v2526 = vmul.f32 %v2521, 1.442695
    %v2527 = vpow.pop %v2526
    %v2528 = vmul.f32 %v2522, 1.442695
    %v2529 = vpow.pop %v2528
    %v2530 = vmul.f32 %v2523, 1.442695
    %v2531 = vpow.pop %v2530
    %2536 = vset.pattern.permute.xlu0 0
    %2537 = vperm.xlu0 %2536, %v2525
    %v2538 = vpop.permute.xlu0 %2537
    %2539 = vset.pattern.permute.xlu0 0
    %2540 = vperm.xlu0 %2539, %v2527
    %v2541 = vpop.permute.xlu0 %2540
    %2542 = vset.pattern.permute.xlu0 0
    %2543 = vperm.xlu0 %2542, %v2529
    %v2544 = vpop.permute.xlu0 %2543
    %2545 = vset.pattern.permute.xlu0 0
    %2546 = vperm.xlu0 %2545, %v2531
    %v2547 = vpop.permute.xlu0 %2546
    %v2548 = vlaneseq
    %v2549 = vshrl.u32 %v2548, 7
    %v2550 = vsub.s32 %v645, %v2549
    %v2551 = vrot.slane %v2538, %v2550
    %v2552 = vlaneseq
    %v2553 = vshrl.u32 %v2552, 7
    %v2554 = vsub.s32 %v650, %v2553
    %v2555 = vrot.slane %v2541, %v2554
    %v2556 = vsel %vm655, %v2555, %v2551
    %v2557 = vlaneseq
    %v2558 = vshrl.u32 %v2557, 7
    %v2559 = vsub.s32 %v645, %v2558
    %v2560 = vrot.slane %v2544, %v2559
    %v2561 = vlaneseq
    %v2562 = vshrl.u32 %v2561, 7
    %v2563 = vsub.s32 %v650, %v2562
    %v2564 = vrot.slane %v2547, %v2563
    %v2565 = vsel %vm655, %v2564, %v2560
    %v2566 = vsel %vm113, %v2565, %v2556
    %v2568 = vsel %vm668, %v2566, 0.0
    %2569 = vadd.xlane.f32.xlu0 %v2568
    %v2570 = vpop.xlane.xlu0 %2569
    %v2572 = vlaneseq
    %v2573 = vshrl.u32 %v2572, 7
    %v2574 = vsub.s32 0, %v2573
    %v2575 = vrot.slane %v2570, %v2574
    %v2576 = vlaneseq
    %v2577 = vshrl.u32 %v2576, 7
    %v2578 = vsub.s32 1, %v2577
    %v2579 = vrot.slane %v2570, %v2578
    %v2582 = vrcp.pop %v2575
    %v2583 = vmul.f32 %v2525, %v2582
    %v2584 = vmul.f32 %v2527, %v2582
    %v2585 = vrcp.pop %v2579
    %v2586 = vmul.f32 %v2529, %v2585
    %v2587 = vmul.f32 %v2531, %v2585
    %v2588 = vpack.c.bf16 %v2584, %v2583
    %v2589 = vpack.c.bf16 %v2587, %v2586
    %v2591 = vunpack.c.l.b16 %v2588
    %v2592 = vunpack.c.h.b16 %v2588
    %2593 = vset.pattern.permute.xlu0 0
    %2594 = vperm.xlu0 %2593, %v2591
    %v2595 = vpop.permute.xlu0 %2594
    %2596 = vset.pattern.permute.xlu0 0
    %2597 = vperm.xlu0 %2596, %v2592
    %v2598 = vpop.permute.xlu0 %2597
    %v2599 = vlaneseq
    %v2600 = vshrl.u32 %v2599, 7
    %v2601 = vsub.s32 %v645, %v2600
    %v2602 = vrot.slane %v2595, %v2601
    %v2603 = vlaneseq
    %v2604 = vshrl.u32 %v2603, 7
    %v2605 = vsub.s32 %v650, %v2604
    %v2606 = vrot.slane %v2598, %v2605
    %v2607 = vsel %vm655, %v2606, %v2602
    %v2608 = vpack.c.b16 %v2607, %v2607
    %v2610 = vsel %vm772, %v2608, 0
    %2612 = vmatprep.subr.bf16.mxu0 0
    %2613 = vmatpush1.bf16.msra.mxu0 %v347
    %2614 = vmatprep.subr.bf16.mxu0 0
    %2615 = vmatpush1.bf16.msra.mxu0 0
    %2616 = vmatprep.subr.bf16.mxu0 0
    %2617 = vmatpush1.bf16.msra.mxu0 0
    %2618 = vmatprep.subr.bf16.mxu0 0
    %2619 = vmatpush1.bf16.msra.mxu0 0
    %2620 = vmatprep.subr.bf16.mxu0 0
    %2621 = vmatpush1.bf16.msra.mxu0 0
    %2622 = vmatprep.subr.bf16.mxu0 0
    %2623 = vmatpush1.bf16.msra.mxu0 0
    %2624 = vmatprep.subr.bf16.mxu0 0
    %2625 = vmatpush1.bf16.msra.mxu0 0
    %2626 = vmatprep.subr.bf16.mxu0 0
    %2627 = vmatpush1.bf16.msra.mxu0 0
    %2628 = vmatprep.subr.bf16.mxu0 0
    %2629 = vmatpush1.bf16.msra.mxu0 0
    %2630 = vmatprep.subr.bf16.mxu0 0
    %2631 = vmatpush1.bf16.msra.mxu0 0
    %2632 = vmatprep.subr.bf16.mxu0 0
    %2633 = vmatpush1.bf16.msra.mxu0 0
    %2634 = vmatprep.subr.bf16.mxu0 0
    %2635 = vmatpush1.bf16.msra.mxu0 0
    %2636 = vmatprep.subr.bf16.mxu0 0
    %2637 = vmatpush1.bf16.msra.mxu0 0
    %2638 = vmatprep.subr.bf16.mxu0 0
    %2639 = vmatpush1.bf16.msra.mxu0 0
    %2640 = vmatprep.subr.bf16.mxu0 0
    %2641 = vmatpush1.bf16.msra.mxu0 0
    %2642 = vmatprep.subr.bf16.mxu0 0
    %2643 = vmatpush1.bf16.msra.mxu0 0
    %2644 = vmatprep.mubr.bf16.mxu0 0
    %2645 = vmatmul.mubr.bf16.gmra.mrb[0].mxu0 %v2610
    %v2646 = vpop.f32.mrb[0].mxu0
    %v2647 = vadd.f32 0.0, %v2646
    %v2648 = vpop.f32.mrb[0].mxu0
    %v2649 = vpop.f32.mrb[0].mxu0
    %v2650 = vpop.f32.mrb[0].mxu0
    %2651 = vdwg.mxu0
    %v2653 = vunpack.c.l.b16 %v2589
    %v2654 = vunpack.c.h.b16 %v2589
    %2655 = vset.pattern.permute.xlu0 0
    %2656 = vperm.xlu0 %2655, %v2653
    %v2657 = vpop.permute.xlu0 %2656
    %2658 = vset.pattern.permute.xlu0 0
    %2659 = vperm.xlu0 %2658, %v2654
    %v2660 = vpop.permute.xlu0 %2659
    %v2661 = vlaneseq
    %v2662 = vshrl.u32 %v2661, 7
    %v2663 = vsub.s32 %v645, %v2662
    %v2664 = vrot.slane %v2657, %v2663
    %v2665 = vlaneseq
    %v2666 = vshrl.u32 %v2665, 7
    %v2667 = vsub.s32 %v650, %v2666
    %v2668 = vrot.slane %v2660, %v2667
    %v2669 = vsel %vm655, %v2668, %v2664
    %v2670 = vpack.c.b16 %v2669, %v2669
    %v2672 = vsel %vm772, %v2670, 0
    %2674 = vmatprep.subr.bf16.mxu0 0
    %2675 = vmatpush1.bf16.msra.mxu0 %v348
    %2676 = vmatprep.subr.bf16.mxu0 0
    %2677 = vmatpush1.bf16.msra.mxu0 0
    %2678 = vmatprep.subr.bf16.mxu0 0
    %2679 = vmatpush1.bf16.msra.mxu0 0
    %2680 = vmatprep.subr.bf16.mxu0 0
    %2681 = vmatpush1.bf16.msra.mxu0 0
    %2682 = vmatprep.subr.bf16.mxu0 0
    %2683 = vmatpush1.bf16.msra.mxu0 0
    %2684 = vmatprep.subr.bf16.mxu0 0
    %2685 = vmatpush1.bf16.msra.mxu0 0
    %2686 = vmatprep.subr.bf16.mxu0 0
    %2687 = vmatpush1.bf16.msra.mxu0 0
    %2688 = vmatprep.subr.bf16.mxu0 0
    %2689 = vmatpush1.bf16.msra.mxu0 0
    %2690 = vmatprep.subr.bf16.mxu0 0
    %2691 = vmatpush1.bf16.msra.mxu0 0
    %2692 = vmatprep.subr.bf16.mxu0 0
    %2693 = vmatpush1.bf16.msra.mxu0 0
    %2694 = vmatprep.subr.bf16.mxu0 0
    %2695 = vmatpush1.bf16.msra.mxu0 0
    %2696 = vmatprep.subr.bf16.mxu0 0
    %2697 = vmatpush1.bf16.msra.mxu0 0
    %2698 = vmatprep.subr.bf16.mxu0 0
    %2699 = vmatpush1.bf16.msra.mxu0 0
    %2700 = vmatprep.subr.bf16.mxu0 0
    %2701 = vmatpush1.bf16.msra.mxu0 0
    %2702 = vmatprep.subr.bf16.mxu0 0
    %2703 = vmatpush1.bf16.msra.mxu0 0
    %2704 = vmatprep.subr.bf16.mxu0 0
    %2705 = vmatpush1.bf16.msra.mxu0 0
    %2706 = vmatprep.mubr.bf16.mxu0 0
    %2707 = vmatmul.mubr.bf16.gmra.mrb[0].mxu0 %v2672
    %v2708 = vpop.f32.mrb[0].mxu0
    %v2709 = vadd.f32 0.0, %v2708
    %v2710 = vpop.f32.mrb[0].mxu0
    %v2711 = vpop.f32.mrb[0].mxu0
    %v2712 = vpop.f32.mrb[0].mxu0
    %2713 = vdwg.mxu0
    %s2714 = scalar_lea.vmem %s1, 3
    %v2715 = vld [vmem:[%s2714] sm:$0x1]
    %v2716 = vpack.c.bf16 %v2647, %v2647
    %v2717 = vpack.c.bf16 %v2709, %v2709
    %v2720 = vunpack.c.l.b16 %v2716
    %v2721 = vunpack.c.l.b16 %v2717
    %v2722 = vrot.slane %v2721, 7
    %v2723 = vsel %vm113, %v2722, %v2720
    %v2724 = vpack.c.b16 %v2723, %v2723
    %2726 = vmatprep.subr.bf16.mxu0 %v938
    %2727 = vmatpush1.bf16.msra.mxu0 %v937
    %2728 = vmatprep.subr.bf16.mxu0 %v940
    %2729 = vmatpush1.bf16.msra.mxu0 %v939
    %2730 = vmatprep.subr.bf16.mxu0 %v942
    %2731 = vmatpush1.bf16.msra.mxu0 %v941
    %2732 = vmatprep.subr.bf16.mxu0 %v944
    %2733 = vmatpush1.bf16.msra.mxu0 %v943
    %2734 = vmatprep.subr.bf16.mxu0 %v946
    %2735 = vmatpush1.bf16.msra.mxu0 %v945
    %2736 = vmatprep.subr.bf16.mxu0 %v948
    %2737 = vmatpush1.bf16.msra.mxu0 %v947
    %2738 = vmatprep.subr.bf16.mxu0 %v950
    %2739 = vmatpush1.bf16.msra.mxu0 %v949
    %2740 = vmatprep.subr.bf16.mxu0 %v952
    %2741 = vmatpush1.bf16.msra.mxu0 %v951
    %2742 = vmatprep.subr.bf16.mxu0 0
    %2743 = vmatpush1.bf16.msra.mxu0 0
    %2744 = vmatprep.subr.bf16.mxu0 0
    %2745 = vmatpush1.bf16.msra.mxu0 0
    %2746 = vmatprep.subr.bf16.mxu0 0
    %2747 = vmatpush1.bf16.msra.mxu0 0
    %2748 = vmatprep.subr.bf16.mxu0 0
    %2749 = vmatpush1.bf16.msra.mxu0 0
    %2750 = vmatprep.subr.bf16.mxu0 0
    %2751 = vmatpush1.bf16.msra.mxu0 0
    %2752 = vmatprep.subr.bf16.mxu0 0
    %2753 = vmatpush1.bf16.msra.mxu0 0
    %2754 = vmatprep.subr.bf16.mxu0 0
    %2755 = vmatpush1.bf16.msra.mxu0 0
    %2756 = vmatprep.subr.bf16.mxu0 0
    %2757 = vmatpush1.bf16.msra.mxu0 0
    %2758 = vmatprep.mubr.bf16.mxu0 0
    %2759 = vmatmul.mubr.bf16.gmra.mrb[0].mxu0 %v2724
    %v2760 = vpop.f32.mrb[0].mxu0
    %v2761 = vadd.f32 0.0, %v2760
    %v2762 = vpop.f32.mrb[0].mxu0
    %v2763 = vadd.f32 0.0, %v2762
    %v2764 = vpop.f32.mrb[0].mxu0
    %v2765 = vpop.f32.mrb[0].mxu0
    %2766 = vdwg.mxu0
    %v2768 = vsel %vm614, %v2715, 0
    %2770 = vmatprep.subr.bf16.mxu0 %v1023
    %2771 = vmatpush1.bf16.msra.mxu0 %v1022
    %2772 = vmatprep.subr.bf16.mxu0 %v1025
    %2773 = vmatpush1.bf16.msra.mxu0 %v1024
    %2774 = vmatprep.subr.bf16.mxu0 0
    %2775 = vmatpush1.bf16.msra.mxu0 0
    %2776 = vmatprep.subr.bf16.mxu0 0
    %2777 = vmatpush1.bf16.msra.mxu0 0
    %2778 = vmatprep.subr.bf16.mxu0 0
    %2779 = vmatpush1.bf16.msra.mxu0 0
    %2780 = vmatprep.subr.bf16.mxu0 0
    %2781 = vmatpush1.bf16.msra.mxu0 0
    %2782 = vmatprep.subr.bf16.mxu0 0
    %2783 = vmatpush1.bf16.msra.mxu0 0
    %2784 = vmatprep.subr.bf16.mxu0 0
    %2785 = vmatpush1.bf16.msra.mxu0 0
    %2786 = vmatprep.subr.bf16.mxu0 0
    %2787 = vmatpush1.bf16.msra.mxu0 0
    %2788 = vmatprep.subr.bf16.mxu0 0
    %2789 = vmatpush1.bf16.msra.mxu0 0
    %2790 = vmatprep.subr.bf16.mxu0 0
    %2791 = vmatpush1.bf16.msra.mxu0 0
    %2792 = vmatprep.subr.bf16.mxu0 0
    %2793 = vmatpush1.bf16.msra.mxu0 0
    %2794 = vmatprep.subr.bf16.mxu0 0
    %2795 = vmatpush1.bf16.msra.mxu0 0
    %2796 = vmatprep.subr.bf16.mxu0 0
    %2797 = vmatpush1.bf16.msra.mxu0 0
    %2798 = vmatprep.subr.bf16.mxu0 0
    %2799 = vmatpush1.bf16.msra.mxu0 0
    %2800 = vmatprep.subr.bf16.mxu0 0
    %2801 = vmatpush1.bf16.msra.mxu0 0
    %2802 = vmatprep.mubr.bf16.mxu0 0
    %2803 = vmatmul.mubr.bf16.gmra.mrb[0].mxu0 %v2768
    %v2804 = vpop.f32.mrb[0].mxu0
    %v2805 = vadd.f32 %v2761, %v2804
    %v2806 = vpop.f32.mrb[0].mxu0
    %v2807 = vadd.f32 %v2763, %v2806
    %v2808 = vpop.f32.mrb[0].mxu0
    %v2809 = vpop.f32.mrb[0].mxu0
    %2810 = vdwg.mxu0
    %2811 = vmatprep.subr.bf16.mxu0 %v1099
    %2812 = vmatpush1.bf16.msra.mxu0 %v1098
    %2813 = vmatprep.subr.bf16.mxu0 %v1101
    %2814 = vmatpush1.bf16.msra.mxu0 %v1100
    %2815 = vmatprep.subr.bf16.mxu0 %v1103
    %2816 = vmatpush1.bf16.msra.mxu0 %v1102
    %2817 = vmatprep.subr.bf16.mxu0 %v1105
    %2818 = vmatpush1.bf16.msra.mxu0 %v1104
    %2819 = vmatprep.subr.bf16.mxu0 0
    %2820 = vmatpush1.bf16.msra.mxu0 0
    %2821 = vmatprep.subr.bf16.mxu0 0
    %2822 = vmatpush1.bf16.msra.mxu0 0
    %2823 = vmatprep.subr.bf16.mxu0 0
    %2824 = vmatpush1.bf16.msra.mxu0 0
    %2825 = vmatprep.subr.bf16.mxu0 0
    %2826 = vmatpush1.bf16.msra.mxu0 0
    %2827 = vmatprep.subr.bf16.mxu0 0
    %2828 = vmatpush1.bf16.msra.mxu0 0
    %2829 = vmatprep.subr.bf16.mxu0 0
    %2830 = vmatpush1.bf16.msra.mxu0 0
    %2831 = vmatprep.subr.bf16.mxu0 0
    %2832 = vmatpush1.bf16.msra.mxu0 0
    %2833 = vmatprep.subr.bf16.mxu0 0
    %2834 = vmatpush1.bf16.msra.mxu0 0
    %2835 = vmatprep.subr.bf16.mxu0 0
    %2836 = vmatpush1.bf16.msra.mxu0 0
    %2837 = vmatprep.subr.bf16.mxu0 0
    %2838 = vmatpush1.bf16.msra.mxu0 0
    %2839 = vmatprep.subr.bf16.mxu0 0
    %2840 = vmatpush1.bf16.msra.mxu0 0
    %2841 = vmatprep.subr.bf16.mxu0 0
    %2842 = vmatpush1.bf16.msra.mxu0 0
    %2843 = vmatprep.mubr.bf16.mxu0 0
    %2844 = vmatmul.mubr.bf16.gmra.mrb[0].mxu0 %v2379
    %v2845 = vpop.f32.mrb[0].mxu0
    %v2846 = vadd.f32 0.0, %v2845
    %v2847 = vpop.f32.mrb[0].mxu0
    %v2848 = vadd.f32 0.0, %v2847
    %v2849 = vpop.f32.mrb[0].mxu0
    %v2850 = vpop.f32.mrb[0].mxu0
    %2851 = vdwg.mxu0
    %v2852 = vadd.f32 %v2805, %v2846
    %v2853 = vadd.f32 %v2807, %v2848
    %v2854 = vadd.f32 %v2852, %v1161
    %v2855 = vadd.f32 %v2853, %v1165
    %v2856 = vxor.u32 %v2854, 2147483648
    %v2857 = vmul.f32 %v2856, 1.442695
    %v2858 = vpow.pop %v2857
    %v2859 = vadd.f32 %v2858, 1.0
    %v2860 = vrcp.pop %v2859
    %v2861 = vmul.f32 1.0, %v2860
    %v2862 = vtanh.pop %v2855
    %v2863 = vxor.u32 %v2855, 2147483648
    %v2864 = vmul.f32 %v2863, 1.442695
    %v2865 = vpow.pop %v2864
    %v2866 = vadd.f32 %v2865, 1.0
    %v2867 = vrcp.pop %v2866
    %v2868 = vmul.f32 1.0, %v2867
    %v2869 = vmul.f32 %v2861, %v2314
    %v2870 = vmul.f32 %v2861, %v2862
    %2872 = vrot.lane.b32.xlu0 %v2870, 64
    %v2873 = vpop.permute.xlu0 %2872
    %v2875 = vadd.f32 %v2869, %v2873
    %v2876 = vtanh.pop %v2875
    %v2877 = vmul.f32 %v2868, %v2876
    %v2878 = vpack.c.bf16 %v2877, %v2877
    %v2881 = vunpack.c.l.s4 1966171168
    %v2882 = vunpack.c.0.s8 %v2881
    %v2883 = vlaneseq
    %v2884 = vshrl.u32 %v2883, 7
    %v2885 = vsub.s32 %v2882, %v2884
    %v2886 = vrot.slane %v2878, %v2885
    %v2888 = vunpack.c.l.s4 1966171168
    %v2889 = vunpack.c.0.s8 %v2888
    %v2890 = vlaneseq
    %v2891 = vshrl.u32 %v2890, 7
    %v2892 = vsub.s32 %v2889, %v2891
    %v2893 = vrot.slane %v2886, %v2892
    %2894 = vrot.lane.b32.xlu0 %v2893, 64
    %v2895 = vpop.permute.xlu0 %2894
    %s2897 = scalar_lea.vmem %s16, 3
    %2898 = vst.msk [vmem:[%s2897] sm:$0x1] %vm1215, %v2895
    %2903 = vset.pattern.permute.xlu0 0
    %2904 = vperm.xlu0 %2903, %v2583
    %v2905 = vpop.permute.xlu0 %2904
    %2906 = vset.pattern.permute.xlu0 0
    %2907 = vperm.xlu0 %2906, %v2584
    %v2908 = vpop.permute.xlu0 %2907
    %2909 = vset.pattern.permute.xlu0 0
    %2910 = vperm.xlu0 %2909, %v2586
    %v2911 = vpop.permute.xlu0 %2910
    %2912 = vset.pattern.permute.xlu0 0
    %2913 = vperm.xlu0 %2912, %v2587
    %v2914 = vpop.permute.xlu0 %2913
    %v2915 = vlaneseq
    %v2916 = vshrl.u32 %v2915, 7
    %v2917 = vsub.s32 %v645, %v2916
    %v2918 = vrot.slane %v2905, %v2917
    %v2919 = vlaneseq
    %v2920 = vshrl.u32 %v2919, 7
    %v2921 = vsub.s32 %v650, %v2920
    %v2922 = vrot.slane %v2908, %v2921
    %v2923 = vsel %vm655, %v2922, %v2918
    %v2924 = vlaneseq
    %v2925 = vshrl.u32 %v2924, 7
    %v2926 = vsub.s32 %v645, %v2925
    %v2927 = vrot.slane %v2911, %v2926
    %v2928 = vlaneseq
    %v2929 = vshrl.u32 %v2928, 7
    %v2930 = vsub.s32 %v650, %v2929
    %v2931 = vrot.slane %v2914, %v2930
    %v2932 = vsel %vm655, %v2931, %v2927
    %v2933 = vsel %vm113, %v2932, %v2923
    %s2935 = scalar_lea.vmem [#allocation3], 6
    %2936 = vst.msk [vmem:[%s2935] sm:$0x3] %vm668, %v2933
    %2937 = vrot.lane.b32.xlu0 %v2878, 64
    %v2938 = vpop.permute.xlu0 %2937
    %v2940 = vsel %vm519, %v2938, 0
    %2942 = vmatprep.subr.bf16.mxu0 0
    %2943 = vmatpush1.bf16.msra.mxu0 %v511
    %2944 = vmatprep.subr.bf16.mxu0 0
    %2945 = vmatpush1.bf16.msra.mxu0 %v512
    %2946 = vmatprep.subr.bf16.mxu0 0
    %2947 = vmatpush1.bf16.msra.mxu0 %v513
    %2948 = vmatprep.subr.bf16.mxu0 0
    %2949 = vmatpush1.bf16.msra.mxu0 %v514
    %2950 = vmatprep.subr.bf16.mxu0 0
    %2951 = vmatpush1.bf16.msra.mxu0 0
    %2952 = vmatprep.subr.bf16.mxu0 0
    %2953 = vmatpush1.bf16.msra.mxu0 0
    %2954 = vmatprep.subr.bf16.mxu0 0
    %2955 = vmatpush1.bf16.msra.mxu0 0
    %2956 = vmatprep.subr.bf16.mxu0 0
    %2957 = vmatpush1.bf16.msra.mxu0 0
    %2958 = vmatprep.subr.bf16.mxu0 0
    %2959 = vmatpush1.bf16.msra.mxu0 0
    %2960 = vmatprep.subr.bf16.mxu0 0
    %2961 = vmatpush1.bf16.msra.mxu0 0
    %2962 = vmatprep.subr.bf16.mxu0 0
    %2963 = vmatpush1.bf16.msra.mxu0 0
    %2964 = vmatprep.subr.bf16.mxu0 0
    %2965 = vmatpush1.bf16.msra.mxu0 0
    %2966 = vmatprep.subr.bf16.mxu0 0
    %2967 = vmatpush1.bf16.msra.mxu0 0
    %2968 = vmatprep.subr.bf16.mxu0 0
    %2969 = vmatpush1.bf16.msra.mxu0 0
    %2970 = vmatprep.subr.bf16.mxu0 0
    %2971 = vmatpush1.bf16.msra.mxu0 0
    %2972 = vmatprep.subr.bf16.mxu0 0
    %2973 = vmatpush1.bf16.msra.mxu0 0
    %2974 = vmatprep.mubr.bf16.mxu0 0
    %2975 = vmatmul.mubr.bf16.gmra.mrb[0].mxu0 %v2940
    %v2976 = vpop.f32.mrb[0].mxu0
    %v2977 = vadd.f32 %v493, %v2976
    %v2978 = vpop.f32.mrb[0].mxu0
    %v2979 = vpop.f32.mrb[0].mxu0
    %v2980 = vpop.f32.mrb[0].mxu0
    %2981 = vdwg.mxu0
    %v2984 = vunpack.c.l.s4 1966171168
    %v2985 = vunpack.c.0.s8 %v2984
    %v2986 = vlaneseq
    %v2987 = vshrl.u32 %v2986, 7
    %v2988 = vsub.s32 %v2985, %v2987
    %v2989 = vrot.slane %v2977, %v2988
    %v2990 = vcombine.high %v2989, %v2989
    %v2992 = vunpack.c.l.s4 1966171168
    %v2993 = vunpack.c.0.s8 %v2992
    %v2994 = vlaneseq
    %v2995 = vshrl.u32 %v2994, 7
    %v2996 = vsub.s32 %v2993, %v2995
    %v2997 = vrot.slane %v2989, %v2996
    %v2999 = vunpack.c.l.s4 1966171168
    %v3000 = vunpack.c.0.s8 %v2999
    %v3001 = vlaneseq
    %v3002 = vshrl.u32 %v3001, 7
    %v3003 = vsub.s32 %v3000, %v3002
    %v3004 = vrot.slane %v2990, %v3003
    %v3005 = vlaneseq
    %v3006 = vshrl.u32 %v3005, 7
    %v3007 = vsub.s32 0, %v3006
    %v3008 = vrot.slane %v2997, %v3007
    %v3009 = vlaneseq
    %v3010 = vshrl.u32 %v3009, 7
    %v3011 = vsub.s32 0, %v3010
    %v3012 = vrot.slane %v3004, %v3011
    %v3015 = vadd.f32 %v434, %v3008
    %v3016 = vadd.f32 %v437, %v3008
    %v3017 = vadd.f32 %v442, %v3012
    %v3018 = vadd.f32 %v445, %v3012
    %v3019 = vtanh.pop %v3015
    %v3020 = vtanh.pop %v3016
    %v3021 = vtanh.pop %v3017
    %v3022 = vtanh.pop %v3018
    %v3023 = vmul.f32 %v3019, %v608
    %v3024 = vmul.f32 %v3020, %v608
    %v3025 = vmul.f32 %v3021, %v608
    %v3026 = vmul.f32 %v3022, %v608
    %v3027 = vsel %vm614, %v3023, 0.0
    %3028 = vadd.xlane.f32.xlu0 %v3027
    %v3029 = vpop.xlane.xlu0 %3028
    %v3030 = vsel %vm614, %v3024, 0.0
    %3031 = vadd.xlane.f32.xlu0 %v3030
    %v3032 = vpop.xlane.xlu0 %3031
    %v3033 = vsel %vm614, %v3025, 0.0
    %3034 = vadd.xlane.f32.xlu0 %v3033
    %v3035 = vpop.xlane.xlu0 %3034
    %v3036 = vsel %vm614, %v3026, 0.0
    %3037 = vadd.xlane.f32.xlu0 %v3036
    %v3038 = vpop.xlane.xlu0 %3037
    %v3039 = vadd.f32 %v3029, %v634
    %v3040 = vadd.f32 %v3032, %v634
    %v3041 = vadd.f32 %v3035, %v634
    %v3042 = vadd.f32 %v3038, %v634
    %v3047 = vlaneseq
    %v3048 = vshrl.u32 %v3047, 7
    %v3049 = vsub.s32 %v645, %v3048
    %v3050 = vrot.slane %v3039, %v3049
    %v3051 = vlaneseq
    %v3052 = vshrl.u32 %v3051, 7
    %v3053 = vsub.s32 %v650, %v3052
    %v3054 = vrot.slane %v3040, %v3053
    %v3055 = vsel %vm655, %v3054, %v3050
    %v3056 = vlaneseq
    %v3057 = vshrl.u32 %v3056, 7
    %v3058 = vsub.s32 %v645, %v3057
    %v3059 = vrot.slane %v3041, %v3058
    %v3060 = vlaneseq
    %v3061 = vshrl.u32 %v3060, 7
    %v3062 = vsub.s32 %v650, %v3061
    %v3063 = vrot.slane %v3042, %v3062
    %v3064 = vsel %vm655, %v3063, %v3059
    %v3065 = vsel %vm113, %v3064, %v3055
    %v3067 = vsel %vm668, %v3065, -inf
    %3068 = vmax.xlane.f32.xlu0 %v3067
    %v3069 = vpop.xlane.xlu0 %3068
    %v3071 = vlaneseq
    %v3072 = vshrl.u32 %v3071, 7
    %v3073 = vsub.s32 0, %v3072
    %v3074 = vrot.slane %v3069, %v3073
    %v3075 = vlaneseq
    %v3076 = vshrl.u32 %v3075, 7
    %v3077 = vsub.s32 1, %v3076
    %v3078 = vrot.slane %v3069, %v3077
    %v3081 = vsub.f32 %v3039, %v3074
    %v3082 = vsub.f32 %v3040, %v3074
    %v3083 = vsub.f32 %v3041, %v3078
    %v3084 = vsub.f32 %v3042, %v3078
    %v3085 = vmul.f32 %v3081, 1.442695
    %v3086 = vpow.pop %v3085
    %v3087 = vmul.f32 %v3082, 1.442695
    %v3088 = vpow.pop %v3087
    %v3089 = vmul.f32 %v3083, 1.442695
    %v3090 = vpow.pop %v3089
    %v3091 = vmul.f32 %v3084, 1.442695
    %v3092 = vpow.pop %v3091
    %3097 = vset.pattern.permute.xlu0 0
    %3098 = vperm.xlu0 %3097, %v3086
    %v3099 = vpop.permute.xlu0 %3098
    %3100 = vset.pattern.permute.xlu0 0
    %3101 = vperm.xlu0 %3100, %v3088
    %v3102 = vpop.permute.xlu0 %3101
    %3103 = vset.pattern.permute.xlu0 0
    %3104 = vperm.xlu0 %3103, %v3090
    %v3105 = vpop.permute.xlu0 %3104
    %3106 = vset.pattern.permute.xlu0 0
    %3107 = vperm.xlu0 %3106, %v3092
    %v3108 = vpop.permute.xlu0 %3107
    %v3109 = vlaneseq
    %v3110 = vshrl.u32 %v3109, 7
    %v3111 = vsub.s32 %v645, %v3110
    %v3112 = vrot.slane %v3099, %v3111
    %v3113 = vlaneseq
    %v3114 = vshrl.u32 %v3113, 7
    %v3115 = vsub.s32 %v650, %v3114
    %v3116 = vrot.slane %v3102, %v3115
    %v3117 = vsel %vm655, %v3116, %v3112
    %v3118 = vlaneseq
    %v3119 = vshrl.u32 %v3118, 7
    %v3120 = vsub.s32 %v645, %v3119
    %v3121 = vrot.slane %v3105, %v3120
    %v3122 = vlaneseq
    %v3123 = vshrl.u32 %v3122, 7
    %v3124 = vsub.s32 %v650, %v3123
    %v3125 = vrot.slane %v3108, %v3124
    %v3126 = vsel %vm655, %v3125, %v3121
    %v3127 = vsel %vm113, %v3126, %v3117
    %v3129 = vsel %vm668, %v3127, 0.0
    %3130 = vadd.xlane.f32.xlu0 %v3129
    %v3131 = vpop.xlane.xlu0 %3130
    %v3133 = vlaneseq
    %v3134 = vshrl.u32 %v3133, 7
    %v3135 = vsub.s32 0, %v3134
    %v3136 = vrot.slane %v3131, %v3135
    %v3137 = vlaneseq
    %v3138 = vshrl.u32 %v3137, 7
    %v3139 = vsub.s32 1, %v3138
    %v3140 = vrot.slane %v3131, %v3139
    %v3143 = vrcp.pop %v3136
    %v3144 = vmul.f32 %v3086, %v3143
    %v3145 = vmul.f32 %v3088, %v3143
    %v3146 = vrcp.pop %v3140
    %v3147 = vmul.f32 %v3090, %v3146
    %v3148 = vmul.f32 %v3092, %v3146
    %v3149 = vpack.c.bf16 %v3145, %v3144
    %v3150 = vpack.c.bf16 %v3148, %v3147
    %v3152 = vunpack.c.l.b16 %v3149
    %v3153 = vunpack.c.h.b16 %v3149
    %3154 = vset.pattern.permute.xlu0 0
    %3155 = vperm.xlu0 %3154, %v3152
    %v3156 = vpop.permute.xlu0 %3155
    %3157 = vset.pattern.permute.xlu0 0
    %3158 = vperm.xlu0 %3157, %v3153
    %v3159 = vpop.permute.xlu0 %3158
    %v3160 = vlaneseq
    %v3161 = vshrl.u32 %v3160, 7
    %v3162 = vsub.s32 %v645, %v3161
    %v3163 = vrot.slane %v3156, %v3162
    %v3164 = vlaneseq
    %v3165 = vshrl.u32 %v3164, 7
    %v3166 = vsub.s32 %v650, %v3165
    %v3167 = vrot.slane %v3159, %v3166
    %v3168 = vsel %vm655, %v3167, %v3163
    %v3169 = vpack.c.b16 %v3168, %v3168
    %v3171 = vsel %vm772, %v3169, 0
    %3173 = vmatprep.subr.bf16.mxu0 0
    %3174 = vmatpush1.bf16.msra.mxu0 %v347
    %3175 = vmatprep.subr.bf16.mxu0 0
    %3176 = vmatpush1.bf16.msra.mxu0 0
    %3177 = vmatprep.subr.bf16.mxu0 0
    %3178 = vmatpush1.bf16.msra.mxu0 0
    %3179 = vmatprep.subr.bf16.mxu0 0
    %3180 = vmatpush1.bf16.msra.mxu0 0
    %3181 = vmatprep.subr.bf16.mxu0 0
    %3182 = vmatpush1.bf16.msra.mxu0 0
    %3183 = vmatprep.subr.bf16.mxu0 0
    %3184 = vmatpush1.bf16.msra.mxu0 0
    %3185 = vmatprep.subr.bf16.mxu0 0
    %3186 = vmatpush1.bf16.msra.mxu0 0
    %3187 = vmatprep.subr.bf16.mxu0 0
    %3188 = vmatpush1.bf16.msra.mxu0 0
    %3189 = vmatprep.subr.bf16.mxu0 0
    %3190 = vmatpush1.bf16.msra.mxu0 0
    %3191 = vmatprep.subr.bf16.mxu0 0
    %3192 = vmatpush1.bf16.msra.mxu0 0
    %3193 = vmatprep.subr.bf16.mxu0 0
    %3194 = vmatpush1.bf16.msra.mxu0 0
    %3195 = vmatprep.subr.bf16.mxu0 0
    %3196 = vmatpush1.bf16.msra.mxu0 0
    %3197 = vmatprep.subr.bf16.mxu0 0
    %3198 = vmatpush1.bf16.msra.mxu0 0
    %3199 = vmatprep.subr.bf16.mxu0 0
    %3200 = vmatpush1.bf16.msra.mxu0 0
    %3201 = vmatprep.subr.bf16.mxu0 0
    %3202 = vmatpush1.bf16.msra.mxu0 0
    %3203 = vmatprep.subr.bf16.mxu0 0
    %3204 = vmatpush1.bf16.msra.mxu0 0
    %3205 = vmatprep.mubr.bf16.mxu0 0
    %3206 = vmatmul.mubr.bf16.gmra.mrb[0].mxu0 %v3171
    %v3207 = vpop.f32.mrb[0].mxu0
    %v3208 = vadd.f32 0.0, %v3207
    %v3209 = vpop.f32.mrb[0].mxu0
    %v3210 = vpop.f32.mrb[0].mxu0
    %v3211 = vpop.f32.mrb[0].mxu0
    %3212 = vdwg.mxu0
    %v3214 = vunpack.c.l.b16 %v3150
    %v3215 = vunpack.c.h.b16 %v3150
    %3216 = vset.pattern.permute.xlu0 0
    %3217 = vperm.xlu0 %3216, %v3214
    %v3218 = vpop.permute.xlu0 %3217
    %3219 = vset.pattern.permute.xlu0 0
    %3220 = vperm.xlu0 %3219, %v3215
    %v3221 = vpop.permute.xlu0 %3220
    %v3222 = vlaneseq
    %v3223 = vshrl.u32 %v3222, 7
    %v3224 = vsub.s32 %v645, %v3223
    %v3225 = vrot.slane %v3218, %v3224
    %v3226 = vlaneseq
    %v3227 = vshrl.u32 %v3226, 7
    %v3228 = vsub.s32 %v650, %v3227
    %v3229 = vrot.slane %v3221, %v3228
    %v3230 = vsel %vm655, %v3229, %v3225
    %v3231 = vpack.c.b16 %v3230, %v3230
    %v3233 = vsel %vm772, %v3231, 0
    %3235 = vmatprep.subr.bf16.mxu0 0
    %3236 = vmatpush1.bf16.msra.mxu0 %v348
    %3237 = vmatprep.subr.bf16.mxu0 0
    %3238 = vmatpush1.bf16.msra.mxu0 0
    %3239 = vmatprep.subr.bf16.mxu0 0
    %3240 = vmatpush1.bf16.msra.mxu0 0
    %3241 = vmatprep.subr.bf16.mxu0 0
    %3242 = vmatpush1.bf16.msra.mxu0 0
    %3243 = vmatprep.subr.bf16.mxu0 0
    %3244 = vmatpush1.bf16.msra.mxu0 0
    %3245 = vmatprep.subr.bf16.mxu0 0
    %3246 = vmatpush1.bf16.msra.mxu0 0
    %3247 = vmatprep.subr.bf16.mxu0 0
    %3248 = vmatpush1.bf16.msra.mxu0 0
    %3249 = vmatprep.subr.bf16.mxu0 0
    %3250 = vmatpush1.bf16.msra.mxu0 0
    %3251 = vmatprep.subr.bf16.mxu0 0
    %3252 = vmatpush1.bf16.msra.mxu0 0
    %3253 = vmatprep.subr.bf16.mxu0 0
    %3254 = vmatpush1.bf16.msra.mxu0 0
    %3255 = vmatprep.subr.bf16.mxu0 0
    %3256 = vmatpush1.bf16.msra.mxu0 0
    %3257 = vmatprep.subr.bf16.mxu0 0
    %3258 = vmatpush1.bf16.msra.mxu0 0
    %3259 = vmatprep.subr.bf16.mxu0 0
    %3260 = vmatpush1.bf16.msra.mxu0 0
    %3261 = vmatprep.subr.bf16.mxu0 0
    %3262 = vmatpush1.bf16.msra.mxu0 0
    %3263 = vmatprep.subr.bf16.mxu0 0
    %3264 = vmatpush1.bf16.msra.mxu0 0
    %3265 = vmatprep.subr.bf16.mxu0 0
    %3266 = vmatpush1.bf16.msra.mxu0 0
    %3267 = vmatprep.mubr.bf16.mxu0 0
    %3268 = vmatmul.mubr.bf16.gmra.mrb[0].mxu0 %v3233
    %v3269 = vpop.f32.mrb[0].mxu0
    %v3270 = vadd.f32 0.0, %v3269
    %v3271 = vpop.f32.mrb[0].mxu0
    %v3272 = vpop.f32.mrb[0].mxu0
    %v3273 = vpop.f32.mrb[0].mxu0
    %3274 = vdwg.mxu0
    %s3275 = scalar_lea.vmem %s1, 4
    %v3276 = vld [vmem:[%s3275] sm:$0x1]
    %v3277 = vpack.c.bf16 %v3208, %v3208
    %v3278 = vpack.c.bf16 %v3270, %v3270
    %v3281 = vunpack.c.l.b16 %v3277
    %v3282 = vunpack.c.l.b16 %v3278
    %v3283 = vrot.slane %v3282, 7
    %v3284 = vsel %vm113, %v3283, %v3281
    %v3285 = vpack.c.b16 %v3284, %v3284
    %3287 = vmatprep.subr.bf16.mxu0 %v938
    %3288 = vmatpush1.bf16.msra.mxu0 %v937
    %3289 = vmatprep.subr.bf16.mxu0 %v940
    %3290 = vmatpush1.bf16.msra.mxu0 %v939
    %3291 = vmatprep.subr.bf16.mxu0 %v942
    %3292 = vmatpush1.bf16.msra.mxu0 %v941
    %3293 = vmatprep.subr.bf16.mxu0 %v944
    %3294 = vmatpush1.bf16.msra.mxu0 %v943
    %3295 = vmatprep.subr.bf16.mxu0 %v946
    %3296 = vmatpush1.bf16.msra.mxu0 %v945
    %3297 = vmatprep.subr.bf16.mxu0 %v948
    %3298 = vmatpush1.bf16.msra.mxu0 %v947
    %3299 = vmatprep.subr.bf16.mxu0 %v950
    %3300 = vmatpush1.bf16.msra.mxu0 %v949
    %3301 = vmatprep.subr.bf16.mxu0 %v952
    %3302 = vmatpush1.bf16.msra.mxu0 %v951
    %3303 = vmatprep.subr.bf16.mxu0 0
    %3304 = vmatpush1.bf16.msra.mxu0 0
    %3305 = vmatprep.subr.bf16.mxu0 0
    %3306 = vmatpush1.bf16.msra.mxu0 0
    %3307 = vmatprep.subr.bf16.mxu0 0
    %3308 = vmatpush1.bf16.msra.mxu0 0
    %3309 = vmatprep.subr.bf16.mxu0 0
    %3310 = vmatpush1.bf16.msra.mxu0 0
    %3311 = vmatprep.subr.bf16.mxu0 0
    %3312 = vmatpush1.bf16.msra.mxu0 0
    %3313 = vmatprep.subr.bf16.mxu0 0
    %3314 = vmatpush1.bf16.msra.mxu0 0
    %3315 = vmatprep.subr.bf16.mxu0 0
    %3316 = vmatpush1.bf16.msra.mxu0 0
    %3317 = vmatprep.subr.bf16.mxu0 0
    %3318 = vmatpush1.bf16.msra.mxu0 0
    %3319 = vmatprep.mubr.bf16.mxu0 0
    %3320 = vmatmul.mubr.bf16.gmra.mrb[0].mxu0 %v3285
    %v3321 = vpop.f32.mrb[0].mxu0
    %v3322 = vadd.f32 0.0, %v3321
    %v3323 = vpop.f32.mrb[0].mxu0
    %v3324 = vadd.f32 0.0, %v3323
    %v3325 = vpop.f32.mrb[0].mxu0
    %v3326 = vpop.f32.mrb[0].mxu0
    %3327 = vdwg.mxu0
    %v3329 = vsel %vm614, %v3276, 0
    %3331 = vmatprep.subr.bf16.mxu0 %v1023
    %3332 = vmatpush1.bf16.msra.mxu0 %v1022
    %3333 = vmatprep.subr.bf16.mxu0 %v1025
    %3334 = vmatpush1.bf16.msra.mxu0 %v1024
    %3335 = vmatprep.subr.bf16.mxu0 0
    %3336 = vmatpush1.bf16.msra.mxu0 0
    %3337 = vmatprep.subr.bf16.mxu0 0
    %3338 = vmatpush1.bf16.msra.mxu0 0
    %3339 = vmatprep.subr.bf16.mxu0 0
    %3340 = vmatpush1.bf16.msra.mxu0 0
    %3341 = vmatprep.subr.bf16.mxu0 0
    %3342 = vmatpush1.bf16.msra.mxu0 0
    %3343 = vmatprep.subr.bf16.mxu0 0
    %3344 = vmatpush1.bf16.msra.mxu0 0
    %3345 = vmatprep.subr.bf16.mxu0 0
    %3346 = vmatpush1.bf16.msra.mxu0 0
    %3347 = vmatprep.subr.bf16.mxu0 0
    %3348 = vmatpush1.bf16.msra.mxu0 0
    %3349 = vmatprep.subr.bf16.mxu0 0
    %3350 = vmatpush1.bf16.msra.mxu0 0
    %3351 = vmatprep.subr.bf16.mxu0 0
    %3352 = vmatpush1.bf16.msra.mxu0 0
    %3353 = vmatprep.subr.bf16.mxu0 0
    %3354 = vmatpush1.bf16.msra.mxu0 0
    %3355 = vmatprep.subr.bf16.mxu0 0
    %3356 = vmatpush1.bf16.msra.mxu0 0
    %3357 = vmatprep.subr.bf16.mxu0 0
    %3358 = vmatpush1.bf16.msra.mxu0 0
    %3359 = vmatprep.subr.bf16.mxu0 0
    %3360 = vmatpush1.bf16.msra.mxu0 0
    %3361 = vmatprep.subr.bf16.mxu0 0
    %3362 = vmatpush1.bf16.msra.mxu0 0
    %3363 = vmatprep.mubr.bf16.mxu0 0
    %3364 = vmatmul.mubr.bf16.gmra.mrb[0].mxu0 %v3329
    %v3365 = vpop.f32.mrb[0].mxu0
    %v3366 = vadd.f32 %v3322, %v3365
    %v3367 = vpop.f32.mrb[0].mxu0
    %v3368 = vadd.f32 %v3324, %v3367
    %v3369 = vpop.f32.mrb[0].mxu0
    %v3370 = vpop.f32.mrb[0].mxu0
    %3371 = vdwg.mxu0
    %3372 = vmatprep.subr.bf16.mxu0 %v1099
    %3373 = vmatpush1.bf16.msra.mxu0 %v1098
    %3374 = vmatprep.subr.bf16.mxu0 %v1101
    %3375 = vmatpush1.bf16.msra.mxu0 %v1100
    %3376 = vmatprep.subr.bf16.mxu0 %v1103
    %3377 = vmatpush1.bf16.msra.mxu0 %v1102
    %3378 = vmatprep.subr.bf16.mxu0 %v1105
    %3379 = vmatpush1.bf16.msra.mxu0 %v1104
    %3380 = vmatprep.subr.bf16.mxu0 0
    %3381 = vmatpush1.bf16.msra.mxu0 0
    %3382 = vmatprep.subr.bf16.mxu0 0
    %3383 = vmatpush1.bf16.msra.mxu0 0
    %3384 = vmatprep.subr.bf16.mxu0 0
    %3385 = vmatpush1.bf16.msra.mxu0 0
    %3386 = vmatprep.subr.bf16.mxu0 0
    %3387 = vmatpush1.bf16.msra.mxu0 0
    %3388 = vmatprep.subr.bf16.mxu0 0
    %3389 = vmatpush1.bf16.msra.mxu0 0
    %3390 = vmatprep.subr.bf16.mxu0 0
    %3391 = vmatpush1.bf16.msra.mxu0 0
    %3392 = vmatprep.subr.bf16.mxu0 0
    %3393 = vmatpush1.bf16.msra.mxu0 0
    %3394 = vmatprep.subr.bf16.mxu0 0
    %3395 = vmatpush1.bf16.msra.mxu0 0
    %3396 = vmatprep.subr.bf16.mxu0 0
    %3397 = vmatpush1.bf16.msra.mxu0 0
    %3398 = vmatprep.subr.bf16.mxu0 0
    %3399 = vmatpush1.bf16.msra.mxu0 0
    %3400 = vmatprep.subr.bf16.mxu0 0
    %3401 = vmatpush1.bf16.msra.mxu0 0
    %3402 = vmatprep.subr.bf16.mxu0 0
    %3403 = vmatpush1.bf16.msra.mxu0 0
    %3404 = vmatprep.mubr.bf16.mxu0 0
    %3405 = vmatmul.mubr.bf16.gmra.mrb[0].mxu0 %v2940
    %v3406 = vpop.f32.mrb[0].mxu0
    %v3407 = vadd.f32 0.0, %v3406
    %v3408 = vpop.f32.mrb[0].mxu0
    %v3409 = vadd.f32 0.0, %v3408
    %v3410 = vpop.f32.mrb[0].mxu0
    %v3411 = vpop.f32.mrb[0].mxu0
    %3412 = vdwg.mxu0
    %v3413 = vadd.f32 %v3366, %v3407
    %v3414 = vadd.f32 %v3368, %v3409
    %v3415 = vadd.f32 %v3413, %v1161
    %v3416 = vadd.f32 %v3414, %v1165
    %v3417 = vxor.u32 %v3415, 2147483648
    %v3418 = vmul.f32 %v3417, 1.442695
    %v3419 = vpow.pop %v3418
    %v3420 = vadd.f32 %v3419, 1.0
    %v3421 = vrcp.pop %v3420
    %v3422 = vmul.f32 1.0, %v3421
    %v3423 = vtanh.pop %v3416
    %v3424 = vxor.u32 %v3416, 2147483648
    %v3425 = vmul.f32 %v3424, 1.442695
    %v3426 = vpow.pop %v3425
    %v3427 = vadd.f32 %v3426, 1.0
    %v3428 = vrcp.pop %v3427
    %v3429 = vmul.f32 1.0, %v3428
    %v3430 = vmul.f32 %v3422, %v2875
    %v3431 = vmul.f32 %v3422, %v3423
    %3433 = vrot.lane.b32.xlu0 %v3431, 64
    %v3434 = vpop.permute.xlu0 %3433
    %v3436 = vadd.f32 %v3430, %v3434
    %v3437 = vtanh.pop %v3436
    %v3438 = vmul.f32 %v3429, %v3437
    %v3439 = vpack.c.bf16 %v3438, %v3438
    %v3442 = vunpack.c.l.s4 1966171168
    %v3443 = vunpack.c.0.s8 %v3442
    %v3444 = vlaneseq
    %v3445 = vshrl.u32 %v3444, 7
    %v3446 = vsub.s32 %v3443, %v3445
    %v3447 = vrot.slane %v3439, %v3446
    %v3449 = vunpack.c.l.s4 1966171168
    %v3450 = vunpack.c.0.s8 %v3449
    %v3451 = vlaneseq
    %v3452 = vshrl.u32 %v3451, 7
    %v3453 = vsub.s32 %v3450, %v3452
    %v3454 = vrot.slane %v3447, %v3453
    %3455 = vrot.lane.b32.xlu0 %v3454, 64
    %v3456 = vpop.permute.xlu0 %3455
    %s3458 = scalar_lea.vmem %s16, 4
    %3459 = vst.msk [vmem:[%s3458] sm:$0x1] %vm1215, %v3456
    %3464 = vset.pattern.permute.xlu0 0
    %3465 = vperm.xlu0 %3464, %v3144
    %v3466 = vpop.permute.xlu0 %3465
    %3467 = vset.pattern.permute.xlu0 0
    %3468 = vperm.xlu0 %3467, %v3145
    %v3469 = vpop.permute.xlu0 %3468
    %3470 = vset.pattern.permute.xlu0 0
    %3471 = vperm.xlu0 %3470, %v3147
    %v3472 = vpop.permute.xlu0 %3471
    %3473 = vset.pattern.permute.xlu0 0
    %3474 = vperm.xlu0 %3473, %v3148
    %v3475 = vpop.permute.xlu0 %3474
    %v3476 = vlaneseq
    %v3477 = vshrl.u32 %v3476, 7
    %v3478 = vsub.s32 %v645, %v3477
    %v3479 = vrot.slane %v3466, %v3478
    %v3480 = vlaneseq
    %v3481 = vshrl.u32 %v3480, 7
    %v3482 = vsub.s32 %v650, %v3481
    %v3483 = vrot.slane %v3469, %v3482
    %v3484 = vsel %vm655, %v3483, %v3479
    %v3485 = vlaneseq
    %v3486 = vshrl.u32 %v3485, 7
    %v3487 = vsub.s32 %v645, %v3486
    %v3488 = vrot.slane %v3472, %v3487
    %v3489 = vlaneseq
    %v3490 = vshrl.u32 %v3489, 7
    %v3491 = vsub.s32 %v650, %v3490
    %v3492 = vrot.slane %v3475, %v3491
    %v3493 = vsel %vm655, %v3492, %v3488
    %v3494 = vsel %vm113, %v3493, %v3484
    %s3496 = scalar_lea.vmem [#allocation3], 8
    %3497 = vst.msk [vmem:[%s3496] sm:$0x3] %vm668, %v3494
    %3498 = vrot.lane.b32.xlu0 %v3439, 64
    %v3499 = vpop.permute.xlu0 %3498
    %v3501 = vsel %vm519, %v3499, 0
    %3503 = vmatprep.subr.bf16.mxu0 0
    %3504 = vmatpush1.bf16.msra.mxu0 %v511
    %3505 = vmatprep.subr.bf16.mxu0 0
    %3506 = vmatpush1.bf16.msra.mxu0 %v512
    %3507 = vmatprep.subr.bf16.mxu0 0
    %3508 = vmatpush1.bf16.msra.mxu0 %v513
    %3509 = vmatprep.subr.bf16.mxu0 0
    %3510 = vmatpush1.bf16.msra.mxu0 %v514
    %3511 = vmatprep.subr.bf16.mxu0 0
    %3512 = vmatpush1.bf16.msra.mxu0 0
    %3513 = vmatprep.subr.bf16.mxu0 0
    %3514 = vmatpush1.bf16.msra.mxu0 0
    %3515 = vmatprep.subr.bf16.mxu0 0
    %3516 = vmatpush1.bf16.msra.mxu0 0
    %3517 = vmatprep.subr.bf16.mxu0 0
    %3518 = vmatpush1.bf16.msra.mxu0 0
    %3519 = vmatprep.subr.bf16.mxu0 0
    %3520 = vmatpush1.bf16.msra.mxu0 0
    %3521 = vmatprep.subr.bf16.mxu0 0
    %3522 = vmatpush1.bf16.msra.mxu0 0
    %3523 = vmatprep.subr.bf16.mxu0 0
    %3524 = vmatpush1.bf16.msra.mxu0 0
    %3525 = vmatprep.subr.bf16.mxu0 0
    %3526 = vmatpush1.bf16.msra.mxu0 0
    %3527 = vmatprep.subr.bf16.mxu0 0
    %3528 = vmatpush1.bf16.msra.mxu0 0
    %3529 = vmatprep.subr.bf16.mxu0 0
    %3530 = vmatpush1.bf16.msra.mxu0 0
    %3531 = vmatprep.subr.bf16.mxu0 0
    %3532 = vmatpush1.bf16.msra.mxu0 0
    %3533 = vmatprep.subr.bf16.mxu0 0
    %3534 = vmatpush1.bf16.msra.mxu0 0
    %3535 = vmatprep.mubr.bf16.mxu0 0
    %3536 = vmatmul.mubr.bf16.gmra.mrb[0].mxu0 %v3501
    %v3537 = vpop.f32.mrb[0].mxu0
    %v3538 = vadd.f32 %v493, %v3537
    %v3539 = vpop.f32.mrb[0].mxu0
    %v3540 = vpop.f32.mrb[0].mxu0
    %v3541 = vpop.f32.mrb[0].mxu0
    %3542 = vdwg.mxu0
    %v3545 = vunpack.c.l.s4 1966171168
    %v3546 = vunpack.c.0.s8 %v3545
    %v3547 = vlaneseq
    %v3548 = vshrl.u32 %v3547, 7
    %v3549 = vsub.s32 %v3546, %v3548
    %v3550 = vrot.slane %v3538, %v3549
    %v3551 = vcombine.high %v3550, %v3550
    %v3553 = vunpack.c.l.s4 1966171168
    %v3554 = vunpack.c.0.s8 %v3553
    %v3555 = vlaneseq
    %v3556 = vshrl.u32 %v3555, 7
    %v3557 = vsub.s32 %v3554, %v3556
    %v3558 = vrot.slane %v3550, %v3557
    %v3560 = vunpack.c.l.s4 1966171168
    %v3561 = vunpack.c.0.s8 %v3560
    %v3562 = vlaneseq
    %v3563 = vshrl.u32 %v3562, 7
    %v3564 = vsub.s32 %v3561, %v3563
    %v3565 = vrot.slane %v3551, %v3564
    %v3566 = vlaneseq
    %v3567 = vshrl.u32 %v3566, 7
    %v3568 = vsub.s32 0, %v3567
    %v3569 = vrot.slane %v3558, %v3568
    %v3570 = vlaneseq
    %v3571 = vshrl.u32 %v3570, 7
    %v3572 = vsub.s32 0, %v3571
    %v3573 = vrot.slane %v3565, %v3572
    %v3576 = vadd.f32 %v434, %v3569
    %v3577 = vadd.f32 %v437, %v3569
    %v3578 = vadd.f32 %v442, %v3573
    %v3579 = vadd.f32 %v445, %v3573
    %v3580 = vtanh.pop %v3576
    %v3581 = vtanh.pop %v3577
    %v3582 = vtanh.pop %v3578
    %v3583 = vtanh.pop %v3579
    %v3584 = vmul.f32 %v3580, %v608
    %v3585 = vmul.f32 %v3581, %v608
    %v3586 = vmul.f32 %v3582, %v608
    %v3587 = vmul.f32 %v3583, %v608
    %v3588 = vsel %vm614, %v3584, 0.0
    %3589 = vadd.xlane.f32.xlu0 %v3588
    %v3590 = vpop.xlane.xlu0 %3589
    %v3591 = vsel %vm614, %v3585, 0.0
    %3592 = vadd.xlane.f32.xlu0 %v3591
    %v3593 = vpop.xlane.xlu0 %3592
    %v3594 = vsel %vm614, %v3586, 0.0
    %3595 = vadd.xlane.f32.xlu0 %v3594
    %v3596 = vpop.xlane.xlu0 %3595
    %v3597 = vsel %vm614, %v3587, 0.0
    %3598 = vadd.xlane.f32.xlu0 %v3597
    %v3599 = vpop.xlane.xlu0 %3598
    %v3600 = vadd.f32 %v3590, %v634
    %v3601 = vadd.f32 %v3593, %v634
    %v3602 = vadd.f32 %v3596, %v634
    %v3603 = vadd.f32 %v3599, %v634
    %v3608 = vlaneseq
    %v3609 = vshrl.u32 %v3608, 7
    %v3610 = vsub.s32 %v645, %v3609
    %v3611 = vrot.slane %v3600, %v3610
    %v3612 = vlaneseq
    %v3613 = vshrl.u32 %v3612, 7
    %v3614 = vsub.s32 %v650, %v3613
    %v3615 = vrot.slane %v3601, %v3614
    %v3616 = vsel %vm655, %v3615, %v3611
    %v3617 = vlaneseq
    %v3618 = vshrl.u32 %v3617, 7
    %v3619 = vsub.s32 %v645, %v3618
    %v3620 = vrot.slane %v3602, %v3619
    %v3621 = vlaneseq
    %v3622 = vshrl.u32 %v3621, 7
    %v3623 = vsub.s32 %v650, %v3622
    %v3624 = vrot.slane %v3603, %v3623
    %v3625 = vsel %vm655, %v3624, %v3620
    %v3626 = vsel %vm113, %v3625, %v3616
    %v3628 = vsel %vm668, %v3626, -inf
    %3629 = vmax.xlane.f32.xlu0 %v3628
    %v3630 = vpop.xlane.xlu0 %3629
    %v3632 = vlaneseq
    %v3633 = vshrl.u32 %v3632, 7
    %v3634 = vsub.s32 0, %v3633
    %v3635 = vrot.slane %v3630, %v3634
    %v3636 = vlaneseq
    %v3637 = vshrl.u32 %v3636, 7
    %v3638 = vsub.s32 1, %v3637
    %v3639 = vrot.slane %v3630, %v3638
    %v3642 = vsub.f32 %v3600, %v3635
    %v3643 = vsub.f32 %v3601, %v3635
    %v3644 = vsub.f32 %v3602, %v3639
    %v3645 = vsub.f32 %v3603, %v3639
    %v3646 = vmul.f32 %v3642, 1.442695
    %v3647 = vpow.pop %v3646
    %v3648 = vmul.f32 %v3643, 1.442695
    %v3649 = vpow.pop %v3648
    %v3650 = vmul.f32 %v3644, 1.442695
    %v3651 = vpow.pop %v3650
    %v3652 = vmul.f32 %v3645, 1.442695
    %v3653 = vpow.pop %v3652
    %3658 = vset.pattern.permute.xlu0 0
    %3659 = vperm.xlu0 %3658, %v3647
    %v3660 = vpop.permute.xlu0 %3659
    %3661 = vset.pattern.permute.xlu0 0
    %3662 = vperm.xlu0 %3661, %v3649
    %v3663 = vpop.permute.xlu0 %3662
    %3664 = vset.pattern.permute.xlu0 0
    %3665 = vperm.xlu0 %3664, %v3651
    %v3666 = vpop.permute.xlu0 %3665
    %3667 = vset.pattern.permute.xlu0 0
    %3668 = vperm.xlu0 %3667, %v3653
    %v3669 = vpop.permute.xlu0 %3668
    %v3670 = vlaneseq
    %v3671 = vshrl.u32 %v3670, 7
    %v3672 = vsub.s32 %v645, %v3671
    %v3673 = vrot.slane %v3660, %v3672
    %v3674 = vlaneseq
    %v3675 = vshrl.u32 %v3674, 7
    %v3676 = vsub.s32 %v650, %v3675
    %v3677 = vrot.slane %v3663, %v3676
    %v3678 = vsel %vm655, %v3677, %v3673
    %v3679 = vlaneseq
    %v3680 = vshrl.u32 %v3679, 7
    %v3681 = vsub.s32 %v645, %v3680
    %v3682 = vrot.slane %v3666, %v3681
    %v3683 = vlaneseq
    %v3684 = vshrl.u32 %v3683, 7
    %v3685 = vsub.s32 %v650, %v3684
    %v3686 = vrot.slane %v3669, %v3685
    %v3687 = vsel %vm655, %v3686, %v3682
    %v3688 = vsel %vm113, %v3687, %v3678
    %v3690 = vsel %vm668, %v3688, 0.0
    %3691 = vadd.xlane.f32.xlu0 %v3690
    %v3692 = vpop.xlane.xlu0 %3691
    %v3694 = vlaneseq
    %v3695 = vshrl.u32 %v3694, 7
    %v3696 = vsub.s32 0, %v3695
    %v3697 = vrot.slane %v3692, %v3696
    %v3698 = vlaneseq
    %v3699 = vshrl.u32 %v3698, 7
    %v3700 = vsub.s32 1, %v3699
    %v3701 = vrot.slane %v3692, %v3700
    %v3704 = vrcp.pop %v3697
    %v3705 = vmul.f32 %v3647, %v3704
    %v3706 = vmul.f32 %v3649, %v3704
    %v3707 = vrcp.pop %v3701
    %v3708 = vmul.f32 %v3651, %v3707
    %v3709 = vmul.f32 %v3653, %v3707
    %v3710 = vpack.c.bf16 %v3706, %v3705
    %v3711 = vpack.c.bf16 %v3709, %v3708
    %v3713 = vunpack.c.l.b16 %v3710
    %v3714 = vunpack.c.h.b16 %v3710
    %3715 = vset.pattern.permute.xlu0 0
    %3716 = vperm.xlu0 %3715, %v3713
    %v3717 = vpop.permute.xlu0 %3716
    %3718 = vset.pattern.permute.xlu0 0
    %3719 = vperm.xlu0 %3718, %v3714
    %v3720 = vpop.permute.xlu0 %3719
    %v3721 = vlaneseq
    %v3722 = vshrl.u32 %v3721, 7
    %v3723 = vsub.s32 %v645, %v3722
    %v3724 = vrot.slane %v3717, %v3723
    %v3725 = vlaneseq
    %v3726 = vshrl.u32 %v3725, 7
    %v3727 = vsub.s32 %v650, %v3726
    %v3728 = vrot.slane %v3720, %v3727
    %v3729 = vsel %vm655, %v3728, %v3724
    %v3730 = vpack.c.b16 %v3729, %v3729
    %v3732 = vsel %vm772, %v3730, 0
    %3734 = vmatprep.subr.bf16.mxu0 0
    %3735 = vmatpush1.bf16.msra.mxu0 %v347
    %3736 = vmatprep.subr.bf16.mxu0 0
    %3737 = vmatpush1.bf16.msra.mxu0 0
    %3738 = vmatprep.subr.bf16.mxu0 0
    %3739 = vmatpush1.bf16.msra.mxu0 0
    %3740 = vmatprep.subr.bf16.mxu0 0
    %3741 = vmatpush1.bf16.msra.mxu0 0
    %3742 = vmatprep.subr.bf16.mxu0 0
    %3743 = vmatpush1.bf16.msra.mxu0 0
    %3744 = vmatprep.subr.bf16.mxu0 0
    %3745 = vmatpush1.bf16.msra.mxu0 0
    %3746 = vmatprep.subr.bf16.mxu0 0
    %3747 = vmatpush1.bf16.msra.mxu0 0
    %3748 = vmatprep.subr.bf16.mxu0 0
    %3749 = vmatpush1.bf16.msra.mxu0 0
    %3750 = vmatprep.subr.bf16.mxu0 0
    %3751 = vmatpush1.bf16.msra.mxu0 0
    %3752 = vmatprep.subr.bf16.mxu0 0
    %3753 = vmatpush1.bf16.msra.mxu0 0
    %3754 = vmatprep.subr.bf16.mxu0 0
    %3755 = vmatpush1.bf16.msra.mxu0 0
    %3756 = vmatprep.subr.bf16.mxu0 0
    %3757 = vmatpush1.bf16.msra.mxu0 0
    %3758 = vmatprep.subr.bf16.mxu0 0
    %3759 = vmatpush1.bf16.msra.mxu0 0
    %3760 = vmatprep.subr.bf16.mxu0 0
    %3761 = vmatpush1.bf16.msra.mxu0 0
    %3762 = vmatprep.subr.bf16.mxu0 0
    %3763 = vmatpush1.bf16.msra.mxu0 0
    %3764 = vmatprep.subr.bf16.mxu0 0
    %3765 = vmatpush1.bf16.msra.mxu0 0
    %3766 = vmatprep.mubr.bf16.mxu0 0
    %3767 = vmatmul.mubr.bf16.gmra.mrb[0].mxu0 %v3732
    %v3768 = vpop.f32.mrb[0].mxu0
    %v3769 = vadd.f32 0.0, %v3768
    %v3770 = vpop.f32.mrb[0].mxu0
    %v3771 = vpop.f32.mrb[0].mxu0
    %v3772 = vpop.f32.mrb[0].mxu0
    %3773 = vdwg.mxu0
    %v3775 = vunpack.c.l.b16 %v3711
    %v3776 = vunpack.c.h.b16 %v3711
    %3777 = vset.pattern.permute.xlu0 0
    %3778 = vperm.xlu0 %3777, %v3775
    %v3779 = vpop.permute.xlu0 %3778
    %3780 = vset.pattern.permute.xlu0 0
    %3781 = vperm.xlu0 %3780, %v3776
    %v3782 = vpop.permute.xlu0 %3781
    %v3783 = vlaneseq
    %v3784 = vshrl.u32 %v3783, 7
    %v3785 = vsub.s32 %v645, %v3784
    %v3786 = vrot.slane %v3779, %v3785
    %v3787 = vlaneseq
    %v3788 = vshrl.u32 %v3787, 7
    %v3789 = vsub.s32 %v650, %v3788
    %v3790 = vrot.slane %v3782, %v3789
    %v3791 = vsel %vm655, %v3790, %v3786
    %v3792 = vpack.c.b16 %v3791, %v3791
    %v3794 = vsel %vm772, %v3792, 0
    %3796 = vmatprep.subr.bf16.mxu0 0
    %3797 = vmatpush1.bf16.msra.mxu0 %v348
    %3798 = vmatprep.subr.bf16.mxu0 0
    %3799 = vmatpush1.bf16.msra.mxu0 0
    %3800 = vmatprep.subr.bf16.mxu0 0
    %3801 = vmatpush1.bf16.msra.mxu0 0
    %3802 = vmatprep.subr.bf16.mxu0 0
    %3803 = vmatpush1.bf16.msra.mxu0 0
    %3804 = vmatprep.subr.bf16.mxu0 0
    %3805 = vmatpush1.bf16.msra.mxu0 0
    %3806 = vmatprep.subr.bf16.mxu0 0
    %3807 = vmatpush1.bf16.msra.mxu0 0
    %3808 = vmatprep.subr.bf16.mxu0 0
    %3809 = vmatpush1.bf16.msra.mxu0 0
    %3810 = vmatprep.subr.bf16.mxu0 0
    %3811 = vmatpush1.bf16.msra.mxu0 0
    %3812 = vmatprep.subr.bf16.mxu0 0
    %3813 = vmatpush1.bf16.msra.mxu0 0
    %3814 = vmatprep.subr.bf16.mxu0 0
    %3815 = vmatpush1.bf16.msra.mxu0 0
    %3816 = vmatprep.subr.bf16.mxu0 0
    %3817 = vmatpush1.bf16.msra.mxu0 0
    %3818 = vmatprep.subr.bf16.mxu0 0
    %3819 = vmatpush1.bf16.msra.mxu0 0
    %3820 = vmatprep.subr.bf16.mxu0 0
    %3821 = vmatpush1.bf16.msra.mxu0 0
    %3822 = vmatprep.subr.bf16.mxu0 0
    %3823 = vmatpush1.bf16.msra.mxu0 0
    %3824 = vmatprep.subr.bf16.mxu0 0
    %3825 = vmatpush1.bf16.msra.mxu0 0
    %3826 = vmatprep.subr.bf16.mxu0 0
    %3827 = vmatpush1.bf16.msra.mxu0 0
    %3828 = vmatprep.mubr.bf16.mxu0 0
    %3829 = vmatmul.mubr.bf16.gmra.mrb[0].mxu0 %v3794
    %v3830 = vpop.f32.mrb[0].mxu0
    %v3831 = vadd.f32 0.0, %v3830
    %v3832 = vpop.f32.mrb[0].mxu0
    %v3833 = vpop.f32.mrb[0].mxu0
    %v3834 = vpop.f32.mrb[0].mxu0
    %3835 = vdwg.mxu0
    %s3836 = scalar_lea.vmem %s1, 5
    %v3837 = vld [vmem:[%s3836] sm:$0x1]
    %v3838 = vpack.c.bf16 %v3769, %v3769
    %v3839 = vpack.c.bf16 %v3831, %v3831
    %v3842 = vunpack.c.l.b16 %v3838
    %v3843 = vunpack.c.l.b16 %v3839
    %v3844 = vrot.slane %v3843, 7
    %v3845 = vsel %vm113, %v3844, %v3842
    %v3846 = vpack.c.b16 %v3845, %v3845
    %3848 = vmatprep.subr.bf16.mxu0 %v938
    %3849 = vmatpush1.bf16.msra.mxu0 %v937
    %3850 = vmatprep.subr.bf16.mxu0 %v940
    %3851 = vmatpush1.bf16.msra.mxu0 %v939
    %3852 = vmatprep.subr.bf16.mxu0 %v942
    %3853 = vmatpush1.bf16.msra.mxu0 %v941
    %3854 = vmatprep.subr.bf16.mxu0 %v944
    %3855 = vmatpush1.bf16.msra.mxu0 %v943
    %3856 = vmatprep.subr.bf16.mxu0 %v946
    %3857 = vmatpush1.bf16.msra.mxu0 %v945
    %3858 = vmatprep.subr.bf16.mxu0 %v948
    %3859 = vmatpush1.bf16.msra.mxu0 %v947
    %3860 = vmatprep.subr.bf16.mxu0 %v950
    %3861 = vmatpush1.bf16.msra.mxu0 %v949
    %3862 = vmatprep.subr.bf16.mxu0 %v952
    %3863 = vmatpush1.bf16.msra.mxu0 %v951
    %3864 = vmatprep.subr.bf16.mxu0 0
    %3865 = vmatpush1.bf16.msra.mxu0 0
    %3866 = vmatprep.subr.bf16.mxu0 0
    %3867 = vmatpush1.bf16.msra.mxu0 0
    %3868 = vmatprep.subr.bf16.mxu0 0
    %3869 = vmatpush1.bf16.msra.mxu0 0
    %3870 = vmatprep.subr.bf16.mxu0 0
    %3871 = vmatpush1.bf16.msra.mxu0 0
    %3872 = vmatprep.subr.bf16.mxu0 0
    %3873 = vmatpush1.bf16.msra.mxu0 0
    %3874 = vmatprep.subr.bf16.mxu0 0
    %3875 = vmatpush1.bf16.msra.mxu0 0
    %3876 = vmatprep.subr.bf16.mxu0 0
    %3877 = vmatpush1.bf16.msra.mxu0 0
    %3878 = vmatprep.subr.bf16.mxu0 0
    %3879 = vmatpush1.bf16.msra.mxu0 0
    %3880 = vmatprep.mubr.bf16.mxu0 0
    %3881 = vmatmul.mubr.bf16.gmra.mrb[0].mxu0 %v3846
    %v3882 = vpop.f32.mrb[0].mxu0
    %v3883 = vadd.f32 0.0, %v3882
    %v3884 = vpop.f32.mrb[0].mxu0
    %v3885 = vadd.f32 0.0, %v3884
    %v3886 = vpop.f32.mrb[0].mxu0
    %v3887 = vpop.f32.mrb[0].mxu0
    %3888 = vdwg.mxu0
    %v3890 = vsel %vm614, %v3837, 0
    %3892 = vmatprep.subr.bf16.mxu0 %v1023
    %3893 = vmatpush1.bf16.msra.mxu0 %v1022
    %3894 = vmatprep.subr.bf16.mxu0 %v1025
    %3895 = vmatpush1.bf16.msra.mxu0 %v1024
    %3896 = vmatprep.subr.bf16.mxu0 0
    %3897 = vmatpush1.bf16.msra.mxu0 0
    %3898 = vmatprep.subr.bf16.mxu0 0
    %3899 = vmatpush1.bf16.msra.mxu0 0
    %3900 = vmatprep.subr.bf16.mxu0 0
    %3901 = vmatpush1.bf16.msra.mxu0 0
    %3902 = vmatprep.subr.bf16.mxu0 0
    %3903 = vmatpush1.bf16.msra.mxu0 0
    %3904 = vmatprep.subr.bf16.mxu0 0
    %3905 = vmatpush1.bf16.msra.mxu0 0
    %3906 = vmatprep.subr.bf16.mxu0 0
    %3907 = vmatpush1.bf16.msra.mxu0 0
    %3908 = vmatprep.subr.bf16.mxu0 0
    %3909 = vmatpush1.bf16.msra.mxu0 0
    %3910 = vmatprep.subr.bf16.mxu0 0
    %3911 = vmatpush1.bf16.msra.mxu0 0
    %3912 = vmatprep.subr.bf16.mxu0 0
    %3913 = vmatpush1.bf16.msra.mxu0 0
    %3914 = vmatprep.subr.bf16.mxu0 0
    %3915 = vmatpush1.bf16.msra.mxu0 0
    %3916 = vmatprep.subr.bf16.mxu0 0
    %3917 = vmatpush1.bf16.msra.mxu0 0
    %3918 = vmatprep.subr.bf16.mxu0 0
    %3919 = vmatpush1.bf16.msra.mxu0 0
    %3920 = vmatprep.subr.bf16.mxu0 0
    %3921 = vmatpush1.bf16.msra.mxu0 0
    %3922 = vmatprep.subr.bf16.mxu0 0
    %3923 = vmatpush1.bf16.msra.mxu0 0
    %3924 = vmatprep.mubr.bf16.mxu0 0
    %3925 = vmatmul.mubr.bf16.gmra.mrb[0].mxu0 %v3890
    %v3926 = vpop.f32.mrb[0].mxu0
    %v3927 = vadd.f32 %v3883, %v3926
    %v3928 = vpop.f32.mrb[0].mxu0
    %v3929 = vadd.f32 %v3885, %v3928
    %v3930 = vpop.f32.mrb[0].mxu0
    %v3931 = vpop.f32.mrb[0].mxu0
    %3932 = vdwg.mxu0
    %3933 = vmatprep.subr.bf16.mxu0 %v1099
    %3934 = vmatpush1.bf16.msra.mxu0 %v1098
    %3935 = vmatprep.subr.bf16.mxu0 %v1101
    %3936 = vmatpush1.bf16.msra.mxu0 %v1100
    %3937 = vmatprep.subr.bf16.mxu0 %v1103
    %3938 = vmatpush1.bf16.msra.mxu0 %v1102
    %3939 = vmatprep.subr.bf16.mxu0 %v1105
    %3940 = vmatpush1.bf16.msra.mxu0 %v1104
    %3941 = vmatprep.subr.bf16.mxu0 0
    %3942 = vmatpush1.bf16.msra.mxu0 0
    %3943 = vmatprep.subr.bf16.mxu0 0
    %3944 = vmatpush1.bf16.msra.mxu0 0
    %3945 = vmatprep.subr.bf16.mxu0 0
    %3946 = vmatpush1.bf16.msra.mxu0 0
    %3947 = vmatprep.subr.bf16.mxu0 0
    %3948 = vmatpush1.bf16.msra.mxu0 0
    %3949 = vmatprep.subr.bf16.mxu0 0
    %3950 = vmatpush1.bf16.msra.mxu0 0
    %3951 = vmatprep.subr.bf16.mxu0 0
    %3952 = vmatpush1.bf16.msra.mxu0 0
    %3953 = vmatprep.subr.bf16.mxu0 0
    %3954 = vmatpush1.bf16.msra.mxu0 0
    %3955 = vmatprep.subr.bf16.mxu0 0
    %3956 = vmatpush1.bf16.msra.mxu0 0
    %3957 = vmatprep.subr.bf16.mxu0 0
    %3958 = vmatpush1.bf16.msra.mxu0 0
    %3959 = vmatprep.subr.bf16.mxu0 0
    %3960 = vmatpush1.bf16.msra.mxu0 0
    %3961 = vmatprep.subr.bf16.mxu0 0
    %3962 = vmatpush1.bf16.msra.mxu0 0
    %3963 = vmatprep.subr.bf16.mxu0 0
    %3964 = vmatpush1.bf16.msra.mxu0 0
    %3965 = vmatprep.mubr.bf16.mxu0 0
    %3966 = vmatmul.mubr.bf16.gmra.mrb[0].mxu0 %v3501
    %v3967 = vpop.f32.mrb[0].mxu0
    %v3968 = vadd.f32 0.0, %v3967
    %v3969 = vpop.f32.mrb[0].mxu0
    %v3970 = vadd.f32 0.0, %v3969
    %v3971 = vpop.f32.mrb[0].mxu0
    %v3972 = vpop.f32.mrb[0].mxu0
    %3973 = vdwg.mxu0
    %v3974 = vadd.f32 %v3927, %v3968
    %v3975 = vadd.f32 %v3929, %v3970
    %v3976 = vadd.f32 %v3974, %v1161
    %v3977 = vadd.f32 %v3975, %v1165
    %v3978 = vxor.u32 %v3976, 2147483648
    %v3979 = vmul.f32 %v3978, 1.442695
    %v3980 = vpow.pop %v3979
    %v3981 = vadd.f32 %v3980, 1.0
    %v3982 = vrcp.pop %v3981
    %v3983 = vmul.f32 1.0, %v3982
    %v3984 = vtanh.pop %v3977
    %v3985 = vxor.u32 %v3977, 2147483648
    %v3986 = vmul.f32 %v3985, 1.442695
    %v3987 = vpow.pop %v3986
    %v3988 = vadd.f32 %v3987, 1.0
    %v3989 = vrcp.pop %v3988
    %v3990 = vmul.f32 1.0, %v3989
    %v3991 = vmul.f32 %v3983, %v3436
    %v3992 = vmul.f32 %v3983, %v3984
    %3994 = vrot.lane.b32.xlu0 %v3992, 64
    %v3995 = vpop.permute.xlu0 %3994
    %v3997 = vadd.f32 %v3991, %v3995
    %v3998 = vtanh.pop %v3997
    %v3999 = vmul.f32 %v3990, %v3998
    %v4000 = vpack.c.bf16 %v3999, %v3999
    %v4003 = vunpack.c.l.s4 1966171168
    %v4004 = vunpack.c.0.s8 %v4003
    %v4005 = vlaneseq
    %v4006 = vshrl.u32 %v4005, 7
    %v4007 = vsub.s32 %v4004, %v4006
    %v4008 = vrot.slane %v4000, %v4007
    %v4010 = vunpack.c.l.s4 1966171168
    %v4011 = vunpack.c.0.s8 %v4010
    %v4012 = vlaneseq
    %v4013 = vshrl.u32 %v4012, 7
    %v4014 = vsub.s32 %v4011, %v4013
    %v4015 = vrot.slane %v4008, %v4014
    %4016 = vrot.lane.b32.xlu0 %v4015, 64
    %v4017 = vpop.permute.xlu0 %4016
    %s4019 = scalar_lea.vmem %s16, 5
    %4020 = vst.msk [vmem:[%s4019] sm:$0x1] %vm1215, %v4017
    %4025 = vset.pattern.permute.xlu0 0
    %4026 = vperm.xlu0 %4025, %v3705
    %v4027 = vpop.permute.xlu0 %4026
    %4028 = vset.pattern.permute.xlu0 0
    %4029 = vperm.xlu0 %4028, %v3706
    %v4030 = vpop.permute.xlu0 %4029
    %4031 = vset.pattern.permute.xlu0 0
    %4032 = vperm.xlu0 %4031, %v3708
    %v4033 = vpop.permute.xlu0 %4032
    %4034 = vset.pattern.permute.xlu0 0
    %4035 = vperm.xlu0 %4034, %v3709
    %v4036 = vpop.permute.xlu0 %4035
    %v4037 = vlaneseq
    %v4038 = vshrl.u32 %v4037, 7
    %v4039 = vsub.s32 %v645, %v4038
    %v4040 = vrot.slane %v4027, %v4039
    %v4041 = vlaneseq
    %v4042 = vshrl.u32 %v4041, 7
    %v4043 = vsub.s32 %v650, %v4042
    %v4044 = vrot.slane %v4030, %v4043
    %v4045 = vsel %vm655, %v4044, %v4040
    %v4046 = vlaneseq
    %v4047 = vshrl.u32 %v4046, 7
    %v4048 = vsub.s32 %v645, %v4047
    %v4049 = vrot.slane %v4033, %v4048
    %v4050 = vlaneseq
    %v4051 = vshrl.u32 %v4050, 7
    %v4052 = vsub.s32 %v650, %v4051
    %v4053 = vrot.slane %v4036, %v4052
    %v4054 = vsel %vm655, %v4053, %v4049
    %v4055 = vsel %vm113, %v4054, %v4045
    %s4057 = scalar_lea.vmem [#allocation3], 10
    %4058 = vst.msk [vmem:[%s4057] sm:$0x3] %vm668, %v4055
    %4059 = vrot.lane.b32.xlu0 %v4000, 64
    %v4060 = vpop.permute.xlu0 %4059
    %v4062 = vsel %vm519, %v4060, 0
    %4064 = vmatprep.subr.bf16.mxu0 0
    %4065 = vmatpush1.bf16.msra.mxu0 %v511
    %4066 = vmatprep.subr.bf16.mxu0 0
    %4067 = vmatpush1.bf16.msra.mxu0 %v512
    %4068 = vmatprep.subr.bf16.mxu0 0
    %4069 = vmatpush1.bf16.msra.mxu0 %v513
    %4070 = vmatprep.subr.bf16.mxu0 0
    %4071 = vmatpush1.bf16.msra.mxu0 %v514
    %4072 = vmatprep.subr.bf16.mxu0 0
    %4073 = vmatpush1.bf16.msra.mxu0 0
    %4074 = vmatprep.subr.bf16.mxu0 0
    %4075 = vmatpush1.bf16.msra.mxu0 0
    %4076 = vmatprep.subr.bf16.mxu0 0
    %4077 = vmatpush1.bf16.msra.mxu0 0
    %4078 = vmatprep.subr.bf16.mxu0 0
    %4079 = vmatpush1.bf16.msra.mxu0 0
    %4080 = vmatprep.subr.bf16.mxu0 0
    %4081 = vmatpush1.bf16.msra.mxu0 0
    %4082 = vmatprep.subr.bf16.mxu0 0
    %4083 = vmatpush1.bf16.msra.mxu0 0
    %4084 = vmatprep.subr.bf16.mxu0 0
    %4085 = vmatpush1.bf16.msra.mxu0 0
    %4086 = vmatprep.subr.bf16.mxu0 0
    %4087 = vmatpush1.bf16.msra.mxu0 0
    %4088 = vmatprep.subr.bf16.mxu0 0
    %4089 = vmatpush1.bf16.msra.mxu0 0
    %4090 = vmatprep.subr.bf16.mxu0 0
    %4091 = vmatpush1.bf16.msra.mxu0 0
    %4092 = vmatprep.subr.bf16.mxu0 0
    %4093 = vmatpush1.bf16.msra.mxu0 0
    %4094 = vmatprep.subr.bf16.mxu0 0
    %4095 = vmatpush1.bf16.msra.mxu0 0
    %4096 = vmatprep.mubr.bf16.mxu0 0
    %4097 = vmatmul.mubr.bf16.gmra.mrb[0].mxu0 %v4062
    %v4098 = vpop.f32.mrb[0].mxu0
    %v4099 = vadd.f32 %v493, %v4098
    %v4100 = vpop.f32.mrb[0].mxu0
    %v4101 = vpop.f32.mrb[0].mxu0
    %v4102 = vpop.f32.mrb[0].mxu0
    %4103 = vdwg.mxu0
    %v4106 = vunpack.c.l.s4 1966171168
    %v4107 = vunpack.c.0.s8 %v4106
    %v4108 = vlaneseq
    %v4109 = vshrl.u32 %v4108, 7
    %v4110 = vsub.s32 %v4107, %v4109
    %v4111 = vrot.slane %v4099, %v4110
    %v4112 = vcombine.high %v4111, %v4111
    %v4114 = vunpack.c.l.s4 1966171168
    %v4115 = vunpack.c.0.s8 %v4114
    %v4116 = vlaneseq
    %v4117 = vshrl.u32 %v4116, 7
    %v4118 = vsub.s32 %v4115, %v4117
    %v4119 = vrot.slane %v4111, %v4118
    %v4121 = vunpack.c.l.s4 1966171168
    %v4122 = vunpack.c.0.s8 %v4121
    %v4123 = vlaneseq
    %v4124 = vshrl.u32 %v4123, 7
    %v4125 = vsub.s32 %v4122, %v4124
    %v4126 = vrot.slane %v4112, %v4125
    %v4127 = vlaneseq
    %v4128 = vshrl.u32 %v4127, 7
    %v4129 = vsub.s32 0, %v4128
    %v4130 = vrot.slane %v4119, %v4129
    %v4131 = vlaneseq
    %v4132 = vshrl.u32 %v4131, 7
    %v4133 = vsub.s32 0, %v4132
    %v4134 = vrot.slane %v4126, %v4133
    %v4137 = vadd.f32 %v434, %v4130
    %v4138 = vadd.f32 %v437, %v4130
    %v4139 = vadd.f32 %v442, %v4134
    %v4140 = vadd.f32 %v445, %v4134
    %v4141 = vtanh.pop %v4137
    %v4142 = vtanh.pop %v4138
    %v4143 = vtanh.pop %v4139
    %v4144 = vtanh.pop %v4140
    %v4145 = vmul.f32 %v4141, %v608
    %v4146 = vmul.f32 %v4142, %v608
    %v4147 = vmul.f32 %v4143, %v608
    %v4148 = vmul.f32 %v4144, %v608
    %v4149 = vsel %vm614, %v4145, 0.0
    %4150 = vadd.xlane.f32.xlu0 %v4149
    %v4151 = vpop.xlane.xlu0 %4150
    %v4152 = vsel %vm614, %v4146, 0.0
    %4153 = vadd.xlane.f32.xlu0 %v4152
    %v4154 = vpop.xlane.xlu0 %4153
    %v4155 = vsel %vm614, %v4147, 0.0
    %4156 = vadd.xlane.f32.xlu0 %v4155
    %v4157 = vpop.xlane.xlu0 %4156
    %v4158 = vsel %vm614, %v4148, 0.0
    %4159 = vadd.xlane.f32.xlu0 %v4158
    %v4160 = vpop.xlane.xlu0 %4159
    %v4161 = vadd.f32 %v4151, %v634
    %v4162 = vadd.f32 %v4154, %v634
    %v4163 = vadd.f32 %v4157, %v634
    %v4164 = vadd.f32 %v4160, %v634
    %v4169 = vlaneseq
    %v4170 = vshrl.u32 %v4169, 7
    %v4171 = vsub.s32 %v645, %v4170
    %v4172 = vrot.slane %v4161, %v4171
    %v4173 = vlaneseq
    %v4174 = vshrl.u32 %v4173, 7
    %v4175 = vsub.s32 %v650, %v4174
    %v4176 = vrot.slane %v4162, %v4175
    %v4177 = vsel %vm655, %v4176, %v4172
    %v4178 = vlaneseq
    %v4179 = vshrl.u32 %v4178, 7
    %v4180 = vsub.s32 %v645, %v4179
    %v4181 = vrot.slane %v4163, %v4180
    %v4182 = vlaneseq
    %v4183 = vshrl.u32 %v4182, 7
    %v4184 = vsub.s32 %v650, %v4183
    %v4185 = vrot.slane %v4164, %v4184
    %v4186 = vsel %vm655, %v4185, %v4181
    %v4187 = vsel %vm113, %v4186, %v4177
    %v4189 = vsel %vm668, %v4187, -inf
    %4190 = vmax.xlane.f32.xlu0 %v4189
    %v4191 = vpop.xlane.xlu0 %4190
    %v4193 = vlaneseq
    %v4194 = vshrl.u32 %v4193, 7
    %v4195 = vsub.s32 0, %v4194
    %v4196 = vrot.slane %v4191, %v4195
    %v4197 = vlaneseq
    %v4198 = vshrl.u32 %v4197, 7
    %v4199 = vsub.s32 1, %v4198
    %v4200 = vrot.slane %v4191, %v4199
    %v4203 = vsub.f32 %v4161, %v4196
    %v4204 = vsub.f32 %v4162, %v4196
    %v4205 = vsub.f32 %v4163, %v4200
    %v4206 = vsub.f32 %v4164, %v4200
    %v4207 = vmul.f32 %v4203, 1.442695
    %v4208 = vpow.pop %v4207
    %v4209 = vmul.f32 %v4204, 1.442695
    %v4210 = vpow.pop %v4209
    %v4211 = vmul.f32 %v4205, 1.442695
    %v4212 = vpow.pop %v4211
    %v4213 = vmul.f32 %v4206, 1.442695
    %v4214 = vpow.pop %v4213
    %4219 = vset.pattern.permute.xlu0 0
    %4220 = vperm.xlu0 %4219, %v4208
    %v4221 = vpop.permute.xlu0 %4220
    %4222 = vset.pattern.permute.xlu0 0
    %4223 = vperm.xlu0 %4222, %v4210
    %v4224 = vpop.permute.xlu0 %4223
    %4225 = vset.pattern.permute.xlu0 0
    %4226 = vperm.xlu0 %4225, %v4212
    %v4227 = vpop.permute.xlu0 %4226
    %4228 = vset.pattern.permute.xlu0 0
    %4229 = vperm.xlu0 %4228, %v4214
    %v4230 = vpop.permute.xlu0 %4229
    %v4231 = vlaneseq
    %v4232 = vshrl.u32 %v4231, 7
    %v4233 = vsub.s32 %v645, %v4232
    %v4234 = vrot.slane %v4221, %v4233
    %v4235 = vlaneseq
    %v4236 = vshrl.u32 %v4235, 7
    %v4237 = vsub.s32 %v650, %v4236
    %v4238 = vrot.slane %v4224, %v4237
    %v4239 = vsel %vm655, %v4238, %v4234
    %v4240 = vlaneseq
    %v4241 = vshrl.u32 %v4240, 7
    %v4242 = vsub.s32 %v645, %v4241
    %v4243 = vrot.slane %v4227, %v4242
    %v4244 = vlaneseq
    %v4245 = vshrl.u32 %v4244, 7
    %v4246 = vsub.s32 %v650, %v4245
    %v4247 = vrot.slane %v4230, %v4246
    %v4248 = vsel %vm655, %v4247, %v4243
    %v4249 = vsel %vm113, %v4248, %v4239
    %v4251 = vsel %vm668, %v4249, 0.0
    %4252 = vadd.xlane.f32.xlu0 %v4251
    %v4253 = vpop.xlane.xlu0 %4252
    %v4255 = vlaneseq
    %v4256 = vshrl.u32 %v4255, 7
    %v4257 = vsub.s32 0, %v4256
    %v4258 = vrot.slane %v4253, %v4257
    %v4259 = vlaneseq
    %v4260 = vshrl.u32 %v4259, 7
    %v4261 = vsub.s32 1, %v4260
    %v4262 = vrot.slane %v4253, %v4261
    %v4265 = vrcp.pop %v4258
    %v4266 = vmul.f32 %v4208, %v4265
    %v4267 = vmul.f32 %v4210, %v4265
    %v4268 = vrcp.pop %v4262
    %v4269 = vmul.f32 %v4212, %v4268
    %v4270 = vmul.f32 %v4214, %v4268
    %v4271 = vpack.c.bf16 %v4267, %v4266
    %v4272 = vpack.c.bf16 %v4270, %v4269
    %v4274 = vunpack.c.l.b16 %v4271
    %v4275 = vunpack.c.h.b16 %v4271
    %4276 = vset.pattern.permute.xlu0 0
    %4277 = vperm.xlu0 %4276, %v4274
    %v4278 = vpop.permute.xlu0 %4277
    %4279 = vset.pattern.permute.xlu0 0
    %4280 = vperm.xlu0 %4279, %v4275
    %v4281 = vpop.permute.xlu0 %4280
    %v4282 = vlaneseq
    %v4283 = vshrl.u32 %v4282, 7
    %v4284 = vsub.s32 %v645, %v4283
    %v4285 = vrot.slane %v4278, %v4284
    %v4286 = vlaneseq
    %v4287 = vshrl.u32 %v4286, 7
    %v4288 = vsub.s32 %v650, %v4287
    %v4289 = vrot.slane %v4281, %v4288
    %v4290 = vsel %vm655, %v4289, %v4285
    %v4291 = vpack.c.b16 %v4290, %v4290
    %v4293 = vsel %vm772, %v4291, 0
    %4295 = vmatprep.subr.bf16.mxu0 0
    %4296 = vmatpush1.bf16.msra.mxu0 %v347
    %4297 = vmatprep.subr.bf16.mxu0 0
    %4298 = vmatpush1.bf16.msra.mxu0 0
    %4299 = vmatprep.subr.bf16.mxu0 0
    %4300 = vmatpush1.bf16.msra.mxu0 0
    %4301 = vmatprep.subr.bf16.mxu0 0
    %4302 = vmatpush1.bf16.msra.mxu0 0
    %4303 = vmatprep.subr.bf16.mxu0 0
    %4304 = vmatpush1.bf16.msra.mxu0 0
    %4305 = vmatprep.subr.bf16.mxu0 0
    %4306 = vmatpush1.bf16.msra.mxu0 0
    %4307 = vmatprep.subr.bf16.mxu0 0
    %4308 = vmatpush1.bf16.msra.mxu0 0
    %4309 = vmatprep.subr.bf16.mxu0 0
    %4310 = vmatpush1.bf16.msra.mxu0 0
    %4311 = vmatprep.subr.bf16.mxu0 0
    %4312 = vmatpush1.bf16.msra.mxu0 0
    %4313 = vmatprep.subr.bf16.mxu0 0
    %4314 = vmatpush1.bf16.msra.mxu0 0
    %4315 = vmatprep.subr.bf16.mxu0 0
    %4316 = vmatpush1.bf16.msra.mxu0 0
    %4317 = vmatprep.subr.bf16.mxu0 0
    %4318 = vmatpush1.bf16.msra.mxu0 0
    %4319 = vmatprep.subr.bf16.mxu0 0
    %4320 = vmatpush1.bf16.msra.mxu0 0
    %4321 = vmatprep.subr.bf16.mxu0 0
    %4322 = vmatpush1.bf16.msra.mxu0 0
    %4323 = vmatprep.subr.bf16.mxu0 0
    %4324 = vmatpush1.bf16.msra.mxu0 0
    %4325 = vmatprep.subr.bf16.mxu0 0
    %4326 = vmatpush1.bf16.msra.mxu0 0
    %4327 = vmatprep.mubr.bf16.mxu0 0
    %4328 = vmatmul.mubr.bf16.gmra.mrb[0].mxu0 %v4293
    %v4329 = vpop.f32.mrb[0].mxu0
    %v4330 = vadd.f32 0.0, %v4329
    %v4331 = vpop.f32.mrb[0].mxu0
    %v4332 = vpop.f32.mrb[0].mxu0
    %v4333 = vpop.f32.mrb[0].mxu0
    %4334 = vdwg.mxu0
    %v4336 = vunpack.c.l.b16 %v4272
    %v4337 = vunpack.c.h.b16 %v4272
    %4338 = vset.pattern.permute.xlu0 0
    %4339 = vperm.xlu0 %4338, %v4336
    %v4340 = vpop.permute.xlu0 %4339
    %4341 = vset.pattern.permute.xlu0 0
    %4342 = vperm.xlu0 %4341, %v4337
    %v4343 = vpop.permute.xlu0 %4342
    %v4344 = vlaneseq
    %v4345 = vshrl.u32 %v4344, 7
    %v4346 = vsub.s32 %v645, %v4345
    %v4347 = vrot.slane %v4340, %v4346
    %v4348 = vlaneseq
    %v4349 = vshrl.u32 %v4348, 7
    %v4350 = vsub.s32 %v650, %v4349
    %v4351 = vrot.slane %v4343, %v4350
    %v4352 = vsel %vm655, %v4351, %v4347
    %v4353 = vpack.c.b16 %v4352, %v4352
    %v4355 = vsel %vm772, %v4353, 0
    %4357 = vmatprep.subr.bf16.mxu0 0
    %4358 = vmatpush1.bf16.msra.mxu0 %v348
    %4359 = vmatprep.subr.bf16.mxu0 0
    %4360 = vmatpush1.bf16.msra.mxu0 0
    %4361 = vmatprep.subr.bf16.mxu0 0
    %4362 = vmatpush1.bf16.msra.mxu0 0
    %4363 = vmatprep.subr.bf16.mxu0 0
    %4364 = vmatpush1.bf16.msra.mxu0 0
    %4365 = vmatprep.subr.bf16.mxu0 0
    %4366 = vmatpush1.bf16.msra.mxu0 0
    %4367 = vmatprep.subr.bf16.mxu0 0
    %4368 = vmatpush1.bf16.msra.mxu0 0
    %4369 = vmatprep.subr.bf16.mxu0 0
    %4370 = vmatpush1.bf16.msra.mxu0 0
    %4371 = vmatprep.subr.bf16.mxu0 0
    %4372 = vmatpush1.bf16.msra.mxu0 0
    %4373 = vmatprep.subr.bf16.mxu0 0
    %4374 = vmatpush1.bf16.msra.mxu0 0
    %4375 = vmatprep.subr.bf16.mxu0 0
    %4376 = vmatpush1.bf16.msra.mxu0 0
    %4377 = vmatprep.subr.bf16.mxu0 0
    %4378 = vmatpush1.bf16.msra.mxu0 0
    %4379 = vmatprep.subr.bf16.mxu0 0
    %4380 = vmatpush1.bf16.msra.mxu0 0
    %4381 = vmatprep.subr.bf16.mxu0 0
    %4382 = vmatpush1.bf16.msra.mxu0 0
    %4383 = vmatprep.subr.bf16.mxu0 0
    %4384 = vmatpush1.bf16.msra.mxu0 0
    %4385 = vmatprep.subr.bf16.mxu0 0
    %4386 = vmatpush1.bf16.msra.mxu0 0
    %4387 = vmatprep.subr.bf16.mxu0 0
    %4388 = vmatpush1.bf16.msra.mxu0 0
    %4389 = vmatprep.mubr.bf16.mxu0 0
    %4390 = vmatmul.mubr.bf16.gmra.mrb[0].mxu0 %v4355
    %v4391 = vpop.f32.mrb[0].mxu0
    %v4392 = vadd.f32 0.0, %v4391
    %v4393 = vpop.f32.mrb[0].mxu0
    %v4394 = vpop.f32.mrb[0].mxu0
    %v4395 = vpop.f32.mrb[0].mxu0
    %4396 = vdwg.mxu0
    %s4397 = scalar_lea.vmem %s1, 6
    %v4398 = vld [vmem:[%s4397] sm:$0x1]
    %v4399 = vpack.c.bf16 %v4330, %v4330
    %v4400 = vpack.c.bf16 %v4392, %v4392
    %v4403 = vunpack.c.l.b16 %v4399
    %v4404 = vunpack.c.l.b16 %v4400
    %v4405 = vrot.slane %v4404, 7
    %v4406 = vsel %vm113, %v4405, %v4403
    %v4407 = vpack.c.b16 %v4406, %v4406
    %4409 = vmatprep.subr.bf16.mxu0 %v938
    %4410 = vmatpush1.bf16.msra.mxu0 %v937
    %4411 = vmatprep.subr.bf16.mxu0 %v940
    %4412 = vmatpush1.bf16.msra.mxu0 %v939
    %4413 = vmatprep.subr.bf16.mxu0 %v942
    %4414 = vmatpush1.bf16.msra.mxu0 %v941
    %4415 = vmatprep.subr.bf16.mxu0 %v944
    %4416 = vmatpush1.bf16.msra.mxu0 %v943
    %4417 = vmatprep.subr.bf16.mxu0 %v946
    %4418 = vmatpush1.bf16.msra.mxu0 %v945
    %4419 = vmatprep.subr.bf16.mxu0 %v948
    %4420 = vmatpush1.bf16.msra.mxu0 %v947
    %4421 = vmatprep.subr.bf16.mxu0 %v950
    %4422 = vmatpush1.bf16.msra.mxu0 %v949
    %4423 = vmatprep.subr.bf16.mxu0 %v952
    %4424 = vmatpush1.bf16.msra.mxu0 %v951
    %4425 = vmatprep.subr.bf16.mxu0 0
    %4426 = vmatpush1.bf16.msra.mxu0 0
    %4427 = vmatprep.subr.bf16.mxu0 0
    %4428 = vmatpush1.bf16.msra.mxu0 0
    %4429 = vmatprep.subr.bf16.mxu0 0
    %4430 = vmatpush1.bf16.msra.mxu0 0
    %4431 = vmatprep.subr.bf16.mxu0 0
    %4432 = vmatpush1.bf16.msra.mxu0 0
    %4433 = vmatprep.subr.bf16.mxu0 0
    %4434 = vmatpush1.bf16.msra.mxu0 0
    %4435 = vmatprep.subr.bf16.mxu0 0
    %4436 = vmatpush1.bf16.msra.mxu0 0
    %4437 = vmatprep.subr.bf16.mxu0 0
    %4438 = vmatpush1.bf16.msra.mxu0 0
    %4439 = vmatprep.subr.bf16.mxu0 0
    %4440 = vmatpush1.bf16.msra.mxu0 0
    %4441 = vmatprep.mubr.bf16.mxu0 0
    %4442 = vmatmul.mubr.bf16.gmra.mrb[0].mxu0 %v4407
    %v4443 = vpop.f32.mrb[0].mxu0
    %v4444 = vadd.f32 0.0, %v4443
    %v4445 = vpop.f32.mrb[0].mxu0
    %v4446 = vadd.f32 0.0, %v4445
    %v4447 = vpop.f32.mrb[0].mxu0
    %v4448 = vpop.f32.mrb[0].mxu0
    %4449 = vdwg.mxu0
    %v4451 = vsel %vm614, %v4398, 0
    %4453 = vmatprep.subr.bf16.mxu0 %v1023
    %4454 = vmatpush1.bf16.msra.mxu0 %v1022
    %4455 = vmatprep.subr.bf16.mxu0 %v1025
    %4456 = vmatpush1.bf16.msra.mxu0 %v1024
    %4457 = vmatprep.subr.bf16.mxu0 0
    %4458 = vmatpush1.bf16.msra.mxu0 0
    %4459 = vmatprep.subr.bf16.mxu0 0
    %4460 = vmatpush1.bf16.msra.mxu0 0
    %4461 = vmatprep.subr.bf16.mxu0 0
    %4462 = vmatpush1.bf16.msra.mxu0 0
    %4463 = vmatprep.subr.bf16.mxu0 0
    %4464 = vmatpush1.bf16.msra.mxu0 0
    %4465 = vmatprep.subr.bf16.mxu0 0
    %4466 = vmatpush1.bf16.msra.mxu0 0
    %4467 = vmatprep.subr.bf16.mxu0 0
    %4468 = vmatpush1.bf16.msra.mxu0 0
    %4469 = vmatprep.subr.bf16.mxu0 0
    %4470 = vmatpush1.bf16.msra.mxu0 0
    %4471 = vmatprep.subr.bf16.mxu0 0
    %4472 = vmatpush1.bf16.msra.mxu0 0
    %4473 = vmatprep.subr.bf16.mxu0 0
    %4474 = vmatpush1.bf16.msra.mxu0 0
    %4475 = vmatprep.subr.bf16.mxu0 0
    %4476 = vmatpush1.bf16.msra.mxu0 0
    %4477 = vmatprep.subr.bf16.mxu0 0
    %4478 = vmatpush1.bf16.msra.mxu0 0
    %4479 = vmatprep.subr.bf16.mxu0 0
    %4480 = vmatpush1.bf16.msra.mxu0 0
    %4481 = vmatprep.subr.bf16.mxu0 0
    %4482 = vmatpush1.bf16.msra.mxu0 0
    %4483 = vmatprep.subr.bf16.mxu0 0
    %4484 = vmatpush1.bf16.msra.mxu0 0
    %4485 = vmatprep.mubr.bf16.mxu0 0
    %4486 = vmatmul.mubr.bf16.gmra.mrb[0].mxu0 %v4451
    %v4487 = vpop.f32.mrb[0].mxu0
    %v4488 = vadd.f32 %v4444, %v4487
    %v4489 = vpop.f32.mrb[0].mxu0
    %v4490 = vadd.f32 %v4446, %v4489
    %v4491 = vpop.f32.mrb[0].mxu0
    %v4492 = vpop.f32.mrb[0].mxu0
    %4493 = vdwg.mxu0
    %4494 = vmatprep.subr.bf16.mxu0 %v1099
    %4495 = vmatpush1.bf16.msra.mxu0 %v1098
    %4496 = vmatprep.subr.bf16.mxu0 %v1101
    %4497 = vmatpush1.bf16.msra.mxu0 %v1100
    %4498 = vmatprep.subr.bf16.mxu0 %v1103
    %4499 = vmatpush1.bf16.msra.mxu0 %v1102
    %4500 = vmatprep.subr.bf16.mxu0 %v1105
    %4501 = vmatpush1.bf16.msra.mxu0 %v1104
    %4502 = vmatprep.subr.bf16.mxu0 0
    %4503 = vmatpush1.bf16.msra.mxu0 0
    %4504 = vmatprep.subr.bf16.mxu0 0
    %4505 = vmatpush1.bf16.msra.mxu0 0
    %4506 = vmatprep.subr.bf16.mxu0 0
    %4507 = vmatpush1.bf16.msra.mxu0 0
    %4508 = vmatprep.subr.bf16.mxu0 0
    %4509 = vmatpush1.bf16.msra.mxu0 0
    %4510 = vmatprep.subr.bf16.mxu0 0
    %4511 = vmatpush1.bf16.msra.mxu0 0
    %4512 = vmatprep.subr.bf16.mxu0 0
    %4513 = vmatpush1.bf16.msra.mxu0 0
    %4514 = vmatprep.subr.bf16.mxu0 0
    %4515 = vmatpush1.bf16.msra.mxu0 0
    %4516 = vmatprep.subr.bf16.mxu0 0
    %4517 = vmatpush1.bf16.msra.mxu0 0
    %4518 = vmatprep.subr.bf16.mxu0 0
    %4519 = vmatpush1.bf16.msra.mxu0 0
    %4520 = vmatprep.subr.bf16.mxu0 0
    %4521 = vmatpush1.bf16.msra.mxu0 0
    %4522 = vmatprep.subr.bf16.mxu0 0
    %4523 = vmatpush1.bf16.msra.mxu0 0
    %4524 = vmatprep.subr.bf16.mxu0 0
    %4525 = vmatpush1.bf16.msra.mxu0 0
    %4526 = vmatprep.mubr.bf16.mxu0 0
    %4527 = vmatmul.mubr.bf16.gmra.mrb[0].mxu0 %v4062
    %v4528 = vpop.f32.mrb[0].mxu0
    %v4529 = vadd.f32 0.0, %v4528
    %v4530 = vpop.f32.mrb[0].mxu0
    %v4531 = vadd.f32 0.0, %v4530
    %v4532 = vpop.f32.mrb[0].mxu0
    %v4533 = vpop.f32.mrb[0].mxu0
    %4534 = vdwg.mxu0
    %v4535 = vadd.f32 %v4488, %v4529
    %v4536 = vadd.f32 %v4490, %v4531
    %v4537 = vadd.f32 %v4535, %v1161
    %v4538 = vadd.f32 %v4536, %v1165
    %v4539 = vxor.u32 %v4537, 2147483648
    %v4540 = vmul.f32 %v4539, 1.442695
    %v4541 = vpow.pop %v4540
    %v4542 = vadd.f32 %v4541, 1.0
    %v4543 = vrcp.pop %v4542
    %v4544 = vmul.f32 1.0, %v4543
    %v4545 = vtanh.pop %v4538
    %v4546 = vxor.u32 %v4538, 2147483648
    %v4547 = vmul.f32 %v4546, 1.442695
    %v4548 = vpow.pop %v4547
    %v4549 = vadd.f32 %v4548, 1.0
    %v4550 = vrcp.pop %v4549
    %v4551 = vmul.f32 1.0, %v4550
    %v4552 = vmul.f32 %v4544, %v3997
    %v4553 = vmul.f32 %v4544, %v4545
    %4555 = vrot.lane.b32.xlu0 %v4553, 64
    %v4556 = vpop.permute.xlu0 %4555
    %v4558 = vadd.f32 %v4552, %v4556
    %v4559 = vtanh.pop %v4558
    %v4560 = vmul.f32 %v4551, %v4559
    %v4561 = vpack.c.bf16 %v4560, %v4560
    %v4564 = vunpack.c.l.s4 1966171168
    %v4565 = vunpack.c.0.s8 %v4564
    %v4566 = vlaneseq
    %v4567 = vshrl.u32 %v4566, 7
    %v4568 = vsub.s32 %v4565, %v4567
    %v4569 = vrot.slane %v4561, %v4568
    %v4571 = vunpack.c.l.s4 1966171168
    %v4572 = vunpack.c.0.s8 %v4571
    %v4573 = vlaneseq
    %v4574 = vshrl.u32 %v4573, 7
    %v4575 = vsub.s32 %v4572, %v4574
    %v4576 = vrot.slane %v4569, %v4575
    %4577 = vrot.lane.b32.xlu0 %v4576, 64
    %v4578 = vpop.permute.xlu0 %4577
    %s4580 = scalar_lea.vmem %s16, 6
    %4581 = vst.msk [vmem:[%s4580] sm:$0x1] %vm1215, %v4578
    %4586 = vset.pattern.permute.xlu0 0
    %4587 = vperm.xlu0 %4586, %v4266
    %v4588 = vpop.permute.xlu0 %4587
    %4589 = vset.pattern.permute.xlu0 0
    %4590 = vperm.xlu0 %4589, %v4267
    %v4591 = vpop.permute.xlu0 %4590
    %4592 = vset.pattern.permute.xlu0 0
    %4593 = vperm.xlu0 %4592, %v4269
    %v4594 = vpop.permute.xlu0 %4593
    %4595 = vset.pattern.permute.xlu0 0
    %4596 = vperm.xlu0 %4595, %v4270
    %v4597 = vpop.permute.xlu0 %4596
    %v4598 = vlaneseq
    %v4599 = vshrl.u32 %v4598, 7
    %v4600 = vsub.s32 %v645, %v4599
    %v4601 = vrot.slane %v4588, %v4600
    %v4602 = vlaneseq
    %v4603 = vshrl.u32 %v4602, 7
    %v4604 = vsub.s32 %v650, %v4603
    %v4605 = vrot.slane %v4591, %v4604
    %v4606 = vsel %vm655, %v4605, %v4601
    %v4607 = vlaneseq
    %v4608 = vshrl.u32 %v4607, 7
    %v4609 = vsub.s32 %v645, %v4608
    %v4610 = vrot.slane %v4594, %v4609
    %v4611 = vlaneseq
    %v4612 = vshrl.u32 %v4611, 7
    %v4613 = vsub.s32 %v650, %v4612
    %v4614 = vrot.slane %v4597, %v4613
    %v4615 = vsel %vm655, %v4614, %v4610
    %v4616 = vsel %vm113, %v4615, %v4606
    %s4618 = scalar_lea.vmem [#allocation3], 12
    %4619 = vst.msk [vmem:[%s4618] sm:$0x3] %vm668, %v4616
    // Predicated region
    $region66: #{encoder_decoder_forward.4} parent=1 // pred_check
      _
    $region67: #{encoder_decoder_forward.4} parent=1 // pred_check_branch
      %4621 = sbr.rel (0) target = $region69
    $region68: #{encoder_decoder_forward.4} parent=1 // pred_region
      _
    $region69: #{encoder_decoder_forward.4} parent=1 // pred_fallthru
      _
    // Predicated region
    $region70: #{encoder_decoder_forward.4} parent=1 // pred_check
      _
    $region71: #{encoder_decoder_forward.4} parent=1 // pred_check_branch
      %4623 = sbr.rel (0) target = $region73
    $region72: #{encoder_decoder_forward.4} parent=1 // pred_region
      %s4625 = ssub.s32 224, 224
      %4626 = vsyncadd [#allocation4], %s4625
      %s4627 = sshll.u32 [#allocation3], 4
      %s4628 = int_to_ptr.vmem [resolvable:$true] %s4627
      %4633 = dma.vmem_to_hbm [thread:$0]  %s4628, 224, %s17, [#allocation4], 32, 32, 2
    $region73: #{encoder_decoder_forward.4} parent=1 // pred_fallthru
      _
    // Predicated region
    $region74: #{encoder_decoder_forward.4} parent=1 // pred_check
      _
    $region75: #{encoder_decoder_forward.4} parent=1 // pred_check_branch
      %4635 = sbr.rel (0) target = $region77
    $region76: #{encoder_decoder_forward.4} parent=1 // pred_region
      _
    $region77: #{encoder_decoder_forward.4} parent=1 // pred_fallthru
      _
    // Predicated region
    $region78: #{encoder_decoder_forward.4} parent=1 // pred_check
      _
    $region79: #{encoder_decoder_forward.4} parent=1 // pred_check_branch
      %4637 = sbr.rel (0) target = $region81
    $region80: #{encoder_decoder_forward.4} parent=1 // pred_region
      %4638 = dma.done [#allocation4], 224
    $region81: #{encoder_decoder_forward.4} parent=1 // pred_fallthru
      _
    %4639 = vsyncpa [#allocation4], 1

</llo_original>
